<compile_context>
chip_gen: v7x
topology: tpu7x:2x2x1
jax: 0.10.0
libtpu: 0.0.40
codegen_flags: <defaults>
</compile_context>

<pallas_src>
import functools
import math

import jax
import jax.numpy as jnp
from jax.experimental import pallas as pl
from jax.experimental.pallas import tpu as pltpu

D_MODEL = 32
D_FF = 64
N_HEADS = 4
D_K = D_MODEL // N_HEADS
EPS = 1e-6
NEG_INF = -1.0e9


# --------------------------- in-kernel helpers ------------------------------
def _layer_norm(x, alpha, beta):
    # Matches LayerNormilzation: unbiased std, divide by (std + eps).
    mean = jnp.mean(x, axis=-1, keepdims=True)
    var = jnp.sum((x - mean) ** 2, axis=-1, keepdims=True) / (x.shape[-1] - 1)
    inv = pl.reciprocal(jnp.sqrt(var) + EPS, approx=True)
    return alpha * (x - mean) * inv + beta


def _mha(q_in, kv_in, bias, w, b, *, batch):
    """Multi-head attention on batch-flattened activations.

    q_in : (B*Sq, D) f32       kv_in: (B*Sk, D) f32
    bias : (Sq, Sk)  f32 additive mask (0 or -1e9), shared across batch
    w    : (4, D, D) bf16  [Wq, Wk, Wv, Wo]
    b    : (4, D)    f32   [bq, bk, bv, bo]
    """
    sq = q_in.shape[0] // batch
    sk = kv_in.shape[0] // batch
    scale = 1.0 / math.sqrt(D_K)

    # Dense lane-packed projections: one (N,32)x(32,32) MXU pass each.
    q = jnp.dot(q_in.astype(jnp.bfloat16), w[0],
                preferred_element_type=jnp.float32) + b[0]
    k = jnp.dot(kv_in.astype(jnp.bfloat16), w[1],
                preferred_element_type=jnp.float32) + b[1]
    v = jnp.dot(kv_in.astype(jnp.bfloat16), w[2],
                preferred_element_type=jnp.float32) + b[2]

    # Split (batch, head) into a single leading axis: (B*H, S, Dk).
    def split_heads(t, s):
        return jnp.stack(
            [t[bi * s:(bi + 1) * s, h * D_K:(h + 1) * D_K]
             for bi in range(batch) for h in range(N_HEADS)], axis=0)

    qh = split_heads(q * scale, sq).astype(jnp.bfloat16)
    kh = split_heads(k, sk).astype(jnp.bfloat16)
    vh = split_heads(v, sk).astype(jnp.bfloat16)

    # Scores / softmax / PV — one 3-D einsum each over all (batch, head).
    s = jnp.einsum("gqd,gkd->gqk", qh, kh,
                   preferred_element_type=jnp.float32)
    s = s + bias[None, :, :]
    m = jnp.max(s, axis=-1, keepdims=True)
    e = jnp.exp(s - m)
    p = e * pl.reciprocal(jnp.sum(e, axis=-1, keepdims=True), approx=True)

    o = jnp.einsum("gqk,gkd->gqd", p.astype(jnp.bfloat16), vh,
                   preferred_element_type=jnp.float32)      # (B*H, Sq, Dk)

    # Merge heads back into lanes -> (B*Sq, D), then one dense Wo matmul.
    o2 = jnp.concatenate(
        [jnp.concatenate([o[bi * N_HEADS + h] for h in range(N_HEADS)],
                         axis=-1)
         for bi in range(batch)], axis=0)
    return jnp.dot(o2.astype(jnp.bfloat16), w[3],
                   preferred_element_type=jnp.float32) + b[3]


# ------------------------------- the kernel ---------------------------------
def decoder_block_kernel(
    x_ref, enc_ref, tgt_bias_ref, src_bias_ref,
    w_attn_ref, b_attn_ref, w_ff1_ref, w_ff2_ref, b_ff_ref,
    ln_ref,                       # SMEM (6,): [a1, b1, a2, b2, a3, b3]
    out_ref,
    *, batch,
):
    x = x_ref[...]                # (B*S, D) f32
    enc = enc_ref[...]            # (B*S_enc, D) f32
    tgt_bias = tgt_bias_ref[...]  # (S, S) f32 additive
    src_bias = src_bias_ref[...]  # (S, S_enc) f32 additive
    b_ff = b_ff_ref[...]          # (2, D_FF) f32

    # residual 1: self-attention on pre-normed x
    n1 = _layer_norm(x, ln_ref[0], ln_ref[1])
    x = x + _mha(n1, n1, tgt_bias, w_attn_ref[0], b_attn_ref[0], batch=batch)

    # residual 2: cross-attention (q from decoder, k/v from encoder output)
    n2 = _layer_norm(x, ln_ref[2], ln_ref[3])
    x = x + _mha(n2, enc, src_bias, w_attn_ref[1], b_attn_ref[1], batch=batch)

    # residual 3: feed-forward (linear -> relu -> linear)
    n3 = _layer_norm(x, ln_ref[4], ln_ref[5])
    h = jnp.maximum(
        jnp.dot(n3.astype(jnp.bfloat16), w_ff1_ref[...],
                preferred_element_type=jnp.float32) + b_ff[0], 0.0)
    x = x + (jnp.dot(h.astype(jnp.bfloat16), w_ff2_ref[...],
                     preferred_element_type=jnp.float32) + b_ff[1, :D_MODEL])

    out_ref[...] = x


# ------------------------------- wrapper -------------------------------------
def pack_params(p):
    """Pack 20 torch-style tensors into 6 lane-dense refs.
    MXU-feeding weights pre-cast to bf16 (halves their DMA bytes)."""
    w_attn = jnp.stack([
        jnp.stack([p["sa_wq"], p["sa_wk"], p["sa_wv"], p["sa_wo"]]),
        jnp.stack([p["ca_wq"], p["ca_wk"], p["ca_wv"], p["ca_wo"]]),
    ]).astype(jnp.bfloat16)                                   # (2, 4, D, D)
    b_attn = jnp.stack([
        jnp.stack([p["sa_bq"][0], p["sa_bk"][0], p["sa_bv"][0], p["sa_bo"][0]]),
        jnp.stack([p["ca_bq"][0], p["ca_bk"][0], p["ca_bv"][0], p["ca_bo"][0]]),
    ]).astype(jnp.float32)                                    # (2, 4, D)
    b_ff = jnp.zeros((2, D_FF), jnp.float32)
    b_ff = b_ff.at[0, :].set(p["ff_b1"][0])
    b_ff = b_ff.at[1, :D_MODEL].set(p["ff_b2"][0])            # (2, D_FF)
    return {
        "w_attn": w_attn,
        "b_attn": b_attn,
        "w_ff1": p["ff_w1"].astype(jnp.bfloat16),             # (D, D_FF)
        "w_ff2": p["ff_w2"].astype(jnp.bfloat16),             # (D_FF, D)
        "b_ff": b_ff,
        "ln": p["ln"].reshape(-1).astype(jnp.float32),        # (6,)
    }


def decoder_block(x, enc, tgt_mask, src_mask, packed):
    B, S, D = x.shape
    S_enc = enc.shape[1]

    # Fold batch into sublanes; single kernel invocation (no grid) — on
    # single-TC v5e/v6e this removes all per-step pipeline overhead.
    # (For v7x at larger B, switch to grid=(2,) "parallel" blocks of B//2.)
    x2 = x.reshape(B * S, D)
    enc2 = enc.reshape(B * S_enc, D)

    # Additive mask biases precomputed once outside the kernel.
    tgt_bias = jnp.where(tgt_mask == 0, NEG_INF, 0.0).astype(jnp.float32)
    src_bias = jnp.where(src_mask == 0, NEG_INF, 0.0).astype(jnp.float32)

    vmem_specs = [pl.BlockSpec(memory_space=pltpu.MemorySpace.VMEM)
                  for _ in range(9)]
    smem_spec = pl.BlockSpec(memory_space=pltpu.MemorySpace.SMEM)

    out = pl.pallas_call(
        functools.partial(decoder_block_kernel, batch=B),
        out_shape=jax.ShapeDtypeStruct((B * S, D), jnp.float32),
        in_specs=vmem_specs + [smem_spec],
        out_specs=pl.BlockSpec(memory_space=pltpu.MemorySpace.VMEM),
    )(x2, enc2, tgt_bias, src_bias,
      packed["w_attn"], packed["b_attn"],
      packed["w_ff1"], packed["w_ff2"], packed["b_ff"], packed["ln"])
    return out.reshape(B, S, D)


# --------------------------- pure-JAX f32 reference --------------------------
def _ref_ln(x, a, b):
    mean = x.mean(-1, keepdims=True)
    std = jnp.sqrt(((x - mean) ** 2).sum(-1, keepdims=True) / (x.shape[-1] - 1))
    return a * (x - mean) / (std + EPS) + b


def _ref_mha(q_in, k_in, v_in, mask, wq, bq, wk, bk, wv, bv, wo, bo):
    q = q_in @ wq + bq
    k = k_in @ wk + bk
    v = v_in @ wv + bv
    B, Sq, _ = q.shape
    Sk = k.shape[1]
    qh = q.reshape(B, Sq, N_HEADS, D_K).transpose(0, 2, 1, 3)
    kh = k.reshape(B, Sk, N_HEADS, D_K).transpose(0, 2, 1, 3)
    vh = v.reshape(B, Sk, N_HEADS, D_K).transpose(0, 2, 1, 3)
    s = jnp.einsum("bhqd,bhkd->bhqk", qh, kh) / math.sqrt(D_K)
    s = jnp.where(mask[None, None] == 0, NEG_INF, s)
    p = jax.nn.softmax(s, axis=-1)
    o = jnp.einsum("bhqk,bhkd->bhqd", p, vh)
    o = o.transpose(0, 2, 1, 3).reshape(B, Sq, D_MODEL)
    return o @ wo + bo


def decoder_block_reference(x, enc, tgt_mask, src_mask, p):
    ln = p["ln"]
    n1 = _ref_ln(x, ln[0, 0], ln[0, 1])
    x = x + _ref_mha(n1, n1, n1, tgt_mask,
                     p["sa_wq"], p["sa_bq"], p["sa_wk"], p["sa_bk"],
                     p["sa_wv"], p["sa_bv"], p["sa_wo"], p["sa_bo"])
    n2 = _ref_ln(x, ln[1, 0], ln[1, 1])
    x = x + _ref_mha(n2, enc, enc, src_mask,
                     p["ca_wq"], p["ca_bq"], p["ca_wk"], p["ca_bk"],
                     p["ca_wv"], p["ca_bv"], p["ca_wo"], p["ca_bo"])
    n3 = _ref_ln(x, ln[2, 0], ln[2, 1])
    h = jnp.maximum(n3 @ p["ff_w1"] + p["ff_b1"], 0.0)
    return x + h @ p["ff_w2"] + p["ff_b2"]


# ------------------------------- main ----------------------------------------
if __name__ == "__main__":
    B, S, S_ENC = 2, 8, 8
    key = jax.random.PRNGKey(0)
    keys = jax.random.split(key, 32)
    ki = iter(keys)

    def w(shape, scale=0.1):
        return (scale * jax.random.normal(next(ki), shape)).astype(jnp.float32)

    params = {}
    for prefix in ("sa", "ca"):
        for name in ("q", "k", "v", "o"):
            params[f"{prefix}_w{name}"] = w((D_MODEL, D_MODEL))
            params[f"{prefix}_b{name}"] = w((1, D_MODEL))
    params["ff_w1"] = w((D_MODEL, D_FF))
    params["ff_b1"] = w((1, D_FF))
    params["ff_w2"] = w((D_FF, D_MODEL))
    params["ff_b2"] = w((1, D_MODEL))
    # LayerNorm alpha=1, beta=0 (as in the module's __init__), one row per
    # residual connection.
    params["ln"] = jnp.tile(jnp.array([[1.0, 0.0]], jnp.float32), (3, 1))

    x = jax.random.normal(next(ki), (B, S, D_MODEL), jnp.float32)
    enc = jax.random.normal(next(ki), (B, S_ENC, D_MODEL), jnp.float32)
    tgt_mask = jnp.tril(jnp.ones((S, S), jnp.float32))          # causal
    src_mask = jnp.ones((S, S_ENC), jnp.float32)                # all visible

    packed = pack_params(params)
    out = decoder_block(x, enc, tgt_mask, src_mask, packed)
    out = jax.block_until_ready(out)

    ref = decoder_block_reference(x, enc, tgt_mask, src_mask, params)
    assert out.shape == (B, S, D_MODEL)
    # bf16 MXU operands + approx EUP reciprocals -> loosened tolerance vs the
    # f32 reference (errors observed are O(1e-2) absolute at these scales).
    assert jnp.allclose(out, ref, atol=5e-2, rtol=5e-2), (
        float(jnp.max(jnp.abs(out - ref))))
    print("KERNEL_OK")
</pallas_src>

<mosaic_0001>
module attributes {stable_mosaic.version = 11 : i64} {
  func.func @decoder_block_kernel(%arg0: memref<16x32xf32, #tpu.memory_space<vmem>>, %arg1: memref<16x32xf32, #tpu.memory_space<vmem>>, %arg2: memref<8x8xf32, #tpu.memory_space<vmem>>, %arg3: memref<8x8xf32, #tpu.memory_space<vmem>>, %arg4: memref<2x4x32x32xbf16, #tpu.memory_space<vmem>>, %arg5: memref<2x4x32xf32, #tpu.memory_space<vmem>>, %arg6: memref<32x64xbf16, #tpu.memory_space<vmem>>, %arg7: memref<64x32xbf16, #tpu.memory_space<vmem>>, %arg8: memref<2x64xf32, #tpu.memory_space<vmem>>, %arg9: memref<6xf32, #tpu.memory_space<smem>>, %arg10: memref<16x32xf32, #tpu.memory_space<vmem>>) attributes {dimension_semantics = [], scalar_prefetch = 0 : i64, scratch_operands = 0 : i64, tpu.core_type = #tpu.core_type<tc>} {
    %c0 = arith.constant 0 : index
    %c0_0 = arith.constant 0 : index
    %0 = vector.load %arg0[%c0, %c0_0] : memref<16x32xf32, #tpu.memory_space<vmem>>, vector<16x32xf32>
    %c0_1 = arith.constant 0 : index
    %c0_2 = arith.constant 0 : index
    %1 = vector.load %arg1[%c0_1, %c0_2] : memref<16x32xf32, #tpu.memory_space<vmem>>, vector<16x32xf32>
    %c0_3 = arith.constant 0 : index
    %c0_4 = arith.constant 0 : index
    %2 = vector.load %arg2[%c0_3, %c0_4] : memref<8x8xf32, #tpu.memory_space<vmem>>, vector<8x8xf32>
    %c0_5 = arith.constant 0 : index
    %c0_6 = arith.constant 0 : index
    %3 = vector.load %arg3[%c0_5, %c0_6] : memref<8x8xf32, #tpu.memory_space<vmem>>, vector<8x8xf32>
    %c0_7 = arith.constant 0 : index
    %c0_8 = arith.constant 0 : index
    %4 = vector.load %arg8[%c0_7, %c0_8] : memref<2x64xf32, #tpu.memory_space<vmem>>, vector<2x64xf32>
    %c0_9 = arith.constant 0 : index
    %5 = memref.load %arg9[%c0_9] : memref<6xf32, #tpu.memory_space<smem>>
    %c1 = arith.constant 1 : index
    %6 = memref.load %arg9[%c1] : memref<6xf32, #tpu.memory_space<smem>>
    %cst = arith.constant dense<0.000000e+00> : vector<16xf32>
    %7 = vector.multi_reduction <add>, %0, %cst [1] : vector<16x32xf32> to vector<16xf32>
    %8 = vector.shape_cast %7 : vector<16xf32> to vector<16x1xf32>
    %cst_10 = arith.constant 3.200000e+01 : f32
    %9 = vector.broadcast %cst_10 : f32 to vector<16x1xf32>
    %10 = arith.divf %8, %9 : vector<16x1xf32>
    %11 = vector.broadcast %10 : vector<16x1xf32> to vector<16x32xf32>
    %12 = arith.subf %0, %11 : vector<16x32xf32>
    %13 = arith.mulf %12, %12 : vector<16x32xf32>
    %cst_11 = arith.constant dense<0.000000e+00> : vector<16xf32>
    %14 = vector.multi_reduction <add>, %13, %cst_11 [1] : vector<16x32xf32> to vector<16xf32>
    %15 = vector.shape_cast %14 : vector<16xf32> to vector<16x1xf32>
    %cst_12 = arith.constant 3.100000e+01 : f32
    %16 = vector.broadcast %cst_12 : f32 to vector<16x1xf32>
    %17 = arith.divf %15, %16 : vector<16x1xf32>
    %18 = math.sqrt %17 : vector<16x1xf32>
    %cst_13 = arith.constant 9.99999997E-7 : f32
    %19 = vector.broadcast %cst_13 : f32 to vector<16x1xf32>
    %20 = arith.addf %18, %19 : vector<16x1xf32>
    %21 = tpu.reciprocal %20 {approx = true} : vector<16x1xf32> -> vector<16x1xf32>
    %22 = vector.broadcast %10 : vector<16x1xf32> to vector<16x32xf32>
    %23 = arith.subf %0, %22 : vector<16x32xf32>
    %24 = vector.broadcast %5 : f32 to vector<16x32xf32>
    %25 = arith.mulf %24, %23 : vector<16x32xf32>
    %26 = vector.broadcast %21 : vector<16x1xf32> to vector<16x32xf32>
    %27 = arith.mulf %25, %26 : vector<16x32xf32>
    %28 = vector.broadcast %6 : f32 to vector<16x32xf32>
    %29 = arith.addf %27, %28 : vector<16x32xf32>
    %c0_14 = arith.constant 0 : index
    %c0_15 = arith.constant 0 : index
    %c0_16 = arith.constant 0 : index
    %c0_17 = arith.constant 0 : index
    %30 = vector.load %arg4[%c0_14, %c0_15, %c0_16, %c0_17] : memref<2x4x32x32xbf16, #tpu.memory_space<vmem>>, vector<1x4x32x32xbf16>
    %31 = vector.shape_cast %30 : vector<1x4x32x32xbf16> to vector<4x32x32xbf16>
    %c0_18 = arith.constant 0 : index
    %c0_19 = arith.constant 0 : index
    %c0_20 = arith.constant 0 : index
    %32 = vector.load %arg5[%c0_18, %c0_19, %c0_20] : memref<2x4x32xf32, #tpu.memory_space<vmem>>, vector<1x4x32xf32>
    %33 = vector.shape_cast %32 : vector<1x4x32xf32> to vector<4x32xf32>
    %34 = arith.truncf %29 : vector<16x32xf32> to vector<16x32xbf16>
    %35 = vector.extract_strided_slice %31 {offsets = [0, 0, 0], sizes = [1, 32, 32], strides = [1, 1, 1]} : vector<4x32x32xbf16> to vector<1x32x32xbf16>
    %36 = vector.shape_cast %35 : vector<1x32x32xbf16> to vector<32x32xbf16>
    %cst_21 = arith.constant dense<0.000000e+00> : vector<16x32xf32>
    %37 = tpu.matmul %34, %36, %cst_21 {dimension_numbers = #tpu.dot_dimension_numbers<[1], [0], [0], [1], [0, 0, 1, 1], [], []>} : vector<16x32xbf16>, vector<32x32xbf16>, vector<16x32xf32> -> vector<16x32xf32>
    %38 = vector.extract_strided_slice %33 {offsets = [0, 0], sizes = [1, 32], strides = [1, 1]} : vector<4x32xf32> to vector<1x32xf32>
    %39 = vector.shape_cast %38 : vector<1x32xf32> to vector<32xf32>
    %40 = vector.shape_cast %39 : vector<32xf32> to vector<1x32xf32>
    %41 = vector.broadcast %40 : vector<1x32xf32> to vector<16x32xf32>
    %42 = arith.addf %37, %41 : vector<16x32xf32>
    %43 = arith.truncf %29 : vector<16x32xf32> to vector<16x32xbf16>
    %44 = vector.extract_strided_slice %31 {offsets = [1, 0, 0], sizes = [1, 32, 32], strides = [1, 1, 1]} : vector<4x32x32xbf16> to vector<1x32x32xbf16>
    %45 = vector.shape_cast %44 : vector<1x32x32xbf16> to vector<32x32xbf16>
    %cst_22 = arith.constant dense<0.000000e+00> : vector<16x32xf32>
    %46 = tpu.matmul %43, %45, %cst_22 {dimension_numbers = #tpu.dot_dimension_numbers<[1], [0], [0], [1], [0, 0, 1, 1], [], []>} : vector<16x32xbf16>, vector<32x32xbf16>, vector<16x32xf32> -> vector<16x32xf32>
    %47 = vector.extract_strided_slice %33 {offsets = [1, 0], sizes = [1, 32], strides = [1, 1]} : vector<4x32xf32> to vector<1x32xf32>
    %48 = vector.shape_cast %47 : vector<1x32xf32> to vector<32xf32>
    %49 = vector.shape_cast %48 : vector<32xf32> to vector<1x32xf32>
    %50 = vector.broadcast %49 : vector<1x32xf32> to vector<16x32xf32>
    %51 = arith.addf %46, %50 : vector<16x32xf32>
    %52 = arith.truncf %29 : vector<16x32xf32> to vector<16x32xbf16>
    %53 = vector.extract_strided_slice %31 {offsets = [2, 0, 0], sizes = [1, 32, 32], strides = [1, 1, 1]} : vector<4x32x32xbf16> to vector<1x32x32xbf16>
    %54 = vector.shape_cast %53 : vector<1x32x32xbf16> to vector<32x32xbf16>
    %cst_23 = arith.constant dense<0.000000e+00> : vector<16x32xf32>
    %55 = tpu.matmul %52, %54, %cst_23 {dimension_numbers = #tpu.dot_dimension_numbers<[1], [0], [0], [1], [0, 0, 1, 1], [], []>} : vector<16x32xbf16>, vector<32x32xbf16>, vector<16x32xf32> -> vector<16x32xf32>
    %56 = vector.extract_strided_slice %33 {offsets = [2, 0], sizes = [1, 32], strides = [1, 1]} : vector<4x32xf32> to vector<1x32xf32>
    %57 = vector.shape_cast %56 : vector<1x32xf32> to vector<32xf32>
    %58 = vector.shape_cast %57 : vector<32xf32> to vector<1x32xf32>
    %59 = vector.broadcast %58 : vector<1x32xf32> to vector<16x32xf32>
    %60 = arith.addf %55, %59 : vector<16x32xf32>
    %cst_24 = arith.constant 0.353553385 : f32
    %61 = vector.broadcast %cst_24 : f32 to vector<16x32xf32>
    %62 = arith.mulf %42, %61 : vector<16x32xf32>
    %63 = vector.extract_strided_slice %62 {offsets = [0, 0], sizes = [8, 8], strides = [1, 1]} : vector<16x32xf32> to vector<8x8xf32>
    %64 = vector.extract_strided_slice %62 {offsets = [0, 8], sizes = [8, 8], strides = [1, 1]} : vector<16x32xf32> to vector<8x8xf32>
    %65 = vector.extract_strided_slice %62 {offsets = [0, 16], sizes = [8, 8], strides = [1, 1]} : vector<16x32xf32> to vector<8x8xf32>
    %66 = vector.extract_strided_slice %62 {offsets = [0, 24], sizes = [8, 8], strides = [1, 1]} : vector<16x32xf32> to vector<8x8xf32>
    %67 = vector.extract_strided_slice %62 {offsets = [8, 0], sizes = [8, 8], strides = [1, 1]} : vector<16x32xf32> to vector<8x8xf32>
    %68 = vector.extract_strided_slice %62 {offsets = [8, 8], sizes = [8, 8], strides = [1, 1]} : vector<16x32xf32> to vector<8x8xf32>
    %69 = vector.extract_strided_slice %62 {offsets = [8, 16], sizes = [8, 8], strides = [1, 1]} : vector<16x32xf32> to vector<8x8xf32>
    %70 = vector.extract_strided_slice %62 {offsets = [8, 24], sizes = [8, 8], strides = [1, 1]} : vector<16x32xf32> to vector<8x8xf32>
    %71 = vector.shape_cast %63 : vector<8x8xf32> to vector<1x8x8xf32>
    %72 = vector.shape_cast %64 : vector<8x8xf32> to vector<1x8x8xf32>
    %73 = vector.shape_cast %65 : vector<8x8xf32> to vector<1x8x8xf32>
    %74 = vector.shape_cast %66 : vector<8x8xf32> to vector<1x8x8xf32>
    %75 = vector.shape_cast %67 : vector<8x8xf32> to vector<1x8x8xf32>
    %76 = vector.shape_cast %68 : vector<8x8xf32> to vector<1x8x8xf32>
    %77 = vector.shape_cast %69 : vector<8x8xf32> to vector<1x8x8xf32>
    %78 = vector.shape_cast %70 : vector<8x8xf32> to vector<1x8x8xf32>
    %79 = tpu.concatenate %71, %72, %73, %74, %75, %76, %77, %78 in 0 : vector<1x8x8xf32>, vector<1x8x8xf32>, vector<1x8x8xf32>, vector<1x8x8xf32>, vector<1x8x8xf32>, vector<1x8x8xf32>, vector<1x8x8xf32>, vector<1x8x8xf32> -> vector<8x8x8xf32>
    %80 = arith.truncf %79 : vector<8x8x8xf32> to vector<8x8x8xbf16>
    %81 = vector.extract_strided_slice %51 {offsets = [0, 0], sizes = [8, 8], strides = [1, 1]} : vector<16x32xf32> to vector<8x8xf32>
    %82 = vector.extract_strided_slice %51 {offsets = [0, 8], sizes = [8, 8], strides = [1, 1]} : vector<16x32xf32> to vector<8x8xf32>
    %83 = vector.extract_strided_slice %51 {offsets = [0, 16], sizes = [8, 8], strides = [1, 1]} : vector<16x32xf32> to vector<8x8xf32>
    %84 = vector.extract_strided_slice %51 {offsets = [0, 24], sizes = [8, 8], strides = [1, 1]} : vector<16x32xf32> to vector<8x8xf32>
    %85 = vector.extract_strided_slice %51 {offsets = [8, 0], sizes = [8, 8], strides = [1, 1]} : vector<16x32xf32> to vector<8x8xf32>
    %86 = vector.extract_strided_slice %51 {offsets = [8, 8], sizes = [8, 8], strides = [1, 1]} : vector<16x32xf32> to vector<8x8xf32>
    %87 = vector.extract_strided_slice %51 {offsets = [8, 16], sizes = [8, 8], strides = [1, 1]} : vector<16x32xf32> to vector<8x8xf32>
    %88 = vector.extract_strided_slice %51 {offsets = [8, 24], sizes = [8, 8], strides = [1, 1]} : vector<16x32xf32> to vector<8x8xf32>
    %89 = vector.shape_cast %81 : vector<8x8xf32> to vector<1x8x8xf32>
    %90 = vector.shape_cast %82 : vector<8x8xf32> to vector<1x8x8xf32>
    %91 = vector.shape_cast %83 : vector<8x8xf32> to vector<1x8x8xf32>
    %92 = vector.shape_cast %84 : vector<8x8xf32> to vector<1x8x8xf32>
    %93 = vector.shape_cast %85 : vector<8x8xf32> to vector<1x8x8xf32>
    %94 = vector.shape_cast %86 : vector<8x8xf32> to vector<1x8x8xf32>
    %95 = vector.shape_cast %87 : vector<8x8xf32> to vector<1x8x8xf32>
    %96 = vector.shape_cast %88 : vector<8x8xf32> to vector<1x8x8xf32>
    %97 = tpu.concatenate %89, %90, %91, %92, %93, %94, %95, %96 in 0 : vector<1x8x8xf32>, vector<1x8x8xf32>, vector<1x8x8xf32>, vector<1x8x8xf32>, vector<1x8x8xf32>, vector<1x8x8xf32>, vector<1x8x8xf32>, vector<1x8x8xf32> -> vector<8x8x8xf32>
    %98 = arith.truncf %97 : vector<8x8x8xf32> to vector<8x8x8xbf16>
    %99 = vector.extract_strided_slice %60 {offsets = [0, 0], sizes = [8, 8], strides = [1, 1]} : vector<16x32xf32> to vector<8x8xf32>
    %100 = vector.extract_strided_slice %60 {offsets = [0, 8], sizes = [8, 8], strides = [1, 1]} : vector<16x32xf32> to vector<8x8xf32>
    %101 = vector.extract_strided_slice %60 {offsets = [0, 16], sizes = [8, 8], strides = [1, 1]} : vector<16x32xf32> to vector<8x8xf32>
    %102 = vector.extract_strided_slice %60 {offsets = [0, 24], sizes = [8, 8], strides = [1, 1]} : vector<16x32xf32> to vector<8x8xf32>
    %103 = vector.extract_strided_slice %60 {offsets = [8, 0], sizes = [8, 8], strides = [1, 1]} : vector<16x32xf32> to vector<8x8xf32>
    %104 = vector.extract_strided_slice %60 {offsets = [8, 8], sizes = [8, 8], strides = [1, 1]} : vector<16x32xf32> to vector<8x8xf32>
    %105 = vector.extract_strided_slice %60 {offsets = [8, 16], sizes = [8, 8], strides = [1, 1]} : vector<16x32xf32> to vector<8x8xf32>
    %106 = vector.extract_strided_slice %60 {offsets = [8, 24], sizes = [8, 8], strides = [1, 1]} : vector<16x32xf32> to vector<8x8xf32>
    %107 = vector.shape_cast %99 : vector<8x8xf32> to vector<1x8x8xf32>
    %108 = vector.shape_cast %100 : vector<8x8xf32> to vector<1x8x8xf32>
    %109 = vector.shape_cast %101 : vector<8x8xf32> to vector<1x8x8xf32>
    %110 = vector.shape_cast %102 : vector<8x8xf32> to vector<1x8x8xf32>
    %111 = vector.shape_cast %103 : vector<8x8xf32> to vector<1x8x8xf32>
    %112 = vector.shape_cast %104 : vector<8x8xf32> to vector<1x8x8xf32>
    %113 = vector.shape_cast %105 : vector<8x8xf32> to vector<1x8x8xf32>
    %114 = vector.shape_cast %106 : vector<8x8xf32> to vector<1x8x8xf32>
    %115 = tpu.concatenate %107, %108, %109, %110, %111, %112, %113, %114 in 0 : vector<1x8x8xf32>, vector<1x8x8xf32>, vector<1x8x8xf32>, vector<1x8x8xf32>, vector<1x8x8xf32>, vector<1x8x8xf32>, vector<1x8x8xf32>, vector<1x8x8xf32> -> vector<8x8x8xf32>
    %116 = arith.truncf %115 : vector<8x8x8xf32> to vector<8x8x8xbf16>
    "tpu.trace_start"() <{level = 10 : i32, message = "gqd,gkd->gqk"}> : () -> ()
    %cst_25 = arith.constant dense<0.000000e+00> : vector<8x8x8xf32>
    %117 = tpu.matmul %80, %98, %cst_25 {dimension_numbers = #tpu.dot_dimension_numbers<[2], [2], [1], [1], [0, 0, 0, 1, 1, 1], [0], [0]>} : vector<8x8x8xbf16>, vector<8x8x8xbf16>, vector<8x8x8xf32> -> vector<8x8x8xf32>
    "tpu.trace_stop"() : () -> ()
    %118 = vector.shape_cast %2 : vector<8x8xf32> to vector<1x8x8xf32>
    %119 = vector.broadcast %118 : vector<1x8x8xf32> to vector<8x8x8xf32>
    %120 = arith.addf %117, %119 : vector<8x8x8xf32>
    %cst_26 = arith.constant dense<0xFF800000> : vector<8x8xf32>
    %121 = vector.multi_reduction <maximumf>, %120, %cst_26 [2] : vector<8x8x8xf32> to vector<8x8xf32>
    %122 = vector.shape_cast %121 : vector<8x8xf32> to vector<8x8x1xf32>
    %123 = vector.broadcast %122 : vector<8x8x1xf32> to vector<8x8x8xf32>
    %124 = arith.subf %120, %123 : vector<8x8x8xf32>
    %125 = math.exp %124 : vector<8x8x8xf32>
    %cst_27 = arith.constant dense<0.000000e+00> : vector<8x8xf32>
    %126 = vector.multi_reduction <add>, %125, %cst_27 [2] : vector<8x8x8xf32> to vector<8x8xf32>
    %127 = vector.shape_cast %126 : vector<8x8xf32> to vector<8x8x1xf32>
    %128 = tpu.reciprocal %127 {approx = true} : vector<8x8x1xf32> -> vector<8x8x1xf32>
    %129 = vector.broadcast %128 : vector<8x8x1xf32> to vector<8x8x8xf32>
    %130 = arith.mulf %125, %129 : vector<8x8x8xf32>
    %131 = arith.truncf %130 : vector<8x8x8xf32> to vector<8x8x8xbf16>
    "tpu.trace_start"() <{level = 10 : i32, message = "gqk,gkd->gqd"}> : () -> ()
    %cst_28 = arith.constant dense<0.000000e+00> : vector<8x8x8xf32>
    %132 = tpu.matmul %131, %116, %cst_28 {dimension_numbers = #tpu.dot_dimension_numbers<[2], [1], [1], [2], [0, 0, 0, 1, 1, 2], [0], [0]>} : vector<8x8x8xbf16>, vector<8x8x8xbf16>, vector<8x8x8xf32> -> vector<8x8x8xf32>
    "tpu.trace_stop"() : () -> ()
    %133 = vector.extract_strided_slice %132 {offsets = [0, 0, 0], sizes = [1, 8, 8], strides = [1, 1, 1]} : vector<8x8x8xf32> to vector<1x8x8xf32>
    %134 = vector.shape_cast %133 : vector<1x8x8xf32> to vector<8x8xf32>
    %135 = vector.extract_strided_slice %132 {offsets = [1, 0, 0], sizes = [1, 8, 8], strides = [1, 1, 1]} : vector<8x8x8xf32> to vector<1x8x8xf32>
    %136 = vector.shape_cast %135 : vector<1x8x8xf32> to vector<8x8xf32>
    %137 = vector.extract_strided_slice %132 {offsets = [2, 0, 0], sizes = [1, 8, 8], strides = [1, 1, 1]} : vector<8x8x8xf32> to vector<1x8x8xf32>
    %138 = vector.shape_cast %137 : vector<1x8x8xf32> to vector<8x8xf32>
    %139 = vector.extract_strided_slice %132 {offsets = [3, 0, 0], sizes = [1, 8, 8], strides = [1, 1, 1]} : vector<8x8x8xf32> to vector<1x8x8xf32>
    %140 = vector.shape_cast %139 : vector<1x8x8xf32> to vector<8x8xf32>
    %141 = tpu.concatenate %134, %136, %138, %140 in 1 : vector<8x8xf32>, vector<8x8xf32>, vector<8x8xf32>, vector<8x8xf32> -> vector<8x32xf32>
    %142 = vector.extract_strided_slice %132 {offsets = [4, 0, 0], sizes = [1, 8, 8], strides = [1, 1, 1]} : vector<8x8x8xf32> to vector<1x8x8xf32>
    %143 = vector.shape_cast %142 : vector<1x8x8xf32> to vector<8x8xf32>
    %144 = vector.extract_strided_slice %132 {offsets = [5, 0, 0], sizes = [1, 8, 8], strides = [1, 1, 1]} : vector<8x8x8xf32> to vector<1x8x8xf32>
    %145 = vector.shape_cast %144 : vector<1x8x8xf32> to vector<8x8xf32>
    %146 = vector.extract_strided_slice %132 {offsets = [6, 0, 0], sizes = [1, 8, 8], strides = [1, 1, 1]} : vector<8x8x8xf32> to vector<1x8x8xf32>
    %147 = vector.shape_cast %146 : vector<1x8x8xf32> to vector<8x8xf32>
    %148 = vector.extract_strided_slice %132 {offsets = [7, 0, 0], sizes = [1, 8, 8], strides = [1, 1, 1]} : vector<8x8x8xf32> to vector<1x8x8xf32>
    %149 = vector.shape_cast %148 : vector<1x8x8xf32> to vector<8x8xf32>
    %150 = tpu.concatenate %143, %145, %147, %149 in 1 : vector<8x8xf32>, vector<8x8xf32>, vector<8x8xf32>, vector<8x8xf32> -> vector<8x32xf32>
    %151 = tpu.concatenate %141, %150 in 0 : vector<8x32xf32>, vector<8x32xf32> -> vector<16x32xf32>
    %152 = arith.truncf %151 : vector<16x32xf32> to vector<16x32xbf16>
    %153 = vector.extract_strided_slice %31 {offsets = [3, 0, 0], sizes = [1, 32, 32], strides = [1, 1, 1]} : vector<4x32x32xbf16> to vector<1x32x32xbf16>
    %154 = vector.shape_cast %153 : vector<1x32x32xbf16> to vector<32x32xbf16>
    %cst_29 = arith.constant dense<0.000000e+00> : vector<16x32xf32>
    %155 = tpu.matmul %152, %154, %cst_29 {dimension_numbers = #tpu.dot_dimension_numbers<[1], [0], [0], [1], [0, 0, 1, 1], [], []>} : vector<16x32xbf16>, vector<32x32xbf16>, vector<16x32xf32> -> vector<16x32xf32>
    %156 = vector.extract_strided_slice %33 {offsets = [3, 0], sizes = [1, 32], strides = [1, 1]} : vector<4x32xf32> to vector<1x32xf32>
    %157 = vector.shape_cast %156 : vector<1x32xf32> to vector<32xf32>
    %158 = vector.shape_cast %157 : vector<32xf32> to vector<1x32xf32>
    %159 = vector.broadcast %158 : vector<1x32xf32> to vector<16x32xf32>
    %160 = arith.addf %155, %159 : vector<16x32xf32>
    %161 = arith.addf %0, %160 : vector<16x32xf32>
    %c2 = arith.constant 2 : index
    %162 = memref.load %arg9[%c2] : memref<6xf32, #tpu.memory_space<smem>>
    %c3 = arith.constant 3 : index
    %163 = memref.load %arg9[%c3] : memref<6xf32, #tpu.memory_space<smem>>
    %cst_30 = arith.constant dense<0.000000e+00> : vector<16xf32>
    %164 = vector.multi_reduction <add>, %161, %cst_30 [1] : vector<16x32xf32> to vector<16xf32>
    %165 = vector.shape_cast %164 : vector<16xf32> to vector<16x1xf32>
    %cst_31 = arith.constant 3.200000e+01 : f32
    %166 = vector.broadcast %cst_31 : f32 to vector<16x1xf32>
    %167 = arith.divf %165, %166 : vector<16x1xf32>
    %168 = vector.broadcast %167 : vector<16x1xf32> to vector<16x32xf32>
    %169 = arith.subf %161, %168 : vector<16x32xf32>
    %170 = arith.mulf %169, %169 : vector<16x32xf32>
    %cst_32 = arith.constant dense<0.000000e+00> : vector<16xf32>
    %171 = vector.multi_reduction <add>, %170, %cst_32 [1] : vector<16x32xf32> to vector<16xf32>
    %172 = vector.shape_cast %171 : vector<16xf32> to vector<16x1xf32>
    %cst_33 = arith.constant 3.100000e+01 : f32
    %173 = vector.broadcast %cst_33 : f32 to vector<16x1xf32>
    %174 = arith.divf %172, %173 : vector<16x1xf32>
    %175 = math.sqrt %174 : vector<16x1xf32>
    %cst_34 = arith.constant 9.99999997E-7 : f32
    %176 = vector.broadcast %cst_34 : f32 to vector<16x1xf32>
    %177 = arith.addf %175, %176 : vector<16x1xf32>
    %178 = tpu.reciprocal %177 {approx = true} : vector<16x1xf32> -> vector<16x1xf32>
    %179 = vector.broadcast %167 : vector<16x1xf32> to vector<16x32xf32>
    %180 = arith.subf %161, %179 : vector<16x32xf32>
    %181 = vector.broadcast %162 : f32 to vector<16x32xf32>
    %182 = arith.mulf %181, %180 : vector<16x32xf32>
    %183 = vector.broadcast %178 : vector<16x1xf32> to vector<16x32xf32>
    %184 = arith.mulf %182, %183 : vector<16x32xf32>
    %185 = vector.broadcast %163 : f32 to vector<16x32xf32>
    %186 = arith.addf %184, %185 : vector<16x32xf32>
    %c1_35 = arith.constant 1 : index
    %c0_36 = arith.constant 0 : index
    %c0_37 = arith.constant 0 : index
    %c0_38 = arith.constant 0 : index
    %187 = vector.load %arg4[%c1_35, %c0_36, %c0_37, %c0_38] : memref<2x4x32x32xbf16, #tpu.memory_space<vmem>>, vector<1x4x32x32xbf16>
    %188 = vector.shape_cast %187 : vector<1x4x32x32xbf16> to vector<4x32x32xbf16>
    %c1_39 = arith.constant 1 : index
    %c0_40 = arith.constant 0 : index
    %c0_41 = arith.constant 0 : index
    %189 = vector.load %arg5[%c1_39, %c0_40, %c0_41] : memref<2x4x32xf32, #tpu.memory_space<vmem>>, vector<1x4x32xf32>
    %190 = vector.shape_cast %189 : vector<1x4x32xf32> to vector<4x32xf32>
    %191 = arith.truncf %186 : vector<16x32xf32> to vector<16x32xbf16>
    %192 = vector.extract_strided_slice %188 {offsets = [0, 0, 0], sizes = [1, 32, 32], strides = [1, 1, 1]} : vector<4x32x32xbf16> to vector<1x32x32xbf16>
    %193 = vector.shape_cast %192 : vector<1x32x32xbf16> to vector<32x32xbf16>
    %cst_42 = arith.constant dense<0.000000e+00> : vector<16x32xf32>
    %194 = tpu.matmul %191, %193, %cst_42 {dimension_numbers = #tpu.dot_dimension_numbers<[1], [0], [0], [1], [0, 0, 1, 1], [], []>} : vector<16x32xbf16>, vector<32x32xbf16>, vector<16x32xf32> -> vector<16x32xf32>
    %195 = vector.extract_strided_slice %190 {offsets = [0, 0], sizes = [1, 32], strides = [1, 1]} : vector<4x32xf32> to vector<1x32xf32>
    %196 = vector.shape_cast %195 : vector<1x32xf32> to vector<32xf32>
    %197 = vector.shape_cast %196 : vector<32xf32> to vector<1x32xf32>
    %198 = vector.broadcast %197 : vector<1x32xf32> to vector<16x32xf32>
    %199 = arith.addf %194, %198 : vector<16x32xf32>
    %200 = arith.truncf %1 : vector<16x32xf32> to vector<16x32xbf16>
    %201 = vector.extract_strided_slice %188 {offsets = [1, 0, 0], sizes = [1, 32, 32], strides = [1, 1, 1]} : vector<4x32x32xbf16> to vector<1x32x32xbf16>
    %202 = vector.shape_cast %201 : vector<1x32x32xbf16> to vector<32x32xbf16>
    %cst_43 = arith.constant dense<0.000000e+00> : vector<16x32xf32>
    %203 = tpu.matmul %200, %202, %cst_43 {dimension_numbers = #tpu.dot_dimension_numbers<[1], [0], [0], [1], [0, 0, 1, 1], [], []>} : vector<16x32xbf16>, vector<32x32xbf16>, vector<16x32xf32> -> vector<16x32xf32>
    %204 = vector.extract_strided_slice %190 {offsets = [1, 0], sizes = [1, 32], strides = [1, 1]} : vector<4x32xf32> to vector<1x32xf32>
    %205 = vector.shape_cast %204 : vector<1x32xf32> to vector<32xf32>
    %206 = vector.shape_cast %205 : vector<32xf32> to vector<1x32xf32>
    %207 = vector.broadcast %206 : vector<1x32xf32> to vector<16x32xf32>
    %208 = arith.addf %203, %207 : vector<16x32xf32>
    %209 = arith.truncf %1 : vector<16x32xf32> to vector<16x32xbf16>
    %210 = vector.extract_strided_slice %188 {offsets = [2, 0, 0], sizes = [1, 32, 32], strides = [1, 1, 1]} : vector<4x32x32xbf16> to vector<1x32x32xbf16>
    %211 = vector.shape_cast %210 : vector<1x32x32xbf16> to vector<32x32xbf16>
    %cst_44 = arith.constant dense<0.000000e+00> : vector<16x32xf32>
    %212 = tpu.matmul %209, %211, %cst_44 {dimension_numbers = #tpu.dot_dimension_numbers<[1], [0], [0], [1], [0, 0, 1, 1], [], []>} : vector<16x32xbf16>, vector<32x32xbf16>, vector<16x32xf32> -> vector<16x32xf32>
    %213 = vector.extract_strided_slice %190 {offsets = [2, 0], sizes = [1, 32], strides = [1, 1]} : vector<4x32xf32> to vector<1x32xf32>
    %214 = vector.shape_cast %213 : vector<1x32xf32> to vector<32xf32>
    %215 = vector.shape_cast %214 : vector<32xf32> to vector<1x32xf32>
    %216 = vector.broadcast %215 : vector<1x32xf32> to vector<16x32xf32>
    %217 = arith.addf %212, %216 : vector<16x32xf32>
    %cst_45 = arith.constant 0.353553385 : f32
    %218 = vector.broadcast %cst_45 : f32 to vector<16x32xf32>
    %219 = arith.mulf %199, %218 : vector<16x32xf32>
    %220 = vector.extract_strided_slice %219 {offsets = [0, 0], sizes = [8, 8], strides = [1, 1]} : vector<16x32xf32> to vector<8x8xf32>
    %221 = vector.extract_strided_slice %219 {offsets = [0, 8], sizes = [8, 8], strides = [1, 1]} : vector<16x32xf32> to vector<8x8xf32>
    %222 = vector.extract_strided_slice %219 {offsets = [0, 16], sizes = [8, 8], strides = [1, 1]} : vector<16x32xf32> to vector<8x8xf32>
    %223 = vector.extract_strided_slice %219 {offsets = [0, 24], sizes = [8, 8], strides = [1, 1]} : vector<16x32xf32> to vector<8x8xf32>
    %224 = vector.extract_strided_slice %219 {offsets = [8, 0], sizes = [8, 8], strides = [1, 1]} : vector<16x32xf32> to vector<8x8xf32>
    %225 = vector.extract_strided_slice %219 {offsets = [8, 8], sizes = [8, 8], strides = [1, 1]} : vector<16x32xf32> to vector<8x8xf32>
    %226 = vector.extract_strided_slice %219 {offsets = [8, 16], sizes = [8, 8], strides = [1, 1]} : vector<16x32xf32> to vector<8x8xf32>
    %227 = vector.extract_strided_slice %219 {offsets = [8, 24], sizes = [8, 8], strides = [1, 1]} : vector<16x32xf32> to vector<8x8xf32>
    %228 = vector.shape_cast %220 : vector<8x8xf32> to vector<1x8x8xf32>
    %229 = vector.shape_cast %221 : vector<8x8xf32> to vector<1x8x8xf32>
    %230 = vector.shape_cast %222 : vector<8x8xf32> to vector<1x8x8xf32>
    %231 = vector.shape_cast %223 : vector<8x8xf32> to vector<1x8x8xf32>
    %232 = vector.shape_cast %224 : vector<8x8xf32> to vector<1x8x8xf32>
    %233 = vector.shape_cast %225 : vector<8x8xf32> to vector<1x8x8xf32>
    %234 = vector.shape_cast %226 : vector<8x8xf32> to vector<1x8x8xf32>
    %235 = vector.shape_cast %227 : vector<8x8xf32> to vector<1x8x8xf32>
    %236 = tpu.concatenate %228, %229, %230, %231, %232, %233, %234, %235 in 0 : vector<1x8x8xf32>, vector<1x8x8xf32>, vector<1x8x8xf32>, vector<1x8x8xf32>, vector<1x8x8xf32>, vector<1x8x8xf32>, vector<1x8x8xf32>, vector<1x8x8xf32> -> vector<8x8x8xf32>
    %237 = arith.truncf %236 : vector<8x8x8xf32> to vector<8x8x8xbf16>
    %238 = vector.extract_strided_slice %208 {offsets = [0, 0], sizes = [8, 8], strides = [1, 1]} : vector<16x32xf32> to vector<8x8xf32>
    %239 = vector.extract_strided_slice %208 {offsets = [0, 8], sizes = [8, 8], strides = [1, 1]} : vector<16x32xf32> to vector<8x8xf32>
    %240 = vector.extract_strided_slice %208 {offsets = [0, 16], sizes = [8, 8], strides = [1, 1]} : vector<16x32xf32> to vector<8x8xf32>
    %241 = vector.extract_strided_slice %208 {offsets = [0, 24], sizes = [8, 8], strides = [1, 1]} : vector<16x32xf32> to vector<8x8xf32>
    %242 = vector.extract_strided_slice %208 {offsets = [8, 0], sizes = [8, 8], strides = [1, 1]} : vector<16x32xf32> to vector<8x8xf32>
    %243 = vector.extract_strided_slice %208 {offsets = [8, 8], sizes = [8, 8], strides = [1, 1]} : vector<16x32xf32> to vector<8x8xf32>
    %244 = vector.extract_strided_slice %208 {offsets = [8, 16], sizes = [8, 8], strides = [1, 1]} : vector<16x32xf32> to vector<8x8xf32>
    %245 = vector.extract_strided_slice %208 {offsets = [8, 24], sizes = [8, 8], strides = [1, 1]} : vector<16x32xf32> to vector<8x8xf32>
    %246 = vector.shape_cast %238 : vector<8x8xf32> to vector<1x8x8xf32>
    %247 = vector.shape_cast %239 : vector<8x8xf32> to vector<1x8x8xf32>
    %248 = vector.shape_cast %240 : vector<8x8xf32> to vector<1x8x8xf32>
    %249 = vector.shape_cast %241 : vector<8x8xf32> to vector<1x8x8xf32>
    %250 = vector.shape_cast %242 : vector<8x8xf32> to vector<1x8x8xf32>
    %251 = vector.shape_cast %243 : vector<8x8xf32> to vector<1x8x8xf32>
    %252 = vector.shape_cast %244 : vector<8x8xf32> to vector<1x8x8xf32>
    %253 = vector.shape_cast %245 : vector<8x8xf32> to vector<1x8x8xf32>
    %254 = tpu.concatenate %246, %247, %248, %249, %250, %251, %252, %253 in 0 : vector<1x8x8xf32>, vector<1x8x8xf32>, vector<1x8x8xf32>, vector<1x8x8xf32>, vector<1x8x8xf32>, vector<1x8x8xf32>, vector<1x8x8xf32>, vector<1x8x8xf32> -> vector<8x8x8xf32>
    %255 = arith.truncf %254 : vector<8x8x8xf32> to vector<8x8x8xbf16>
    %256 = vector.extract_strided_slice %217 {offsets = [0, 0], sizes = [8, 8], strides = [1, 1]} : vector<16x32xf32> to vector<8x8xf32>
    %257 = vector.extract_strided_slice %217 {offsets = [0, 8], sizes = [8, 8], strides = [1, 1]} : vector<16x32xf32> to vector<8x8xf32>
    %258 = vector.extract_strided_slice %217 {offsets = [0, 16], sizes = [8, 8], strides = [1, 1]} : vector<16x32xf32> to vector<8x8xf32>
    %259 = vector.extract_strided_slice %217 {offsets = [0, 24], sizes = [8, 8], strides = [1, 1]} : vector<16x32xf32> to vector<8x8xf32>
    %260 = vector.extract_strided_slice %217 {offsets = [8, 0], sizes = [8, 8], strides = [1, 1]} : vector<16x32xf32> to vector<8x8xf32>
    %261 = vector.extract_strided_slice %217 {offsets = [8, 8], sizes = [8, 8], strides = [1, 1]} : vector<16x32xf32> to vector<8x8xf32>
    %262 = vector.extract_strided_slice %217 {offsets = [8, 16], sizes = [8, 8], strides = [1, 1]} : vector<16x32xf32> to vector<8x8xf32>
    %263 = vector.extract_strided_slice %217 {offsets = [8, 24], sizes = [8, 8], strides = [1, 1]} : vector<16x32xf32> to vector<8x8xf32>
    %264 = vector.shape_cast %256 : vector<8x8xf32> to vector<1x8x8xf32>
    %265 = vector.shape_cast %257 : vector<8x8xf32> to vector<1x8x8xf32>
    %266 = vector.shape_cast %258 : vector<8x8xf32> to vector<1x8x8xf32>
    %267 = vector.shape_cast %259 : vector<8x8xf32> to vector<1x8x8xf32>
    %268 = vector.shape_cast %260 : vector<8x8xf32> to vector<1x8x8xf32>
    %269 = vector.shape_cast %261 : vector<8x8xf32> to vector<1x8x8xf32>
    %270 = vector.shape_cast %262 : vector<8x8xf32> to vector<1x8x8xf32>
    %271 = vector.shape_cast %263 : vector<8x8xf32> to vector<1x8x8xf32>
    %272 = tpu.concatenate %264, %265, %266, %267, %268, %269, %270, %271 in 0 : vector<1x8x8xf32>, vector<1x8x8xf32>, vector<1x8x8xf32>, vector<1x8x8xf32>, vector<1x8x8xf32>, vector<1x8x8xf32>, vector<1x8x8xf32>, vector<1x8x8xf32> -> vector<8x8x8xf32>
    %273 = arith.truncf %272 : vector<8x8x8xf32> to vector<8x8x8xbf16>
    "tpu.trace_start"() <{level = 10 : i32, message = "gqd,gkd->gqk"}> : () -> ()
    %cst_46 = arith.constant dense<0.000000e+00> : vector<8x8x8xf32>
    %274 = tpu.matmul %237, %255, %cst_46 {dimension_numbers = #tpu.dot_dimension_numbers<[2], [2], [1], [1], [0, 0, 0, 1, 1, 1], [0], [0]>} : vector<8x8x8xbf16>, vector<8x8x8xbf16>, vector<8x8x8xf32> -> vector<8x8x8xf32>
    "tpu.trace_stop"() : () -> ()
    %275 = vector.shape_cast %3 : vector<8x8xf32> to vector<1x8x8xf32>
    %276 = vector.broadcast %275 : vector<1x8x8xf32> to vector<8x8x8xf32>
    %277 = arith.addf %274, %276 : vector<8x8x8xf32>
    %cst_47 = arith.constant dense<0xFF800000> : vector<8x8xf32>
    %278 = vector.multi_reduction <maximumf>, %277, %cst_47 [2] : vector<8x8x8xf32> to vector<8x8xf32>
    %279 = vector.shape_cast %278 : vector<8x8xf32> to vector<8x8x1xf32>
    %280 = vector.broadcast %279 : vector<8x8x1xf32> to vector<8x8x8xf32>
    %281 = arith.subf %277, %280 : vector<8x8x8xf32>
    %282 = math.exp %281 : vector<8x8x8xf32>
    %cst_48 = arith.constant dense<0.000000e+00> : vector<8x8xf32>
    %283 = vector.multi_reduction <add>, %282, %cst_48 [2] : vector<8x8x8xf32> to vector<8x8xf32>
    %284 = vector.shape_cast %283 : vector<8x8xf32> to vector<8x8x1xf32>
    %285 = tpu.reciprocal %284 {approx = true} : vector<8x8x1xf32> -> vector<8x8x1xf32>
    %286 = vector.broadcast %285 : vector<8x8x1xf32> to vector<8x8x8xf32>
    %287 = arith.mulf %282, %286 : vector<8x8x8xf32>
    %288 = arith.truncf %287 : vector<8x8x8xf32> to vector<8x8x8xbf16>
    "tpu.trace_start"() <{level = 10 : i32, message = "gqk,gkd->gqd"}> : () -> ()
    %cst_49 = arith.constant dense<0.000000e+00> : vector<8x8x8xf32>
    %289 = tpu.matmul %288, %273, %cst_49 {dimension_numbers = #tpu.dot_dimension_numbers<[2], [1], [1], [2], [0, 0, 0, 1, 1, 2], [0], [0]>} : vector<8x8x8xbf16>, vector<8x8x8xbf16>, vector<8x8x8xf32> -> vector<8x8x8xf32>
    "tpu.trace_stop"() : () -> ()
    %290 = vector.extract_strided_slice %289 {offsets = [0, 0, 0], sizes = [1, 8, 8], strides = [1, 1, 1]} : vector<8x8x8xf32> to vector<1x8x8xf32>
    %291 = vector.shape_cast %290 : vector<1x8x8xf32> to vector<8x8xf32>
    %292 = vector.extract_strided_slice %289 {offsets = [1, 0, 0], sizes = [1, 8, 8], strides = [1, 1, 1]} : vector<8x8x8xf32> to vector<1x8x8xf32>
    %293 = vector.shape_cast %292 : vector<1x8x8xf32> to vector<8x8xf32>
    %294 = vector.extract_strided_slice %289 {offsets = [2, 0, 0], sizes = [1, 8, 8], strides = [1, 1, 1]} : vector<8x8x8xf32> to vector<1x8x8xf32>
    %295 = vector.shape_cast %294 : vector<1x8x8xf32> to vector<8x8xf32>
    %296 = vector.extract_strided_slice %289 {offsets = [3, 0, 0], sizes = [1, 8, 8], strides = [1, 1, 1]} : vector<8x8x8xf32> to vector<1x8x8xf32>
    %297 = vector.shape_cast %296 : vector<1x8x8xf32> to vector<8x8xf32>
    %298 = tpu.concatenate %291, %293, %295, %297 in 1 : vector<8x8xf32>, vector<8x8xf32>, vector<8x8xf32>, vector<8x8xf32> -> vector<8x32xf32>
    %299 = vector.extract_strided_slice %289 {offsets = [4, 0, 0], sizes = [1, 8, 8], strides = [1, 1, 1]} : vector<8x8x8xf32> to vector<1x8x8xf32>
    %300 = vector.shape_cast %299 : vector<1x8x8xf32> to vector<8x8xf32>
    %301 = vector.extract_strided_slice %289 {offsets = [5, 0, 0], sizes = [1, 8, 8], strides = [1, 1, 1]} : vector<8x8x8xf32> to vector<1x8x8xf32>
    %302 = vector.shape_cast %301 : vector<1x8x8xf32> to vector<8x8xf32>
    %303 = vector.extract_strided_slice %289 {offsets = [6, 0, 0], sizes = [1, 8, 8], strides = [1, 1, 1]} : vector<8x8x8xf32> to vector<1x8x8xf32>
    %304 = vector.shape_cast %303 : vector<1x8x8xf32> to vector<8x8xf32>
    %305 = vector.extract_strided_slice %289 {offsets = [7, 0, 0], sizes = [1, 8, 8], strides = [1, 1, 1]} : vector<8x8x8xf32> to vector<1x8x8xf32>
    %306 = vector.shape_cast %305 : vector<1x8x8xf32> to vector<8x8xf32>
    %307 = tpu.concatenate %300, %302, %304, %306 in 1 : vector<8x8xf32>, vector<8x8xf32>, vector<8x8xf32>, vector<8x8xf32> -> vector<8x32xf32>
    %308 = tpu.concatenate %298, %307 in 0 : vector<8x32xf32>, vector<8x32xf32> -> vector<16x32xf32>
    %309 = arith.truncf %308 : vector<16x32xf32> to vector<16x32xbf16>
    %310 = vector.extract_strided_slice %188 {offsets = [3, 0, 0], sizes = [1, 32, 32], strides = [1, 1, 1]} : vector<4x32x32xbf16> to vector<1x32x32xbf16>
    %311 = vector.shape_cast %310 : vector<1x32x32xbf16> to vector<32x32xbf16>
    %cst_50 = arith.constant dense<0.000000e+00> : vector<16x32xf32>
    %312 = tpu.matmul %309, %311, %cst_50 {dimension_numbers = #tpu.dot_dimension_numbers<[1], [0], [0], [1], [0, 0, 1, 1], [], []>} : vector<16x32xbf16>, vector<32x32xbf16>, vector<16x32xf32> -> vector<16x32xf32>
    %313 = vector.extract_strided_slice %190 {offsets = [3, 0], sizes = [1, 32], strides = [1, 1]} : vector<4x32xf32> to vector<1x32xf32>
    %314 = vector.shape_cast %313 : vector<1x32xf32> to vector<32xf32>
    %315 = vector.shape_cast %314 : vector<32xf32> to vector<1x32xf32>
    %316 = vector.broadcast %315 : vector<1x32xf32> to vector<16x32xf32>
    %317 = arith.addf %312, %316 : vector<16x32xf32>
    %318 = arith.addf %161, %317 : vector<16x32xf32>
    %c4 = arith.constant 4 : index
    %319 = memref.load %arg9[%c4] : memref<6xf32, #tpu.memory_space<smem>>
    %c5 = arith.constant 5 : index
    %320 = memref.load %arg9[%c5] : memref<6xf32, #tpu.memory_space<smem>>
    %cst_51 = arith.constant dense<0.000000e+00> : vector<16xf32>
    %321 = vector.multi_reduction <add>, %318, %cst_51 [1] : vector<16x32xf32> to vector<16xf32>
    %322 = vector.shape_cast %321 : vector<16xf32> to vector<16x1xf32>
    %cst_52 = arith.constant 3.200000e+01 : f32
    %323 = vector.broadcast %cst_52 : f32 to vector<16x1xf32>
    %324 = arith.divf %322, %323 : vector<16x1xf32>
    %325 = vector.broadcast %324 : vector<16x1xf32> to vector<16x32xf32>
    %326 = arith.subf %318, %325 : vector<16x32xf32>
    %327 = arith.mulf %326, %326 : vector<16x32xf32>
    %cst_53 = arith.constant dense<0.000000e+00> : vector<16xf32>
    %328 = vector.multi_reduction <add>, %327, %cst_53 [1] : vector<16x32xf32> to vector<16xf32>
    %329 = vector.shape_cast %328 : vector<16xf32> to vector<16x1xf32>
    %cst_54 = arith.constant 3.100000e+01 : f32
    %330 = vector.broadcast %cst_54 : f32 to vector<16x1xf32>
    %331 = arith.divf %329, %330 : vector<16x1xf32>
    %332 = math.sqrt %331 : vector<16x1xf32>
    %cst_55 = arith.constant 9.99999997E-7 : f32
    %333 = vector.broadcast %cst_55 : f32 to vector<16x1xf32>
    %334 = arith.addf %332, %333 : vector<16x1xf32>
    %335 = tpu.reciprocal %334 {approx = true} : vector<16x1xf32> -> vector<16x1xf32>
    %336 = vector.broadcast %324 : vector<16x1xf32> to vector<16x32xf32>
    %337 = arith.subf %318, %336 : vector<16x32xf32>
    %338 = vector.broadcast %319 : f32 to vector<16x32xf32>
    %339 = arith.mulf %338, %337 : vector<16x32xf32>
    %340 = vector.broadcast %335 : vector<16x1xf32> to vector<16x32xf32>
    %341 = arith.mulf %339, %340 : vector<16x32xf32>
    %342 = vector.broadcast %320 : f32 to vector<16x32xf32>
    %343 = arith.addf %341, %342 : vector<16x32xf32>
    %344 = arith.truncf %343 : vector<16x32xf32> to vector<16x32xbf16>
    %c0_56 = arith.constant 0 : index
    %c0_57 = arith.constant 0 : index
    %345 = vector.load %arg6[%c0_56, %c0_57] : memref<32x64xbf16, #tpu.memory_space<vmem>>, vector<32x64xbf16>
    %cst_58 = arith.constant dense<0.000000e+00> : vector<16x64xf32>
    %346 = tpu.matmul %344, %345, %cst_58 {dimension_numbers = #tpu.dot_dimension_numbers<[1], [0], [0], [1], [0, 0, 1, 1], [], []>} : vector<16x32xbf16>, vector<32x64xbf16>, vector<16x64xf32> -> vector<16x64xf32>
    %347 = vector.extract_strided_slice %4 {offsets = [0, 0], sizes = [1, 64], strides = [1, 1]} : vector<2x64xf32> to vector<1x64xf32>
    %348 = vector.shape_cast %347 : vector<1x64xf32> to vector<64xf32>
    %349 = vector.shape_cast %348 : vector<64xf32> to vector<1x64xf32>
    %350 = vector.broadcast %349 : vector<1x64xf32> to vector<16x64xf32>
    %351 = arith.addf %346, %350 : vector<16x64xf32>
    %cst_59 = arith.constant 0.000000e+00 : f32
    %352 = vector.broadcast %cst_59 : f32 to vector<16x64xf32>
    %353 = arith.maximumf %351, %352 : vector<16x64xf32>
    %354 = arith.truncf %353 : vector<16x64xf32> to vector<16x64xbf16>
    %c0_60 = arith.constant 0 : index
    %c0_61 = arith.constant 0 : index
    %355 = vector.load %arg7[%c0_60, %c0_61] : memref<64x32xbf16, #tpu.memory_space<vmem>>, vector<64x32xbf16>
    %cst_62 = arith.constant dense<0.000000e+00> : vector<16x32xf32>
    %356 = tpu.matmul %354, %355, %cst_62 {dimension_numbers = #tpu.dot_dimension_numbers<[1], [0], [0], [1], [0, 0, 1, 1], [], []>} : vector<16x64xbf16>, vector<64x32xbf16>, vector<16x32xf32> -> vector<16x32xf32>
    %357 = vector.extract_strided_slice %4 {offsets = [1, 0], sizes = [1, 32], strides = [1, 1]} : vector<2x64xf32> to vector<1x32xf32>
    %358 = vector.shape_cast %357 : vector<1x32xf32> to vector<32xf32>
    %359 = vector.shape_cast %358 : vector<32xf32> to vector<1x32xf32>
    %360 = vector.broadcast %359 : vector<1x32xf32> to vector<16x32xf32>
    %361 = arith.addf %356, %360 : vector<16x32xf32>
    %362 = arith.addf %318, %361 : vector<16x32xf32>
    %c0_63 = arith.constant 0 : index
    %c0_64 = arith.constant 0 : index
    %363 = vector.load %arg10[%c0_63, %c0_64] : memref<16x32xf32, #tpu.memory_space<vmem>>, vector<16x32xf32>
    tpu.vector_store %arg10[%c0_63, %c0_64], %362 {strides = array<i32>} : memref<16x32xf32, #tpu.memory_space<vmem>>, vector<16x32xf32>,
    return
  }
}

</mosaic_0001>

<llo_original>
// kernel: tpu_custom_call.1
$region0: #{tpu_custom_call.1}
  #allocation0 [shape = 'u32[]', space=smem, size = 0x4, offset = 0x4, fixed_abs, tag = 'smem constant byte address 0x4 - core index']
  #allocation1 [shape = 'u32[144,128]{1,0:T(1,128)}', space=vmem, size = 0x12000, scoped, tag = 'internal scratch']
  %s0 = inlined_call_operand.vmem [shape: f32[16,32], index: 0, kind: input, shape index: {}]
  %s1 = inlined_call_operand.vmem [shape: f32[16,32], index: 1, kind: input, shape index: {}]
  %s2 = inlined_call_operand.hbm [shape: f32[8,8], index: 2, kind: input, shape index: {}]
  %s3 = inlined_call_operand.vmem [shape: f32[8,8], index: 3, kind: input, shape index: {}]
  %s4 = inlined_call_operand.hbm [shape: bf16[2,4,32,32], index: 4, kind: input, shape index: {}]
  %s5 = inlined_call_operand.hbm [shape: f32[2,4,32], index: 5, kind: input, shape index: {}]
  %s6 = inlined_call_operand.vmem [shape: bf16[32,64], index: 6, kind: input, shape index: {}]
  %s7 = inlined_call_operand.vmem [shape: bf16[64,32], index: 7, kind: input, shape index: {}]
  %s8 = inlined_call_operand.vmem [shape: f32[2,64], index: 8, kind: input, shape index: {}]
  %s9 = inlined_call_operand.vmem [shape: f32[6], index: 9, kind: input, shape index: {}]
  %s10 = inlined_call_operand.hbm [shape: f32[16,32], index: 10, kind: output, shape index: {}]
  %s11 = sld [smem:[#allocation0]]
  $region66: #{tpu_custom_call.1} parent=0
    _
  %s13 = ssub.s32 1, %s11
  %s14 = scalar_select 0, %s13, %s11
  $region1: #{tpu_custom_call.1} parent=0
    #allocation2 [shape = 'u8[4096]{0}', space=vmem, size = 0x1000, scoped, tag = 'input window, operand 2, single buffered']
    #allocation3 [shape = 's32[1]{0}', space=sflag, size = 0x4, scoped, tag = 'scoped memory for tpu_custom_call.1']
    #allocation4 [shape = 's32[1]{0}', space=sflag, size = 0x4, scoped, tag = 'scoped memory for tpu_custom_call.1']
    #allocation5 [shape = 's32[1]{0}', space=sflag, size = 0x4, scoped, tag = 'scoped memory for tpu_custom_call.1']
    #allocation6 [shape = 'u8[65536]{0}', space=vmem, size = 0x10000, scoped, tag = 'input window, operand 4, single buffered']
    #allocation7 [shape = 's32[1]{0}', space=sflag, size = 0x4, scoped, tag = 'scoped memory for tpu_custom_call.1']
    #allocation8 [shape = 'u8[4096]{0}', space=vmem, size = 0x1000, scoped, tag = 'input window, operand 5, single buffered']
    #allocation9 [shape = 'u8[512]{0}', space=smem, size = 0x200, scoped, tag = 'input window, operand 9, single buffered']
    #allocation10 [shape = 'u8[8192]{0}', space=vmem, size = 0x2000, scoped, tag = 'output window, operand 0, single buffered']
    %15 = vsyncpa [#allocation3], 0
    %16 = vsyncpa [#allocation7], 0
    %17 = vsyncpa [#allocation5], 0
    %18 = vsyncpa [#allocation4], 0
    // Predicated region
    $region2: #{tpu_custom_call.1} parent=1 // pred_check
      _
    $region3: #{tpu_custom_call.1} parent=1 // pred_check_branch
      %20 = sbr.rel (0) target = $region5
    $region4: #{tpu_custom_call.1} parent=1 // pred_region
      _
    $region5: #{tpu_custom_call.1} parent=1 // pred_fallthru
      _
    // Predicated region
    $region6: #{tpu_custom_call.1} parent=1 // pred_check
      _
    $region7: #{tpu_custom_call.1} parent=1 // pred_check_branch
      %22 = sbr.rel (0) target = $region9
    $region8: #{tpu_custom_call.1} parent=1 // pred_region
      _
    $region9: #{tpu_custom_call.1} parent=1 // pred_fallthru
      _
    // Predicated region
    $region10: #{tpu_custom_call.1} parent=1 // pred_check
      _
    $region11: #{tpu_custom_call.1} parent=1 // pred_check_branch
      %24 = sbr.rel (0) target = $region13
    $region12: #{tpu_custom_call.1} parent=1 // pred_region
      %s26 = ssub.s32 128, 128
      %27 = vsyncadd [#allocation3], %s26
      %s29 = sshll.u32 [#allocation2], 4
      %s30 = int_to_ptr.vmem [resolvable:$true] %s29
      %32 = dma.hbm_to_vmem [thread:$0]  %s2, 128, %s30, [#allocation3]
    $region13: #{tpu_custom_call.1} parent=1 // pred_fallthru
      _
    // Predicated region
    $region14: #{tpu_custom_call.1} parent=1 // pred_check
      _
    $region15: #{tpu_custom_call.1} parent=1 // pred_check_branch
      %34 = sbr.rel (0) target = $region17
    $region16: #{tpu_custom_call.1} parent=1 // pred_region
      _
    $region17: #{tpu_custom_call.1} parent=1 // pred_fallthru
      _
    // Predicated region
    $region18: #{tpu_custom_call.1} parent=1 // pred_check
      _
    $region19: #{tpu_custom_call.1} parent=1 // pred_check_branch
      %36 = sbr.rel (0) target = $region21
    $region20: #{tpu_custom_call.1} parent=1 // pred_region
      %s38 = ssub.s32 2048, 2048
      %39 = vsyncadd [#allocation7], %s38
      %s40 = sshll.u32 [#allocation6], 4
      %s41 = int_to_ptr.vmem [resolvable:$true] %s40
      %46 = dma.hbm_to_vmem [thread:$0]  %s4, 2048, %s41, [#allocation7], 64, 64, 4
    $region21: #{tpu_custom_call.1} parent=1 // pred_fallthru
      _
    // Predicated region
    $region22: #{tpu_custom_call.1} parent=1 // pred_check
      _
    $region23: #{tpu_custom_call.1} parent=1 // pred_check_branch
      %48 = sbr.rel (0) target = $region25
    $region24: #{tpu_custom_call.1} parent=1 // pred_region
      %s50 = ssub.s32 128, 128
      %51 = vsyncadd [#allocation7], %s50
      %s52 = sshll.u32 [#allocation8], 4
      %s53 = int_to_ptr.vmem [resolvable:$true] %s52
      %58 = dma.hbm_to_vmem [thread:$0]  %s5, 128, %s53, [#allocation7], 64, 64, 4
    $region25: #{tpu_custom_call.1} parent=1 // pred_fallthru
      _
    // Predicated region
    $region26: #{tpu_custom_call.1} parent=1 // pred_check
      _
    $region27: #{tpu_custom_call.1} parent=1 // pred_check_branch
      %60 = sbr.rel (0) target = $region29
    $region28: #{tpu_custom_call.1} parent=1 // pred_region
      _
    $region29: #{tpu_custom_call.1} parent=1 // pred_fallthru
      _
    // Predicated region
    $region30: #{tpu_custom_call.1} parent=1 // pred_check
      _
    $region31: #{tpu_custom_call.1} parent=1 // pred_check_branch
      %62 = sbr.rel (0) target = $region33
    $region32: #{tpu_custom_call.1} parent=1 // pred_region
      _
    $region33: #{tpu_custom_call.1} parent=1 // pred_fallthru
      _
    // Predicated region
    $region34: #{tpu_custom_call.1} parent=1 // pred_check
      _
    $region35: #{tpu_custom_call.1} parent=1 // pred_check_branch
      %64 = sbr.rel (0) target = $region37
    $region36: #{tpu_custom_call.1} parent=1 // pred_region
      _
    $region37: #{tpu_custom_call.1} parent=1 // pred_fallthru
      _
    // Predicated region
    $region38: #{tpu_custom_call.1} parent=1 // pred_check
      _
    $region39: #{tpu_custom_call.1} parent=1 // pred_check_branch
      %66 = sbr.rel (0) target = $region41
    $region40: #{tpu_custom_call.1} parent=1 // pred_region
      %s68 = ssub.s32 16, 16
      %69 = vsyncadd [#allocation5], %s68
      %s71 = sshll.u32 %s9, 4
      %s72 = int_to_ptr.vmem [resolvable:$true] %s71
      %74 = dma.vmem_to_smem %s72, 16, [#allocation9], [#allocation5]
    $region41: #{tpu_custom_call.1} parent=1 // pred_fallthru
      _
    // Predicated region
    $region42: #{tpu_custom_call.1} parent=1 // pred_check
      _
    $region43: #{tpu_custom_call.1} parent=1 // pred_check_branch
      %76 = sbr.rel (0) target = $region45
    $region44: #{tpu_custom_call.1} parent=1 // pred_region
      %77 = dma.done [#allocation3], 128
    $region45: #{tpu_custom_call.1} parent=1 // pred_fallthru
      _
    // Predicated region
    $region46: #{tpu_custom_call.1} parent=1 // pred_check
      _
    $region47: #{tpu_custom_call.1} parent=1 // pred_check_branch
      %79 = sbr.rel (0) target = $region49
    $region48: #{tpu_custom_call.1} parent=1 // pred_region
      %80 = dma.done [#allocation7], 2048
    $region49: #{tpu_custom_call.1} parent=1 // pred_fallthru
      _
    // Predicated region
    $region50: #{tpu_custom_call.1} parent=1 // pred_check
      _
    $region51: #{tpu_custom_call.1} parent=1 // pred_check_branch
      %82 = sbr.rel (0) target = $region53
    $region52: #{tpu_custom_call.1} parent=1 // pred_region
      %83 = dma.done [#allocation7], 128
    $region53: #{tpu_custom_call.1} parent=1 // pred_fallthru
      _
    // Predicated region
    $region54: #{tpu_custom_call.1} parent=1 // pred_check
      _
    $region55: #{tpu_custom_call.1} parent=1 // pred_check_branch
      %85 = sbr.rel (0) target = $region57
    $region56: #{tpu_custom_call.1} parent=1 // pred_region
      %86 = dma.done [#allocation5], 16
    $region57: #{tpu_custom_call.1} parent=1 // pred_fallthru
      _
    %87 = sfence
    %v89 = vld [vmem:[%s0] sm:$0xff]
    %v90 = vld [vmem:[%s0 + $0x8] sm:$0xff]
    %v91 = vld [vmem:[%s1] sm:$0xff]
    %v92 = vld [vmem:[%s1 + $0x8] sm:$0xff]
    %v93 = vld [vmem:[#allocation2] sm:$0xff]
    %v94 = vld [vmem:[%s3] sm:$0xff]
    %v95 = vld [vmem:[%s8] sm:$0x3]
    %s96 = sld [smem:[#allocation9]]
    %s97 = sld [smem:[#allocation9 + $0x1]]
    %vm98 = vcmask 261120
    %v99 = vsel %vm98, %v89, 0.0
    %100 = vadd.xlane.f32.xlu0 %v99
    %v101 = vpop.xlane.xlu0 %100
    %v102 = vsel %vm98, %v90, 0.0
    %103 = vadd.xlane.f32.xlu0 %v102
    %v104 = vpop.xlane.xlu0 %103
    %v105 = vrcp.pop 32.0
    %v106 = vmul.f32 %v101, %v105
    %v107 = vmul.f32 %v104, %v105
    %v108 = vsub.f32 %v89, %v106
    %v109 = vsub.f32 %v90, %v107
    %v110 = vmul.f32 %v108, %v108
    %v111 = vmul.f32 %v109, %v109
    %v112 = vsel %vm98, %v110, 0.0
    %113 = vadd.xlane.f32.xlu0 %v112
    %v114 = vpop.xlane.xlu0 %113
    %v115 = vsel %vm98, %v111, 0.0
    %116 = vadd.xlane.f32.xlu0 %v115
    %v117 = vpop.xlane.xlu0 %116
    %v118 = vrcp.pop 31.0
    %v119 = vmul.f32 %v114, %v118
    %v120 = vmul.f32 %v117, %v118
    %v121 = vrsqrt.pop %v119
    %v122 = vmul.f32 %v119, %v121
    %vm123 = vcmp.eq.f32.partialorder %v119, inf
    %v124 = vsel %vm123, %v119, %v122
    %vm125 = vcmp.eq.f32.partialorder %v119, 0.0
    %v126 = vand.u32 %v119, 2147483648
    %v127 = vsel %vm125, %v126, %v124
    %v128 = vrsqrt.pop %v120
    %v129 = vmul.f32 %v120, %v128
    %vm130 = vcmp.eq.f32.partialorder %v120, inf
    %v131 = vsel %vm130, %v120, %v129
    %vm132 = vcmp.eq.f32.partialorder %v120, 0.0
    %v133 = vand.u32 %v120, 2147483648
    %v134 = vsel %vm132, %v133, %v131
    %v135 = vadd.f32 %v127, 1e-06
    %v136 = vadd.f32 %v134, 1e-06
    %v137 = vrcp.pop %v135
    %v138 = vrcp.pop %v136
    %v139 = vstv %s96
    %v140 = vmul.f32 %v139, %v108
    %v141 = vmul.f32 %v139, %v109
    %v142 = vmul.f32 %v140, %v137
    %v143 = vmul.f32 %v141, %v138
    %v144 = vstv %s97
    %v145 = vadd.f32 %v142, %v144
    %v146 = vadd.f32 %v143, %v144
    %v147 = vld [vmem:[#allocation6] sm:$0xf]
    %v148 = vld [vmem:[#allocation6 + $0x4] sm:$0xf]
    %v149 = vld [vmem:[#allocation6 + $0x8] sm:$0xf]
    %v150 = vld [vmem:[#allocation6 + $0xc] sm:$0xf]
    %v151 = vld [vmem:[#allocation6 + $0x10] sm:$0xf]
    %v152 = vld [vmem:[#allocation6 + $0x14] sm:$0xf]
    %v153 = vld [vmem:[#allocation6 + $0x18] sm:$0xf]
    %v154 = vld [vmem:[#allocation6 + $0x1c] sm:$0xf]
    %v155 = vld [vmem:[#allocation6 + $0x20] sm:$0xf]
    %v156 = vld [vmem:[#allocation6 + $0x24] sm:$0xf]
    %v157 = vld [vmem:[#allocation6 + $0x28] sm:$0xf]
    %v158 = vld [vmem:[#allocation6 + $0x2c] sm:$0xf]
    %v159 = vld [vmem:[#allocation6 + $0x30] sm:$0xf]
    %v160 = vld [vmem:[#allocation6 + $0x34] sm:$0xf]
    %v161 = vld [vmem:[#allocation6 + $0x38] sm:$0xf]
    %v162 = vld [vmem:[#allocation6 + $0x3c] sm:$0xf]
    %v163 = vld [vmem:[#allocation8] sm:$0xf]
    %v164 = vpack.c.bf16 %v146, %v145
    %v165 = vlaneseq
    %v166 = vshrl.u32 %v165, 7
    %v167 = vsub.s32 0, %v166
    %v168 = vrot.slane %v163, %v167
    %v173 = vunpack.c.l.b16 %v147
    %v174 = vunpack.c.l.b16 %v148
    %v175 = vunpack.c.l.b16 %v149
    %v176 = vunpack.c.l.b16 %v150
    %v177 = vpack.c.b16 %v174, %v173
    %v178 = vpack.c.b16 %v176, %v175
    %v182 = vsel %vm98, %v164, 0
    %184 = vmatprep.subr.bf16.mxu0 0
    %185 = vmatpush1.bf16.msra.mxu0 %v177
    %186 = vmatprep.subr.bf16.mxu0 0
    %187 = vmatpush1.bf16.msra.mxu0 %v178
    %188 = vmatprep.subr.bf16.mxu0 0
    %189 = vmatpush1.bf16.msra.mxu0 0
    %190 = vmatprep.subr.bf16.mxu0 0
    %191 = vmatpush1.bf16.msra.mxu0 0
    %192 = vmatprep.subr.bf16.mxu0 0
    %193 = vmatpush1.bf16.msra.mxu0 0
    %194 = vmatprep.subr.bf16.mxu0 0
    %195 = vmatpush1.bf16.msra.mxu0 0
    %196 = vmatprep.subr.bf16.mxu0 0
    %197 = vmatpush1.bf16.msra.mxu0 0
    %198 = vmatprep.subr.bf16.mxu0 0
    %199 = vmatpush1.bf16.msra.mxu0 0
    %200 = vmatprep.subr.bf16.mxu0 0
    %201 = vmatpush1.bf16.msra.mxu0 0
    %202 = vmatprep.subr.bf16.mxu0 0
    %203 = vmatpush1.bf16.msra.mxu0 0
    %204 = vmatprep.subr.bf16.mxu0 0
    %205 = vmatpush1.bf16.msra.mxu0 0
    %206 = vmatprep.subr.bf16.mxu0 0
    %207 = vmatpush1.bf16.msra.mxu0 0
    %208 = vmatprep.subr.bf16.mxu0 0
    %209 = vmatpush1.bf16.msra.mxu0 0
    %210 = vmatprep.subr.bf16.mxu0 0
    %211 = vmatpush1.bf16.msra.mxu0 0
    %212 = vmatprep.subr.bf16.mxu0 0
    %213 = vmatpush1.bf16.msra.mxu0 0
    %214 = vmatprep.subr.bf16.mxu0 0
    %215 = vmatpush1.bf16.msra.mxu0 0
    %216 = vmatprep.mubr.bf16.mxu0 0
    %217 = vmatmul.mubr.bf16.gmra.mrb[0].mxu0 %v182
    %v218 = vpop.f32.mrb[0].mxu0
    %v219 = vadd.f32 %v168, %v218
    %v220 = vpop.f32.mrb[0].mxu0
    %v221 = vpop.f32.mrb[0].mxu0
    %v222 = vadd.f32 %v168, %v221
    %v223 = vpop.f32.mrb[0].mxu0
    %224 = vdwg.mxu0
    %v225 = vlaneseq
    %v226 = vshrl.u32 %v225, 7
    %v227 = vsub.s32 1, %v226
    %v228 = vrot.slane %v163, %v227
    %v233 = vunpack.c.l.b16 %v151
    %v234 = vunpack.c.l.b16 %v152
    %v235 = vunpack.c.l.b16 %v153
    %v236 = vunpack.c.l.b16 %v154
    %v237 = vpack.c.b16 %v234, %v233
    %v238 = vpack.c.b16 %v236, %v235
    %241 = vmatprep.subr.bf16.mxu0 0
    %242 = vmatpush1.bf16.msra.mxu0 %v237
    %243 = vmatprep.subr.bf16.mxu0 0
    %244 = vmatpush1.bf16.msra.mxu0 %v238
    %245 = vmatprep.subr.bf16.mxu0 0
    %246 = vmatpush1.bf16.msra.mxu0 0
    %247 = vmatprep.subr.bf16.mxu0 0
    %248 = vmatpush1.bf16.msra.mxu0 0
    %249 = vmatprep.subr.bf16.mxu0 0
    %250 = vmatpush1.bf16.msra.mxu0 0
    %251 = vmatprep.subr.bf16.mxu0 0
    %252 = vmatpush1.bf16.msra.mxu0 0
    %253 = vmatprep.subr.bf16.mxu0 0
    %254 = vmatpush1.bf16.msra.mxu0 0
    %255 = vmatprep.subr.bf16.mxu0 0
    %256 = vmatpush1.bf16.msra.mxu0 0
    %257 = vmatprep.subr.bf16.mxu0 0
    %258 = vmatpush1.bf16.msra.mxu0 0
    %259 = vmatprep.subr.bf16.mxu0 0
    %260 = vmatpush1.bf16.msra.mxu0 0
    %261 = vmatprep.subr.bf16.mxu0 0
    %262 = vmatpush1.bf16.msra.mxu0 0
    %263 = vmatprep.subr.bf16.mxu0 0
    %264 = vmatpush1.bf16.msra.mxu0 0
    %265 = vmatprep.subr.bf16.mxu0 0
    %266 = vmatpush1.bf16.msra.mxu0 0
    %267 = vmatprep.subr.bf16.mxu0 0
    %268 = vmatpush1.bf16.msra.mxu0 0
    %269 = vmatprep.subr.bf16.mxu0 0
    %270 = vmatpush1.bf16.msra.mxu0 0
    %271 = vmatprep.subr.bf16.mxu0 0
    %272 = vmatpush1.bf16.msra.mxu0 0
    %273 = vmatprep.mubr.bf16.mxu0 0
    %274 = vmatmul.mubr.bf16.gmra.mrb[0].mxu0 %v182
    %v275 = vpop.f32.mrb[0].mxu0
    %v276 = vadd.f32 %v228, %v275
    %v277 = vpop.f32.mrb[0].mxu0
    %v278 = vpop.f32.mrb[0].mxu0
    %v279 = vadd.f32 %v228, %v278
    %v280 = vpop.f32.mrb[0].mxu0
    %281 = vdwg.mxu0
    %v282 = vlaneseq
    %v283 = vshrl.u32 %v282, 7
    %v284 = vsub.s32 2, %v283
    %v285 = vrot.slane %v163, %v284
    %v290 = vunpack.c.l.b16 %v155
    %v291 = vunpack.c.l.b16 %v156
    %v292 = vunpack.c.l.b16 %v157
    %v293 = vunpack.c.l.b16 %v158
    %v294 = vpack.c.b16 %v291, %v290
    %v295 = vpack.c.b16 %v293, %v292
    %298 = vmatprep.subr.bf16.mxu0 0
    %299 = vmatpush1.bf16.msra.mxu0 %v294
    %300 = vmatprep.subr.bf16.mxu0 0
    %301 = vmatpush1.bf16.msra.mxu0 %v295
    %302 = vmatprep.subr.bf16.mxu0 0
    %303 = vmatpush1.bf16.msra.mxu0 0
    %304 = vmatprep.subr.bf16.mxu0 0
    %305 = vmatpush1.bf16.msra.mxu0 0
    %306 = vmatprep.subr.bf16.mxu0 0
    %307 = vmatpush1.bf16.msra.mxu0 0
    %308 = vmatprep.subr.bf16.mxu0 0
    %309 = vmatpush1.bf16.msra.mxu0 0
    %310 = vmatprep.subr.bf16.mxu0 0
    %311 = vmatpush1.bf16.msra.mxu0 0
    %312 = vmatprep.subr.bf16.mxu0 0
    %313 = vmatpush1.bf16.msra.mxu0 0
    %314 = vmatprep.subr.bf16.mxu0 0
    %315 = vmatpush1.bf16.msra.mxu0 0
    %316 = vmatprep.subr.bf16.mxu0 0
    %317 = vmatpush1.bf16.msra.mxu0 0
    %318 = vmatprep.subr.bf16.mxu0 0
    %319 = vmatpush1.bf16.msra.mxu0 0
    %320 = vmatprep.subr.bf16.mxu0 0
    %321 = vmatpush1.bf16.msra.mxu0 0
    %322 = vmatprep.subr.bf16.mxu0 0
    %323 = vmatpush1.bf16.msra.mxu0 0
    %324 = vmatprep.subr.bf16.mxu0 0
    %325 = vmatpush1.bf16.msra.mxu0 0
    %326 = vmatprep.subr.bf16.mxu0 0
    %327 = vmatpush1.bf16.msra.mxu0 0
    %328 = vmatprep.subr.bf16.mxu0 0
    %329 = vmatpush1.bf16.msra.mxu0 0
    %330 = vmatprep.mubr.bf16.mxu0 0
    %331 = vmatmul.mubr.bf16.gmra.mrb[0].mxu0 %v182
    %v332 = vpop.f32.mrb[0].mxu0
    %v333 = vadd.f32 %v285, %v332
    %v334 = vpop.f32.mrb[0].mxu0
    %v335 = vpop.f32.mrb[0].mxu0
    %v336 = vadd.f32 %v285, %v335
    %v337 = vpop.f32.mrb[0].mxu0
    %338 = vdwg.mxu0
    %v339 = vmul.f32 %v219, 0.35355338
    %v340 = vmul.f32 %v222, 0.35355338
    %342 = vrot.lane.b32.xlu0 %v339, 120
    %v343 = vpop.permute.xlu0 %342
    %345 = vrot.lane.b32.xlu0 %v339, 112
    %v346 = vpop.permute.xlu0 %345
    %348 = vrot.lane.b32.xlu0 %v339, 104
    %v349 = vpop.permute.xlu0 %348
    %352 = vrot.lane.b32.xlu0 %v340, 120
    %v353 = vpop.permute.xlu0 %352
    %355 = vrot.lane.b32.xlu0 %v340, 112
    %v356 = vpop.permute.xlu0 %355
    %358 = vrot.lane.b32.xlu0 %v340, 104
    %v359 = vpop.permute.xlu0 %358
    %v361 = vpack.c.bf16 %v339, %v339
    %v362 = vpack.c.bf16 %v343, %v343
    %v363 = vpack.c.bf16 %v346, %v346
    %v364 = vpack.c.bf16 %v349, %v349
    %v365 = vpack.c.bf16 %v340, %v340
    %v366 = vpack.c.bf16 %v353, %v353
    %v367 = vpack.c.bf16 %v356, %v356
    %v368 = vpack.c.bf16 %v359, %v359
    %370 = vrot.lane.b32.xlu0 %v276, 120
    %v371 = vpop.permute.xlu0 %370
    %373 = vrot.lane.b32.xlu0 %v276, 112
    %v374 = vpop.permute.xlu0 %373
    %376 = vrot.lane.b32.xlu0 %v276, 104
    %v377 = vpop.permute.xlu0 %376
    %380 = vrot.lane.b32.xlu0 %v279, 120
    %v381 = vpop.permute.xlu0 %380
    %383 = vrot.lane.b32.xlu0 %v279, 112
    %v384 = vpop.permute.xlu0 %383
    %386 = vrot.lane.b32.xlu0 %v279, 104
    %v387 = vpop.permute.xlu0 %386
    %v389 = vpack.c.bf16 %v276, %v276
    %v390 = vpack.c.bf16 %v371, %v371
    %v391 = vpack.c.bf16 %v374, %v374
    %v392 = vpack.c.bf16 %v377, %v377
    %v393 = vpack.c.bf16 %v279, %v279
    %v394 = vpack.c.bf16 %v381, %v381
    %v395 = vpack.c.bf16 %v384, %v384
    %v396 = vpack.c.bf16 %v387, %v387
    %398 = vrot.lane.b32.xlu0 %v333, 120
    %v399 = vpop.permute.xlu0 %398
    %401 = vrot.lane.b32.xlu0 %v333, 112
    %v402 = vpop.permute.xlu0 %401
    %404 = vrot.lane.b32.xlu0 %v333, 104
    %v405 = vpop.permute.xlu0 %404
    %408 = vrot.lane.b32.xlu0 %v336, 120
    %v409 = vpop.permute.xlu0 %408
    %411 = vrot.lane.b32.xlu0 %v336, 112
    %v412 = vpop.permute.xlu0 %411
    %414 = vrot.lane.b32.xlu0 %v336, 104
    %v415 = vpop.permute.xlu0 %414
    %v417 = vpack.c.bf16 %v333, %v333
    %v418 = vpack.c.bf16 %v399, %v399
    %v419 = vpack.c.bf16 %v402, %v402
    %v420 = vpack.c.bf16 %v405, %v405
    %v421 = vpack.c.bf16 %v336, %v336
    %v422 = vpack.c.bf16 %v409, %v409
    %v423 = vpack.c.bf16 %v412, %v412
    %v424 = vpack.c.bf16 %v415, %v415
    %vm425 = vcmask 64512
    %v427 = vsel %vm425, %v361, 0
    %v430 = vsel %vm425, %v389, 0
    %432 = vmatprep.subr.bf16.mxu0 0
    %433 = vmatpush1.bf16.xpose.msra.mxu0 %v430
    %434 = vmatprep.subr.bf16.mxu0 0
    %435 = vmatpush1.bf16.xpose.msra.mxu0 0
    %436 = vmatprep.subr.bf16.mxu0 0
    %437 = vmatpush1.bf16.xpose.msra.mxu0 0
    %438 = vmatprep.subr.bf16.mxu0 0
    %439 = vmatpush1.bf16.xpose.msra.mxu0 0
    %440 = vmatprep.subr.bf16.mxu0 0
    %441 = vmatpush1.bf16.xpose.msra.mxu0 0
    %442 = vmatprep.subr.bf16.mxu0 0
    %443 = vmatpush1.bf16.xpose.msra.mxu0 0
    %444 = vmatprep.subr.bf16.mxu0 0
    %445 = vmatpush1.bf16.xpose.msra.mxu0 0
    %446 = vmatprep.subr.bf16.mxu0 0
    %447 = vmatpush1.bf16.xpose.msra.mxu0 0
    %448 = vmatprep.subr.bf16.mxu0 0
    %449 = vmatpush1.bf16.xpose.msra.mxu0 0
    %450 = vmatprep.subr.bf16.mxu0 0
    %451 = vmatpush1.bf16.xpose.msra.mxu0 0
    %452 = vmatprep.subr.bf16.mxu0 0
    %453 = vmatpush1.bf16.xpose.msra.mxu0 0
    %454 = vmatprep.subr.bf16.mxu0 0
    %455 = vmatpush1.bf16.xpose.msra.mxu0 0
    %456 = vmatprep.subr.bf16.mxu0 0
    %457 = vmatpush1.bf16.xpose.msra.mxu0 0
    %458 = vmatprep.subr.bf16.mxu0 0
    %459 = vmatpush1.bf16.xpose.msra.mxu0 0
    %460 = vmatprep.subr.bf16.mxu0 0
    %461 = vmatpush1.bf16.xpose.msra.mxu0 0
    %462 = vmatprep.subr.bf16.mxu0 0
    %463 = vmatpush1.bf16.xpose.msra.mxu0 0
    %464 = vmatprep.mubr.bf16.mxu0 0
    %465 = vmatmul.mubr.bf16.gmra.mrb[0].mxu0 %v427
    %v466 = vpop.f32.mrb[0].mxu0
    %v467 = vadd.f32 %v93, %v466
    %v468 = vpop.f32.mrb[0].mxu0
    %v469 = vpop.f32.mrb[0].mxu0
    %v470 = vpop.f32.mrb[0].mxu0
    %471 = vdwg.mxu0
    %v473 = vsel %vm425, %v362, 0
    %v476 = vsel %vm425, %v390, 0
    %478 = vmatprep.subr.bf16.mxu0 0
    %479 = vmatpush1.bf16.xpose.msra.mxu0 %v476
    %480 = vmatprep.subr.bf16.mxu0 0
    %481 = vmatpush1.bf16.xpose.msra.mxu0 0
    %482 = vmatprep.subr.bf16.mxu0 0
    %483 = vmatpush1.bf16.xpose.msra.mxu0 0
    %484 = vmatprep.subr.bf16.mxu0 0
    %485 = vmatpush1.bf16.xpose.msra.mxu0 0
    %486 = vmatprep.subr.bf16.mxu0 0
    %487 = vmatpush1.bf16.xpose.msra.mxu0 0
    %488 = vmatprep.subr.bf16.mxu0 0
    %489 = vmatpush1.bf16.xpose.msra.mxu0 0
    %490 = vmatprep.subr.bf16.mxu0 0
    %491 = vmatpush1.bf16.xpose.msra.mxu0 0
    %492 = vmatprep.subr.bf16.mxu0 0
    %493 = vmatpush1.bf16.xpose.msra.mxu0 0
    %494 = vmatprep.subr.bf16.mxu0 0
    %495 = vmatpush1.bf16.xpose.msra.mxu0 0
    %496 = vmatprep.subr.bf16.mxu0 0
    %497 = vmatpush1.bf16.xpose.msra.mxu0 0
    %498 = vmatprep.subr.bf16.mxu0 0
    %499 = vmatpush1.bf16.xpose.msra.mxu0 0
    %500 = vmatprep.subr.bf16.mxu0 0
    %501 = vmatpush1.bf16.xpose.msra.mxu0 0
    %502 = vmatprep.subr.bf16.mxu0 0
    %503 = vmatpush1.bf16.xpose.msra.mxu0 0
    %504 = vmatprep.subr.bf16.mxu0 0
    %505 = vmatpush1.bf16.xpose.msra.mxu0 0
    %506 = vmatprep.subr.bf16.mxu0 0
    %507 = vmatpush1.bf16.xpose.msra.mxu0 0
    %508 = vmatprep.subr.bf16.mxu0 0
    %509 = vmatpush1.bf16.xpose.msra.mxu0 0
    %510 = vmatprep.mubr.bf16.mxu0 0
    %511 = vmatmul.mubr.bf16.gmra.mrb[0].mxu0 %v473
    %v512 = vpop.f32.mrb[0].mxu0
    %v513 = vadd.f32 %v93, %v512
    %v514 = vpop.f32.mrb[0].mxu0
    %v515 = vpop.f32.mrb[0].mxu0
    %v516 = vpop.f32.mrb[0].mxu0
    %517 = vdwg.mxu0
    %v519 = vsel %vm425, %v363, 0
    %v522 = vsel %vm425, %v391, 0
    %524 = vmatprep.subr.bf16.mxu0 0
    %525 = vmatpush1.bf16.xpose.msra.mxu0 %v522
    %526 = vmatprep.subr.bf16.mxu0 0
    %527 = vmatpush1.bf16.xpose.msra.mxu0 0
    %528 = vmatprep.subr.bf16.mxu0 0
    %529 = vmatpush1.bf16.xpose.msra.mxu0 0
    %530 = vmatprep.subr.bf16.mxu0 0
    %531 = vmatpush1.bf16.xpose.msra.mxu0 0
    %532 = vmatprep.subr.bf16.mxu0 0
    %533 = vmatpush1.bf16.xpose.msra.mxu0 0
    %534 = vmatprep.subr.bf16.mxu0 0
    %535 = vmatpush1.bf16.xpose.msra.mxu0 0
    %536 = vmatprep.subr.bf16.mxu0 0
    %537 = vmatpush1.bf16.xpose.msra.mxu0 0
    %538 = vmatprep.subr.bf16.mxu0 0
    %539 = vmatpush1.bf16.xpose.msra.mxu0 0
    %540 = vmatprep.subr.bf16.mxu0 0
    %541 = vmatpush1.bf16.xpose.msra.mxu0 0
    %542 = vmatprep.subr.bf16.mxu0 0
    %543 = vmatpush1.bf16.xpose.msra.mxu0 0
    %544 = vmatprep.subr.bf16.mxu0 0
    %545 = vmatpush1.bf16.xpose.msra.mxu0 0
    %546 = vmatprep.subr.bf16.mxu0 0
    %547 = vmatpush1.bf16.xpose.msra.mxu0 0
    %548 = vmatprep.subr.bf16.mxu0 0
    %549 = vmatpush1.bf16.xpose.msra.mxu0 0
    %550 = vmatprep.subr.bf16.mxu0 0
    %551 = vmatpush1.bf16.xpose.msra.mxu0 0
    %552 = vmatprep.subr.bf16.mxu0 0
    %553 = vmatpush1.bf16.xpose.msra.mxu0 0
    %554 = vmatprep.subr.bf16.mxu0 0
    %555 = vmatpush1.bf16.xpose.msra.mxu0 0
    %556 = vmatprep.mubr.bf16.mxu0 0
    %557 = vmatmul.mubr.bf16.gmra.mrb[0].mxu0 %v519
    %v558 = vpop.f32.mrb[0].mxu0
    %v559 = vadd.f32 %v93, %v558
    %v560 = vpop.f32.mrb[0].mxu0
    %v561 = vpop.f32.mrb[0].mxu0
    %v562 = vpop.f32.mrb[0].mxu0
    %563 = vdwg.mxu0
    %v565 = vsel %vm425, %v364, 0
    %v568 = vsel %vm425, %v392, 0
    %570 = vmatprep.subr.bf16.mxu0 0
    %571 = vmatpush1.bf16.xpose.msra.mxu0 %v568
    %572 = vmatprep.subr.bf16.mxu0 0
    %573 = vmatpush1.bf16.xpose.msra.mxu0 0
    %574 = vmatprep.subr.bf16.mxu0 0
    %575 = vmatpush1.bf16.xpose.msra.mxu0 0
    %576 = vmatprep.subr.bf16.mxu0 0
    %577 = vmatpush1.bf16.xpose.msra.mxu0 0
    %578 = vmatprep.subr.bf16.mxu0 0
    %579 = vmatpush1.bf16.xpose.msra.mxu0 0
    %580 = vmatprep.subr.bf16.mxu0 0
    %581 = vmatpush1.bf16.xpose.msra.mxu0 0
    %582 = vmatprep.subr.bf16.mxu0 0
    %583 = vmatpush1.bf16.xpose.msra.mxu0 0
    %584 = vmatprep.subr.bf16.mxu0 0
    %585 = vmatpush1.bf16.xpose.msra.mxu0 0
    %586 = vmatprep.subr.bf16.mxu0 0
    %587 = vmatpush1.bf16.xpose.msra.mxu0 0
    %588 = vmatprep.subr.bf16.mxu0 0
    %589 = vmatpush1.bf16.xpose.msra.mxu0 0
    %590 = vmatprep.subr.bf16.mxu0 0
    %591 = vmatpush1.bf16.xpose.msra.mxu0 0
    %592 = vmatprep.subr.bf16.mxu0 0
    %593 = vmatpush1.bf16.xpose.msra.mxu0 0
    %594 = vmatprep.subr.bf16.mxu0 0
    %595 = vmatpush1.bf16.xpose.msra.mxu0 0
    %596 = vmatprep.subr.bf16.mxu0 0
    %597 = vmatpush1.bf16.xpose.msra.mxu0 0
    %598 = vmatprep.subr.bf16.mxu0 0
    %599 = vmatpush1.bf16.xpose.msra.mxu0 0
    %600 = vmatprep.subr.bf16.mxu0 0
    %601 = vmatpush1.bf16.xpose.msra.mxu0 0
    %602 = vmatprep.mubr.bf16.mxu0 0
    %603 = vmatmul.mubr.bf16.gmra.mrb[0].mxu0 %v565
    %v604 = vpop.f32.mrb[0].mxu0
    %v605 = vadd.f32 %v93, %v604
    %v606 = vpop.f32.mrb[0].mxu0
    %v607 = vpop.f32.mrb[0].mxu0
    %v608 = vpop.f32.mrb[0].mxu0
    %609 = vdwg.mxu0
    %v611 = vsel %vm425, %v365, 0
    %v614 = vsel %vm425, %v393, 0
    %616 = vmatprep.subr.bf16.mxu0 0
    %617 = vmatpush1.bf16.xpose.msra.mxu0 %v614
    %618 = vmatprep.subr.bf16.mxu0 0
    %619 = vmatpush1.bf16.xpose.msra.mxu0 0
    %620 = vmatprep.subr.bf16.mxu0 0
    %621 = vmatpush1.bf16.xpose.msra.mxu0 0
    %622 = vmatprep.subr.bf16.mxu0 0
    %623 = vmatpush1.bf16.xpose.msra.mxu0 0
    %624 = vmatprep.subr.bf16.mxu0 0
    %625 = vmatpush1.bf16.xpose.msra.mxu0 0
    %626 = vmatprep.subr.bf16.mxu0 0
    %627 = vmatpush1.bf16.xpose.msra.mxu0 0
    %628 = vmatprep.subr.bf16.mxu0 0
    %629 = vmatpush1.bf16.xpose.msra.mxu0 0
    %630 = vmatprep.subr.bf16.mxu0 0
    %631 = vmatpush1.bf16.xpose.msra.mxu0 0
    %632 = vmatprep.subr.bf16.mxu0 0
    %633 = vmatpush1.bf16.xpose.msra.mxu0 0
    %634 = vmatprep.subr.bf16.mxu0 0
    %635 = vmatpush1.bf16.xpose.msra.mxu0 0
    %636 = vmatprep.subr.bf16.mxu0 0
    %637 = vmatpush1.bf16.xpose.msra.mxu0 0
    %638 = vmatprep.subr.bf16.mxu0 0
    %639 = vmatpush1.bf16.xpose.msra.mxu0 0
    %640 = vmatprep.subr.bf16.mxu0 0
    %641 = vmatpush1.bf16.xpose.msra.mxu0 0
    %642 = vmatprep.subr.bf16.mxu0 0
    %643 = vmatpush1.bf16.xpose.msra.mxu0 0
    %644 = vmatprep.subr.bf16.mxu0 0
    %645 = vmatpush1.bf16.xpose.msra.mxu0 0
    %646 = vmatprep.subr.bf16.mxu0 0
    %647 = vmatpush1.bf16.xpose.msra.mxu0 0
    %648 = vmatprep.mubr.bf16.mxu0 0
    %649 = vmatmul.mubr.bf16.gmra.mrb[0].mxu0 %v611
    %v650 = vpop.f32.mrb[0].mxu0
    %v651 = vadd.f32 %v93, %v650
    %v652 = vpop.f32.mrb[0].mxu0
    %v653 = vpop.f32.mrb[0].mxu0
    %v654 = vpop.f32.mrb[0].mxu0
    %655 = vdwg.mxu0
    %v657 = vsel %vm425, %v366, 0
    %v660 = vsel %vm425, %v394, 0
    %662 = vmatprep.subr.bf16.mxu0 0
    %663 = vmatpush1.bf16.xpose.msra.mxu0 %v660
    %664 = vmatprep.subr.bf16.mxu0 0
    %665 = vmatpush1.bf16.xpose.msra.mxu0 0
    %666 = vmatprep.subr.bf16.mxu0 0
    %667 = vmatpush1.bf16.xpose.msra.mxu0 0
    %668 = vmatprep.subr.bf16.mxu0 0
    %669 = vmatpush1.bf16.xpose.msra.mxu0 0
    %670 = vmatprep.subr.bf16.mxu0 0
    %671 = vmatpush1.bf16.xpose.msra.mxu0 0
    %672 = vmatprep.subr.bf16.mxu0 0
    %673 = vmatpush1.bf16.xpose.msra.mxu0 0
    %674 = vmatprep.subr.bf16.mxu0 0
    %675 = vmatpush1.bf16.xpose.msra.mxu0 0
    %676 = vmatprep.subr.bf16.mxu0 0
    %677 = vmatpush1.bf16.xpose.msra.mxu0 0
    %678 = vmatprep.subr.bf16.mxu0 0
    %679 = vmatpush1.bf16.xpose.msra.mxu0 0
    %680 = vmatprep.subr.bf16.mxu0 0
    %681 = vmatpush1.bf16.xpose.msra.mxu0 0
    %682 = vmatprep.subr.bf16.mxu0 0
    %683 = vmatpush1.bf16.xpose.msra.mxu0 0
    %684 = vmatprep.subr.bf16.mxu0 0
    %685 = vmatpush1.bf16.xpose.msra.mxu0 0
    %686 = vmatprep.subr.bf16.mxu0 0
    %687 = vmatpush1.bf16.xpose.msra.mxu0 0
    %688 = vmatprep.subr.bf16.mxu0 0
    %689 = vmatpush1.bf16.xpose.msra.mxu0 0
    %690 = vmatprep.subr.bf16.mxu0 0
    %691 = vmatpush1.bf16.xpose.msra.mxu0 0
    %692 = vmatprep.subr.bf16.mxu0 0
    %693 = vmatpush1.bf16.xpose.msra.mxu0 0
    %694 = vmatprep.mubr.bf16.mxu0 0
    %695 = vmatmul.mubr.bf16.gmra.mrb[0].mxu0 %v657
    %v696 = vpop.f32.mrb[0].mxu0
    %v697 = vadd.f32 %v93, %v696
    %v698 = vpop.f32.mrb[0].mxu0
    %v699 = vpop.f32.mrb[0].mxu0
    %v700 = vpop.f32.mrb[0].mxu0
    %701 = vdwg.mxu0
    %v703 = vsel %vm425, %v367, 0
    %v706 = vsel %vm425, %v395, 0
    %708 = vmatprep.subr.bf16.mxu0 0
    %709 = vmatpush1.bf16.xpose.msra.mxu0 %v706
    %710 = vmatprep.subr.bf16.mxu0 0
    %711 = vmatpush1.bf16.xpose.msra.mxu0 0
    %712 = vmatprep.subr.bf16.mxu0 0
    %713 = vmatpush1.bf16.xpose.msra.mxu0 0
    %714 = vmatprep.subr.bf16.mxu0 0
    %715 = vmatpush1.bf16.xpose.msra.mxu0 0
    %716 = vmatprep.subr.bf16.mxu0 0
    %717 = vmatpush1.bf16.xpose.msra.mxu0 0
    %718 = vmatprep.subr.bf16.mxu0 0
    %719 = vmatpush1.bf16.xpose.msra.mxu0 0
    %720 = vmatprep.subr.bf16.mxu0 0
    %721 = vmatpush1.bf16.xpose.msra.mxu0 0
    %722 = vmatprep.subr.bf16.mxu0 0
    %723 = vmatpush1.bf16.xpose.msra.mxu0 0
    %724 = vmatprep.subr.bf16.mxu0 0
    %725 = vmatpush1.bf16.xpose.msra.mxu0 0
    %726 = vmatprep.subr.bf16.mxu0 0
    %727 = vmatpush1.bf16.xpose.msra.mxu0 0
    %728 = vmatprep.subr.bf16.mxu0 0
    %729 = vmatpush1.bf16.xpose.msra.mxu0 0
    %730 = vmatprep.subr.bf16.mxu0 0
    %731 = vmatpush1.bf16.xpose.msra.mxu0 0
    %732 = vmatprep.subr.bf16.mxu0 0
    %733 = vmatpush1.bf16.xpose.msra.mxu0 0
    %734 = vmatprep.subr.bf16.mxu0 0
    %735 = vmatpush1.bf16.xpose.msra.mxu0 0
    %736 = vmatprep.subr.bf16.mxu0 0
    %737 = vmatpush1.bf16.xpose.msra.mxu0 0
    %738 = vmatprep.subr.bf16.mxu0 0
    %739 = vmatpush1.bf16.xpose.msra.mxu0 0
    %740 = vmatprep.mubr.bf16.mxu0 0
    %741 = vmatmul.mubr.bf16.gmra.mrb[0].mxu0 %v703
    %v742 = vpop.f32.mrb[0].mxu0
    %v743 = vadd.f32 %v93, %v742
    %v744 = vpop.f32.mrb[0].mxu0
    %v745 = vpop.f32.mrb[0].mxu0
    %v746 = vpop.f32.mrb[0].mxu0
    %747 = vdwg.mxu0
    %v749 = vsel %vm425, %v368, 0
    %v752 = vsel %vm425, %v396, 0
    %754 = vmatprep.subr.bf16.mxu0 0
    %755 = vmatpush1.bf16.xpose.msra.mxu0 %v752
    %756 = vmatprep.subr.bf16.mxu0 0
    %757 = vmatpush1.bf16.xpose.msra.mxu0 0
    %758 = vmatprep.subr.bf16.mxu0 0
    %759 = vmatpush1.bf16.xpose.msra.mxu0 0
    %760 = vmatprep.subr.bf16.mxu0 0
    %761 = vmatpush1.bf16.xpose.msra.mxu0 0
    %762 = vmatprep.subr.bf16.mxu0 0
    %763 = vmatpush1.bf16.xpose.msra.mxu0 0
    %764 = vmatprep.subr.bf16.mxu0 0
    %765 = vmatpush1.bf16.xpose.msra.mxu0 0
    %766 = vmatprep.subr.bf16.mxu0 0
    %767 = vmatpush1.bf16.xpose.msra.mxu0 0
    %768 = vmatprep.subr.bf16.mxu0 0
    %769 = vmatpush1.bf16.xpose.msra.mxu0 0
    %770 = vmatprep.subr.bf16.mxu0 0
    %771 = vmatpush1.bf16.xpose.msra.mxu0 0
    %772 = vmatprep.subr.bf16.mxu0 0
    %773 = vmatpush1.bf16.xpose.msra.mxu0 0
    %774 = vmatprep.subr.bf16.mxu0 0
    %775 = vmatpush1.bf16.xpose.msra.mxu0 0
    %776 = vmatprep.subr.bf16.mxu0 0
    %777 = vmatpush1.bf16.xpose.msra.mxu0 0
    %778 = vmatprep.subr.bf16.mxu0 0
    %779 = vmatpush1.bf16.xpose.msra.mxu0 0
    %780 = vmatprep.subr.bf16.mxu0 0
    %781 = vmatpush1.bf16.xpose.msra.mxu0 0
    %782 = vmatprep.subr.bf16.mxu0 0
    %783 = vmatpush1.bf16.xpose.msra.mxu0 0
    %784 = vmatprep.subr.bf16.mxu0 0
    %785 = vmatpush1.bf16.xpose.msra.mxu0 0
    %786 = vmatprep.mubr.bf16.mxu0 0
    %787 = vmatmul.mubr.bf16.gmra.mrb[0].mxu0 %v749
    %v788 = vpop.f32.mrb[0].mxu0
    %v789 = vadd.f32 %v93, %v788
    %v790 = vpop.f32.mrb[0].mxu0
    %v791 = vpop.f32.mrb[0].mxu0
    %v792 = vpop.f32.mrb[0].mxu0
    %793 = vdwg.mxu0
    %v794 = vsel %vm425, %v467, -inf
    %795 = vmax.xlane.f32.xlu0 %v794
    %v796 = vpop.xlane.xlu0 %795
    %v797 = vsel %vm425, %v513, -inf
    %798 = vmax.xlane.f32.xlu0 %v797
    %v799 = vpop.xlane.xlu0 %798
    %v800 = vsel %vm425, %v559, -inf
    %801 = vmax.xlane.f32.xlu0 %v800
    %v802 = vpop.xlane.xlu0 %801
    %v803 = vsel %vm425, %v605, -inf
    %804 = vmax.xlane.f32.xlu0 %v803
    %v805 = vpop.xlane.xlu0 %804
    %v806 = vsel %vm425, %v651, -inf
    %807 = vmax.xlane.f32.xlu0 %v806
    %v808 = vpop.xlane.xlu0 %807
    %v809 = vsel %vm425, %v697, -inf
    %810 = vmax.xlane.f32.xlu0 %v809
    %v811 = vpop.xlane.xlu0 %810
    %v812 = vsel %vm425, %v743, -inf
    %813 = vmax.xlane.f32.xlu0 %v812
    %v814 = vpop.xlane.xlu0 %813
    %v815 = vsel %vm425, %v789, -inf
    %816 = vmax.xlane.f32.xlu0 %v815
    %v817 = vpop.xlane.xlu0 %816
    %v818 = vsub.f32 %v467, %v796
    %v819 = vsub.f32 %v513, %v799
    %v820 = vsub.f32 %v559, %v802
    %v821 = vsub.f32 %v605, %v805
    %v822 = vsub.f32 %v651, %v808
    %v823 = vsub.f32 %v697, %v811
    %v824 = vsub.f32 %v743, %v814
    %v825 = vsub.f32 %v789, %v817
    %v826 = vmul.f32 %v818, 1.442695
    %v827 = vpow.pop %v826
    %v828 = vmul.f32 %v819, 1.442695
    %v829 = vpow.pop %v828
    %v830 = vmul.f32 %v820, 1.442695
    %v831 = vpow.pop %v830
    %v832 = vmul.f32 %v821, 1.442695
    %v833 = vpow.pop %v832
    %v834 = vmul.f32 %v822, 1.442695
    %v835 = vpow.pop %v834
    %v836 = vmul.f32 %v823, 1.442695
    %v837 = vpow.pop %v836
    %v838 = vmul.f32 %v824, 1.442695
    %v839 = vpow.pop %v838
    %v840 = vmul.f32 %v825, 1.442695
    %v841 = vpow.pop %v840
    %v842 = vsel %vm425, %v827, 0.0
    %843 = vadd.xlane.f32.xlu0 %v842
    %v844 = vpop.xlane.xlu0 %843
    %v845 = vsel %vm425, %v829, 0.0
    %846 = vadd.xlane.f32.xlu0 %v845
    %v847 = vpop.xlane.xlu0 %846
    %v848 = vsel %vm425, %v831, 0.0
    %849 = vadd.xlane.f32.xlu0 %v848
    %v850 = vpop.xlane.xlu0 %849
    %v851 = vsel %vm425, %v833, 0.0
    %852 = vadd.xlane.f32.xlu0 %v851
    %v853 = vpop.xlane.xlu0 %852
    %v854 = vsel %vm425, %v835, 0.0
    %855 = vadd.xlane.f32.xlu0 %v854
    %v856 = vpop.xlane.xlu0 %855
    %v857 = vsel %vm425, %v837, 0.0
    %858 = vadd.xlane.f32.xlu0 %v857
    %v859 = vpop.xlane.xlu0 %858
    %v860 = vsel %vm425, %v839, 0.0
    %861 = vadd.xlane.f32.xlu0 %v860
    %v862 = vpop.xlane.xlu0 %861
    %v863 = vsel %vm425, %v841, 0.0
    %864 = vadd.xlane.f32.xlu0 %v863
    %v865 = vpop.xlane.xlu0 %864
    %v866 = vrcp.pop %v844
    %v867 = vrcp.pop %v847
    %v868 = vrcp.pop %v850
    %v869 = vrcp.pop %v853
    %v870 = vrcp.pop %v856
    %v871 = vrcp.pop %v859
    %v872 = vrcp.pop %v862
    %v873 = vrcp.pop %v865
    %v874 = vmul.f32 %v827, %v866
    %v875 = vmul.f32 %v829, %v867
    %v876 = vmul.f32 %v831, %v868
    %v877 = vmul.f32 %v833, %v869
    %v878 = vmul.f32 %v835, %v870
    %v879 = vmul.f32 %v837, %v871
    %v880 = vmul.f32 %v839, %v872
    %v881 = vmul.f32 %v841, %v873
    %v882 = vpack.c.bf16 %v874, %v874
    %v883 = vpack.c.bf16 %v875, %v875
    %v884 = vpack.c.bf16 %v876, %v876
    %v885 = vpack.c.bf16 %v877, %v877
    %v886 = vpack.c.bf16 %v878, %v878
    %v887 = vpack.c.bf16 %v879, %v879
    %v888 = vpack.c.bf16 %v880, %v880
    %v889 = vpack.c.bf16 %v881, %v881
    %v891 = vsel %vm425, %v882, 0
    %vm893 = vcmask 1043456
    %v895 = vsel %vm893, %v417, 0
    %897 = vmatprep.subr.bf16.mxu0 0
    %898 = vmatpush1.bf16.msra.mxu0 %v895
    %899 = vmatprep.subr.bf16.mxu0 0
    %900 = vmatpush1.bf16.msra.mxu0 0
    %901 = vmatprep.subr.bf16.mxu0 0
    %902 = vmatpush1.bf16.msra.mxu0 0
    %903 = vmatprep.subr.bf16.mxu0 0
    %904 = vmatpush1.bf16.msra.mxu0 0
    %905 = vmatprep.subr.bf16.mxu0 0
    %906 = vmatpush1.bf16.msra.mxu0 0
    %907 = vmatprep.subr.bf16.mxu0 0
    %908 = vmatpush1.bf16.msra.mxu0 0
    %909 = vmatprep.subr.bf16.mxu0 0
    %910 = vmatpush1.bf16.msra.mxu0 0
    %911 = vmatprep.subr.bf16.mxu0 0
    %912 = vmatpush1.bf16.msra.mxu0 0
    %913 = vmatprep.subr.bf16.mxu0 0
    %914 = vmatpush1.bf16.msra.mxu0 0
    %915 = vmatprep.subr.bf16.mxu0 0
    %916 = vmatpush1.bf16.msra.mxu0 0
    %917 = vmatprep.subr.bf16.mxu0 0
    %918 = vmatpush1.bf16.msra.mxu0 0
    %919 = vmatprep.subr.bf16.mxu0 0
    %920 = vmatpush1.bf16.msra.mxu0 0
    %921 = vmatprep.subr.bf16.mxu0 0
    %922 = vmatpush1.bf16.msra.mxu0 0
    %923 = vmatprep.subr.bf16.mxu0 0
    %924 = vmatpush1.bf16.msra.mxu0 0
    %925 = vmatprep.subr.bf16.mxu0 0
    %926 = vmatpush1.bf16.msra.mxu0 0
    %927 = vmatprep.subr.bf16.mxu0 0
    %928 = vmatpush1.bf16.msra.mxu0 0
    %929 = vmatprep.mubr.bf16.mxu0 0
    %930 = vmatmul.mubr.bf16.gmra.mrb[0].mxu0 %v891
    %v931 = vpop.f32.mrb[0].mxu0
    %v932 = vadd.f32 0.0, %v931
    %v933 = vpop.f32.mrb[0].mxu0
    %v934 = vpop.f32.mrb[0].mxu0
    %v935 = vpop.f32.mrb[0].mxu0
    %936 = vdwg.mxu0
    %v938 = vsel %vm425, %v883, 0
    %v941 = vsel %vm893, %v418, 0
    %943 = vmatprep.subr.bf16.mxu0 0
    %944 = vmatpush1.bf16.msra.mxu0 %v941
    %945 = vmatprep.subr.bf16.mxu0 0
    %946 = vmatpush1.bf16.msra.mxu0 0
    %947 = vmatprep.subr.bf16.mxu0 0
    %948 = vmatpush1.bf16.msra.mxu0 0
    %949 = vmatprep.subr.bf16.mxu0 0
    %950 = vmatpush1.bf16.msra.mxu0 0
    %951 = vmatprep.subr.bf16.mxu0 0
    %952 = vmatpush1.bf16.msra.mxu0 0
    %953 = vmatprep.subr.bf16.mxu0 0
    %954 = vmatpush1.bf16.msra.mxu0 0
    %955 = vmatprep.subr.bf16.mxu0 0
    %956 = vmatpush1.bf16.msra.mxu0 0
    %957 = vmatprep.subr.bf16.mxu0 0
    %958 = vmatpush1.bf16.msra.mxu0 0
    %959 = vmatprep.subr.bf16.mxu0 0
    %960 = vmatpush1.bf16.msra.mxu0 0
    %961 = vmatprep.subr.bf16.mxu0 0
    %962 = vmatpush1.bf16.msra.mxu0 0
    %963 = vmatprep.subr.bf16.mxu0 0
    %964 = vmatpush1.bf16.msra.mxu0 0
    %965 = vmatprep.subr.bf16.mxu0 0
    %966 = vmatpush1.bf16.msra.mxu0 0
    %967 = vmatprep.subr.bf16.mxu0 0
    %968 = vmatpush1.bf16.msra.mxu0 0
    %969 = vmatprep.subr.bf16.mxu0 0
    %970 = vmatpush1.bf16.msra.mxu0 0
    %971 = vmatprep.subr.bf16.mxu0 0
    %972 = vmatpush1.bf16.msra.mxu0 0
    %973 = vmatprep.subr.bf16.mxu0 0
    %974 = vmatpush1.bf16.msra.mxu0 0
    %975 = vmatprep.mubr.bf16.mxu0 0
    %976 = vmatmul.mubr.bf16.gmra.mrb[0].mxu0 %v938
    %v977 = vpop.f32.mrb[0].mxu0
    %v978 = vadd.f32 0.0, %v977
    %v979 = vpop.f32.mrb[0].mxu0
    %v980 = vpop.f32.mrb[0].mxu0
    %v981 = vpop.f32.mrb[0].mxu0
    %982 = vdwg.mxu0
    %v984 = vsel %vm425, %v884, 0
    %v987 = vsel %vm893, %v419, 0
    %989 = vmatprep.subr.bf16.mxu0 0
    %990 = vmatpush1.bf16.msra.mxu0 %v987
    %991 = vmatprep.subr.bf16.mxu0 0
    %992 = vmatpush1.bf16.msra.mxu0 0
    %993 = vmatprep.subr.bf16.mxu0 0
    %994 = vmatpush1.bf16.msra.mxu0 0
    %995 = vmatprep.subr.bf16.mxu0 0
    %996 = vmatpush1.bf16.msra.mxu0 0
    %997 = vmatprep.subr.bf16.mxu0 0
    %998 = vmatpush1.bf16.msra.mxu0 0
    %999 = vmatprep.subr.bf16.mxu0 0
    %1000 = vmatpush1.bf16.msra.mxu0 0
    %1001 = vmatprep.subr.bf16.mxu0 0
    %1002 = vmatpush1.bf16.msra.mxu0 0
    %1003 = vmatprep.subr.bf16.mxu0 0
    %1004 = vmatpush1.bf16.msra.mxu0 0
    %1005 = vmatprep.subr.bf16.mxu0 0
    %1006 = vmatpush1.bf16.msra.mxu0 0
    %1007 = vmatprep.subr.bf16.mxu0 0
    %1008 = vmatpush1.bf16.msra.mxu0 0
    %1009 = vmatprep.subr.bf16.mxu0 0
    %1010 = vmatpush1.bf16.msra.mxu0 0
    %1011 = vmatprep.subr.bf16.mxu0 0
    %1012 = vmatpush1.bf16.msra.mxu0 0
    %1013 = vmatprep.subr.bf16.mxu0 0
    %1014 = vmatpush1.bf16.msra.mxu0 0
    %1015 = vmatprep.subr.bf16.mxu0 0
    %1016 = vmatpush1.bf16.msra.mxu0 0
    %1017 = vmatprep.subr.bf16.mxu0 0
    %1018 = vmatpush1.bf16.msra.mxu0 0
    %1019 = vmatprep.subr.bf16.mxu0 0
    %1020 = vmatpush1.bf16.msra.mxu0 0
    %1021 = vmatprep.mubr.bf16.mxu0 0
    %1022 = vmatmul.mubr.bf16.gmra.mrb[0].mxu0 %v984
    %v1023 = vpop.f32.mrb[0].mxu0
    %v1024 = vadd.f32 0.0, %v1023
    %v1025 = vpop.f32.mrb[0].mxu0
    %v1026 = vpop.f32.mrb[0].mxu0
    %v1027 = vpop.f32.mrb[0].mxu0
    %1028 = vdwg.mxu0
    %v1030 = vsel %vm425, %v885, 0
    %v1033 = vsel %vm893, %v420, 0
    %1035 = vmatprep.subr.bf16.mxu0 0
    %1036 = vmatpush1.bf16.msra.mxu0 %v1033
    %1037 = vmatprep.subr.bf16.mxu0 0
    %1038 = vmatpush1.bf16.msra.mxu0 0
    %1039 = vmatprep.subr.bf16.mxu0 0
    %1040 = vmatpush1.bf16.msra.mxu0 0
    %1041 = vmatprep.subr.bf16.mxu0 0
    %1042 = vmatpush1.bf16.msra.mxu0 0
    %1043 = vmatprep.subr.bf16.mxu0 0
    %1044 = vmatpush1.bf16.msra.mxu0 0
    %1045 = vmatprep.subr.bf16.mxu0 0
    %1046 = vmatpush1.bf16.msra.mxu0 0
    %1047 = vmatprep.subr.bf16.mxu0 0
    %1048 = vmatpush1.bf16.msra.mxu0 0
    %1049 = vmatprep.subr.bf16.mxu0 0
    %1050 = vmatpush1.bf16.msra.mxu0 0
    %1051 = vmatprep.subr.bf16.mxu0 0
    %1052 = vmatpush1.bf16.msra.mxu0 0
    %1053 = vmatprep.subr.bf16.mxu0 0
    %1054 = vmatpush1.bf16.msra.mxu0 0
    %1055 = vmatprep.subr.bf16.mxu0 0
    %1056 = vmatpush1.bf16.msra.mxu0 0
    %1057 = vmatprep.subr.bf16.mxu0 0
    %1058 = vmatpush1.bf16.msra.mxu0 0
    %1059 = vmatprep.subr.bf16.mxu0 0
    %1060 = vmatpush1.bf16.msra.mxu0 0
    %1061 = vmatprep.subr.bf16.mxu0 0
    %1062 = vmatpush1.bf16.msra.mxu0 0
    %1063 = vmatprep.subr.bf16.mxu0 0
    %1064 = vmatpush1.bf16.msra.mxu0 0
    %1065 = vmatprep.subr.bf16.mxu0 0
    %1066 = vmatpush1.bf16.msra.mxu0 0
    %1067 = vmatprep.mubr.bf16.mxu0 0
    %1068 = vmatmul.mubr.bf16.gmra.mrb[0].mxu0 %v1030
    %v1069 = vpop.f32.mrb[0].mxu0
    %v1070 = vadd.f32 0.0, %v1069
    %v1071 = vpop.f32.mrb[0].mxu0
    %v1072 = vpop.f32.mrb[0].mxu0
    %v1073 = vpop.f32.mrb[0].mxu0
    %1074 = vdwg.mxu0
    %v1076 = vsel %vm425, %v886, 0
    %v1079 = vsel %vm893, %v421, 0
    %1081 = vmatprep.subr.bf16.mxu0 0
    %1082 = vmatpush1.bf16.msra.mxu0 %v1079
    %1083 = vmatprep.subr.bf16.mxu0 0
    %1084 = vmatpush1.bf16.msra.mxu0 0
    %1085 = vmatprep.subr.bf16.mxu0 0
    %1086 = vmatpush1.bf16.msra.mxu0 0
    %1087 = vmatprep.subr.bf16.mxu0 0
    %1088 = vmatpush1.bf16.msra.mxu0 0
    %1089 = vmatprep.subr.bf16.mxu0 0
    %1090 = vmatpush1.bf16.msra.mxu0 0
    %1091 = vmatprep.subr.bf16.mxu0 0
    %1092 = vmatpush1.bf16.msra.mxu0 0
    %1093 = vmatprep.subr.bf16.mxu0 0
    %1094 = vmatpush1.bf16.msra.mxu0 0
    %1095 = vmatprep.subr.bf16.mxu0 0
    %1096 = vmatpush1.bf16.msra.mxu0 0
    %1097 = vmatprep.subr.bf16.mxu0 0
    %1098 = vmatpush1.bf16.msra.mxu0 0
    %1099 = vmatprep.subr.bf16.mxu0 0
    %1100 = vmatpush1.bf16.msra.mxu0 0
    %1101 = vmatprep.subr.bf16.mxu0 0
    %1102 = vmatpush1.bf16.msra.mxu0 0
    %1103 = vmatprep.subr.bf16.mxu0 0
    %1104 = vmatpush1.bf16.msra.mxu0 0
    %1105 = vmatprep.subr.bf16.mxu0 0
    %1106 = vmatpush1.bf16.msra.mxu0 0
    %1107 = vmatprep.subr.bf16.mxu0 0
    %1108 = vmatpush1.bf16.msra.mxu0 0
    %1109 = vmatprep.subr.bf16.mxu0 0
    %1110 = vmatpush1.bf16.msra.mxu0 0
    %1111 = vmatprep.subr.bf16.mxu0 0
    %1112 = vmatpush1.bf16.msra.mxu0 0
    %1113 = vmatprep.mubr.bf16.mxu0 0
    %1114 = vmatmul.mubr.bf16.gmra.mrb[0].mxu0 %v1076
    %v1115 = vpop.f32.mrb[0].mxu0
    %v1116 = vadd.f32 0.0, %v1115
    %v1117 = vpop.f32.mrb[0].mxu0
    %v1118 = vpop.f32.mrb[0].mxu0
    %v1119 = vpop.f32.mrb[0].mxu0
    %1120 = vdwg.mxu0
    %v1122 = vsel %vm425, %v887, 0
    %v1125 = vsel %vm893, %v422, 0
    %1127 = vmatprep.subr.bf16.mxu0 0
    %1128 = vmatpush1.bf16.msra.mxu0 %v1125
    %1129 = vmatprep.subr.bf16.mxu0 0
    %1130 = vmatpush1.bf16.msra.mxu0 0
    %1131 = vmatprep.subr.bf16.mxu0 0
    %1132 = vmatpush1.bf16.msra.mxu0 0
    %1133 = vmatprep.subr.bf16.mxu0 0
    %1134 = vmatpush1.bf16.msra.mxu0 0
    %1135 = vmatprep.subr.bf16.mxu0 0
    %1136 = vmatpush1.bf16.msra.mxu0 0
    %1137 = vmatprep.subr.bf16.mxu0 0
    %1138 = vmatpush1.bf16.msra.mxu0 0
    %1139 = vmatprep.subr.bf16.mxu0 0
    %1140 = vmatpush1.bf16.msra.mxu0 0
    %1141 = vmatprep.subr.bf16.mxu0 0
    %1142 = vmatpush1.bf16.msra.mxu0 0
    %1143 = vmatprep.subr.bf16.mxu0 0
    %1144 = vmatpush1.bf16.msra.mxu0 0
    %1145 = vmatprep.subr.bf16.mxu0 0
    %1146 = vmatpush1.bf16.msra.mxu0 0
    %1147 = vmatprep.subr.bf16.mxu0 0
    %1148 = vmatpush1.bf16.msra.mxu0 0
    %1149 = vmatprep.subr.bf16.mxu0 0
    %1150 = vmatpush1.bf16.msra.mxu0 0
    %1151 = vmatprep.subr.bf16.mxu0 0
    %1152 = vmatpush1.bf16.msra.mxu0 0
    %1153 = vmatprep.subr.bf16.mxu0 0
    %1154 = vmatpush1.bf16.msra.mxu0 0
    %1155 = vmatprep.subr.bf16.mxu0 0
    %1156 = vmatpush1.bf16.msra.mxu0 0
    %1157 = vmatprep.subr.bf16.mxu0 0
    %1158 = vmatpush1.bf16.msra.mxu0 0
    %1159 = vmatprep.mubr.bf16.mxu0 0
    %1160 = vmatmul.mubr.bf16.gmra.mrb[0].mxu0 %v1122
    %v1161 = vpop.f32.mrb[0].mxu0
    %v1162 = vadd.f32 0.0, %v1161
    %v1163 = vpop.f32.mrb[0].mxu0
    %v1164 = vpop.f32.mrb[0].mxu0
    %v1165 = vpop.f32.mrb[0].mxu0
    %1166 = vdwg.mxu0
    %v1168 = vsel %vm425, %v888, 0
    %v1171 = vsel %vm893, %v423, 0
    %1173 = vmatprep.subr.bf16.mxu0 0
    %1174 = vmatpush1.bf16.msra.mxu0 %v1171
    %1175 = vmatprep.subr.bf16.mxu0 0
    %1176 = vmatpush1.bf16.msra.mxu0 0
    %1177 = vmatprep.subr.bf16.mxu0 0
    %1178 = vmatpush1.bf16.msra.mxu0 0
    %1179 = vmatprep.subr.bf16.mxu0 0
    %1180 = vmatpush1.bf16.msra.mxu0 0
    %1181 = vmatprep.subr.bf16.mxu0 0
    %1182 = vmatpush1.bf16.msra.mxu0 0
    %1183 = vmatprep.subr.bf16.mxu0 0
    %1184 = vmatpush1.bf16.msra.mxu0 0
    %1185 = vmatprep.subr.bf16.mxu0 0
    %1186 = vmatpush1.bf16.msra.mxu0 0
    %1187 = vmatprep.subr.bf16.mxu0 0
    %1188 = vmatpush1.bf16.msra.mxu0 0
    %1189 = vmatprep.subr.bf16.mxu0 0
    %1190 = vmatpush1.bf16.msra.mxu0 0
    %1191 = vmatprep.subr.bf16.mxu0 0
    %1192 = vmatpush1.bf16.msra.mxu0 0
    %1193 = vmatprep.subr.bf16.mxu0 0
    %1194 = vmatpush1.bf16.msra.mxu0 0
    %1195 = vmatprep.subr.bf16.mxu0 0
    %1196 = vmatpush1.bf16.msra.mxu0 0
    %1197 = vmatprep.subr.bf16.mxu0 0
    %1198 = vmatpush1.bf16.msra.mxu0 0
    %1199 = vmatprep.subr.bf16.mxu0 0
    %1200 = vmatpush1.bf16.msra.mxu0 0
    %1201 = vmatprep.subr.bf16.mxu0 0
    %1202 = vmatpush1.bf16.msra.mxu0 0
    %1203 = vmatprep.subr.bf16.mxu0 0
    %1204 = vmatpush1.bf16.msra.mxu0 0
    %1205 = vmatprep.mubr.bf16.mxu0 0
    %1206 = vmatmul.mubr.bf16.gmra.mrb[0].mxu0 %v1168
    %v1207 = vpop.f32.mrb[0].mxu0
    %v1208 = vadd.f32 0.0, %v1207
    %v1209 = vpop.f32.mrb[0].mxu0
    %v1210 = vpop.f32.mrb[0].mxu0
    %v1211 = vpop.f32.mrb[0].mxu0
    %1212 = vdwg.mxu0
    %v1214 = vsel %vm425, %v889, 0
    %v1217 = vsel %vm893, %v424, 0
    %1219 = vmatprep.subr.bf16.mxu0 0
    %1220 = vmatpush1.bf16.msra.mxu0 %v1217
    %1221 = vmatprep.subr.bf16.mxu0 0
    %1222 = vmatpush1.bf16.msra.mxu0 0
    %1223 = vmatprep.subr.bf16.mxu0 0
    %1224 = vmatpush1.bf16.msra.mxu0 0
    %1225 = vmatprep.subr.bf16.mxu0 0
    %1226 = vmatpush1.bf16.msra.mxu0 0
    %1227 = vmatprep.subr.bf16.mxu0 0
    %1228 = vmatpush1.bf16.msra.mxu0 0
    %1229 = vmatprep.subr.bf16.mxu0 0
    %1230 = vmatpush1.bf16.msra.mxu0 0
    %1231 = vmatprep.subr.bf16.mxu0 0
    %1232 = vmatpush1.bf16.msra.mxu0 0
    %1233 = vmatprep.subr.bf16.mxu0 0
    %1234 = vmatpush1.bf16.msra.mxu0 0
    %1235 = vmatprep.subr.bf16.mxu0 0
    %1236 = vmatpush1.bf16.msra.mxu0 0
    %1237 = vmatprep.subr.bf16.mxu0 0
    %1238 = vmatpush1.bf16.msra.mxu0 0
    %1239 = vmatprep.subr.bf16.mxu0 0
    %1240 = vmatpush1.bf16.msra.mxu0 0
    %1241 = vmatprep.subr.bf16.mxu0 0
    %1242 = vmatpush1.bf16.msra.mxu0 0
    %1243 = vmatprep.subr.bf16.mxu0 0
    %1244 = vmatpush1.bf16.msra.mxu0 0
    %1245 = vmatprep.subr.bf16.mxu0 0
    %1246 = vmatpush1.bf16.msra.mxu0 0
    %1247 = vmatprep.subr.bf16.mxu0 0
    %1248 = vmatpush1.bf16.msra.mxu0 0
    %1249 = vmatprep.subr.bf16.mxu0 0
    %1250 = vmatpush1.bf16.msra.mxu0 0
    %1251 = vmatprep.mubr.bf16.mxu0 0
    %1252 = vmatmul.mubr.bf16.gmra.mrb[0].mxu0 %v1214
    %v1253 = vpop.f32.mrb[0].mxu0
    %v1254 = vadd.f32 0.0, %v1253
    %v1255 = vpop.f32.mrb[0].mxu0
    %v1256 = vpop.f32.mrb[0].mxu0
    %v1257 = vpop.f32.mrb[0].mxu0
    %1258 = vdwg.mxu0
    %1260 = vrot.lane.b32.xlu0 %v978, 8
    %v1261 = vpop.permute.xlu0 %1260
    %1264 = vrot.lane.b32.xlu0 %v1024, 16
    %v1265 = vpop.permute.xlu0 %1264
    %1268 = vrot.lane.b32.xlu0 %v1070, 24
    %v1269 = vpop.permute.xlu0 %1268
    %v1271 = vsel %vm425, %v932, %v1261
    %vm1272 = vcmask 130048
    %v1273 = vsel %vm1272, %v1271, %v1265
    %vm1274 = vcmask 195584
    %v1275 = vsel %vm1274, %v1273, %v1269
    %1277 = vrot.lane.b32.xlu0 %v1162, 8
    %v1278 = vpop.permute.xlu0 %1277
    %1281 = vrot.lane.b32.xlu0 %v1208, 16
    %v1282 = vpop.permute.xlu0 %1281
    %1285 = vrot.lane.b32.xlu0 %v1254, 24
    %v1286 = vpop.permute.xlu0 %1285
    %v1288 = vsel %vm425, %v1116, %v1278
    %v1289 = vsel %vm1272, %v1288, %v1282
    %v1290 = vsel %vm1274, %v1289, %v1286
    %v1291 = vpack.c.bf16 %v1290, %v1275
    %v1292 = vlaneseq
    %v1293 = vshrl.u32 %v1292, 7
    %v1294 = vsub.s32 3, %v1293
    %v1295 = vrot.slane %v163, %v1294
    %v1300 = vunpack.c.l.b16 %v159
    %v1301 = vunpack.c.l.b16 %v160
    %v1302 = vunpack.c.l.b16 %v161
    %v1303 = vunpack.c.l.b16 %v162
    %v1304 = vpack.c.b16 %v1301, %v1300
    %v1305 = vpack.c.b16 %v1303, %v1302
    %v1309 = vsel %vm98, %v1291, 0
    %1311 = vmatprep.subr.bf16.mxu0 0
    %1312 = vmatpush1.bf16.msra.mxu0 %v1304
    %1313 = vmatprep.subr.bf16.mxu0 0
    %1314 = vmatpush1.bf16.msra.mxu0 %v1305
    %1315 = vmatprep.subr.bf16.mxu0 0
    %1316 = vmatpush1.bf16.msra.mxu0 0
    %1317 = vmatprep.subr.bf16.mxu0 0
    %1318 = vmatpush1.bf16.msra.mxu0 0
    %1319 = vmatprep.subr.bf16.mxu0 0
    %1320 = vmatpush1.bf16.msra.mxu0 0
    %1321 = vmatprep.subr.bf16.mxu0 0
    %1322 = vmatpush1.bf16.msra.mxu0 0
    %1323 = vmatprep.subr.bf16.mxu0 0
    %1324 = vmatpush1.bf16.msra.mxu0 0
    %1325 = vmatprep.subr.bf16.mxu0 0
    %1326 = vmatpush1.bf16.msra.mxu0 0
    %1327 = vmatprep.subr.bf16.mxu0 0
    %1328 = vmatpush1.bf16.msra.mxu0 0
    %1329 = vmatprep.subr.bf16.mxu0 0
    %1330 = vmatpush1.bf16.msra.mxu0 0
    %1331 = vmatprep.subr.bf16.mxu0 0
    %1332 = vmatpush1.bf16.msra.mxu0 0
    %1333 = vmatprep.subr.bf16.mxu0 0
    %1334 = vmatpush1.bf16.msra.mxu0 0
    %1335 = vmatprep.subr.bf16.mxu0 0
    %1336 = vmatpush1.bf16.msra.mxu0 0
    %1337 = vmatprep.subr.bf16.mxu0 0
    %1338 = vmatpush1.bf16.msra.mxu0 0
    %1339 = vmatprep.subr.bf16.mxu0 0
    %1340 = vmatpush1.bf16.msra.mxu0 0
    %1341 = vmatprep.subr.bf16.mxu0 0
    %1342 = vmatpush1.bf16.msra.mxu0 0
    %1343 = vmatprep.mubr.bf16.mxu0 0
    %1344 = vmatmul.mubr.bf16.gmra.mrb[0].mxu0 %v1309
    %v1345 = vpop.f32.mrb[0].mxu0
    %v1346 = vadd.f32 %v1295, %v1345
    %v1347 = vpop.f32.mrb[0].mxu0
    %v1348 = vpop.f32.mrb[0].mxu0
    %v1349 = vadd.f32 %v1295, %v1348
    %v1350 = vpop.f32.mrb[0].mxu0
    %1351 = vdwg.mxu0
    %v1352 = vadd.f32 %v89, %v1346
    %v1353 = vadd.f32 %v90, %v1349
    %s1354 = sld [smem:[#allocation9 + $0x2]]
    %s1355 = sld [smem:[#allocation9 + $0x3]]
    %v1356 = vsel %vm98, %v1352, 0.0
    %1357 = vadd.xlane.f32.xlu0 %v1356
    %v1358 = vpop.xlane.xlu0 %1357
    %v1359 = vsel %vm98, %v1353, 0.0
    %1360 = vadd.xlane.f32.xlu0 %v1359
    %v1361 = vpop.xlane.xlu0 %1360
    %v1362 = vmul.f32 %v1358, %v105
    %v1363 = vmul.f32 %v1361, %v105
    %v1364 = vsub.f32 %v1352, %v1362
    %v1365 = vsub.f32 %v1353, %v1363
    %v1366 = vmul.f32 %v1364, %v1364
    %v1367 = vmul.f32 %v1365, %v1365
    %v1368 = vsel %vm98, %v1366, 0.0
    %1369 = vadd.xlane.f32.xlu0 %v1368
    %v1370 = vpop.xlane.xlu0 %1369
    %v1371 = vsel %vm98, %v1367, 0.0
    %1372 = vadd.xlane.f32.xlu0 %v1371
    %v1373 = vpop.xlane.xlu0 %1372
    %v1374 = vmul.f32 %v1370, %v118
    %v1375 = vmul.f32 %v1373, %v118
    %v1376 = vrsqrt.pop %v1374
    %v1377 = vmul.f32 %v1374, %v1376
    %vm1378 = vcmp.eq.f32.partialorder %v1374, inf
    %v1379 = vsel %vm1378, %v1374, %v1377
    %vm1380 = vcmp.eq.f32.partialorder %v1374, 0.0
    %v1381 = vand.u32 %v1374, 2147483648
    %v1382 = vsel %vm1380, %v1381, %v1379
    %v1383 = vrsqrt.pop %v1375
    %v1384 = vmul.f32 %v1375, %v1383
    %vm1385 = vcmp.eq.f32.partialorder %v1375, inf
    %v1386 = vsel %vm1385, %v1375, %v1384
    %vm1387 = vcmp.eq.f32.partialorder %v1375, 0.0
    %v1388 = vand.u32 %v1375, 2147483648
    %v1389 = vsel %vm1387, %v1388, %v1386
    %v1390 = vadd.f32 %v1382, 1e-06
    %v1391 = vadd.f32 %v1389, 1e-06
    %v1392 = vrcp.pop %v1390
    %v1393 = vrcp.pop %v1391
    %v1394 = vstv %s1354
    %v1395 = vmul.f32 %v1394, %v1364
    %v1396 = vmul.f32 %v1394, %v1365
    %v1397 = vmul.f32 %v1395, %v1392
    %v1398 = vmul.f32 %v1396, %v1393
    %v1399 = vstv %s1355
    %v1400 = vadd.f32 %v1397, %v1399
    %v1401 = vadd.f32 %v1398, %v1399
    %s1402 = scalar_lea.vmem [#allocation6], 64
    %v1403 = vld [vmem:[%s1402] sm:$0xf]
    %v1404 = vld [vmem:[%s1402 + $0x4] sm:$0xf]
    %v1405 = vld [vmem:[%s1402 + $0x8] sm:$0xf]
    %v1406 = vld [vmem:[%s1402 + $0xc] sm:$0xf]
    %v1407 = vld [vmem:[%s1402 + $0x10] sm:$0xf]
    %v1408 = vld [vmem:[%s1402 + $0x14] sm:$0xf]
    %v1409 = vld [vmem:[%s1402 + $0x18] sm:$0xf]
    %v1410 = vld [vmem:[%s1402 + $0x1c] sm:$0xf]
    %v1411 = vld [vmem:[%s1402 + $0x20] sm:$0xf]
    %v1412 = vld [vmem:[%s1402 + $0x24] sm:$0xf]
    %v1413 = vld [vmem:[%s1402 + $0x28] sm:$0xf]
    %v1414 = vld [vmem:[%s1402 + $0x2c] sm:$0xf]
    %v1415 = vld [vmem:[%s1402 + $0x30] sm:$0xf]
    %v1416 = vld [vmem:[%s1402 + $0x34] sm:$0xf]
    %v1417 = vld [vmem:[%s1402 + $0x38] sm:$0xf]
    %v1418 = vld [vmem:[%s1402 + $0x3c] sm:$0xf]
    %s1419 = scalar_lea.vmem [#allocation8], 4
    %v1420 = vld [vmem:[%s1419] sm:$0xf]
    %v1421 = vpack.c.bf16 %v1401, %v1400
    %v1422 = vlaneseq
    %v1423 = vshrl.u32 %v1422, 7
    %v1424 = vsub.s32 0, %v1423
    %v1425 = vrot.slane %v1420, %v1424
    %v1430 = vunpack.c.l.b16 %v1403
    %v1431 = vunpack.c.l.b16 %v1404
    %v1432 = vunpack.c.l.b16 %v1405
    %v1433 = vunpack.c.l.b16 %v1406
    %v1434 = vpack.c.b16 %v1431, %v1430
    %v1435 = vpack.c.b16 %v1433, %v1432
    %v1439 = vsel %vm98, %v1421, 0
    %1441 = vmatprep.subr.bf16.mxu0 0
    %1442 = vmatpush1.bf16.msra.mxu0 %v1434
    %1443 = vmatprep.subr.bf16.mxu0 0
    %1444 = vmatpush1.bf16.msra.mxu0 %v1435
    %1445 = vmatprep.subr.bf16.mxu0 0
    %1446 = vmatpush1.bf16.msra.mxu0 0
    %1447 = vmatprep.subr.bf16.mxu0 0
    %1448 = vmatpush1.bf16.msra.mxu0 0
    %1449 = vmatprep.subr.bf16.mxu0 0
    %1450 = vmatpush1.bf16.msra.mxu0 0
    %1451 = vmatprep.subr.bf16.mxu0 0
    %1452 = vmatpush1.bf16.msra.mxu0 0
    %1453 = vmatprep.subr.bf16.mxu0 0
    %1454 = vmatpush1.bf16.msra.mxu0 0
    %1455 = vmatprep.subr.bf16.mxu0 0
    %1456 = vmatpush1.bf16.msra.mxu0 0
    %1457 = vmatprep.subr.bf16.mxu0 0
    %1458 = vmatpush1.bf16.msra.mxu0 0
    %1459 = vmatprep.subr.bf16.mxu0 0
    %1460 = vmatpush1.bf16.msra.mxu0 0
    %1461 = vmatprep.subr.bf16.mxu0 0
    %1462 = vmatpush1.bf16.msra.mxu0 0
    %1463 = vmatprep.subr.bf16.mxu0 0
    %1464 = vmatpush1.bf16.msra.mxu0 0
    %1465 = vmatprep.subr.bf16.mxu0 0
    %1466 = vmatpush1.bf16.msra.mxu0 0
    %1467 = vmatprep.subr.bf16.mxu0 0
    %1468 = vmatpush1.bf16.msra.mxu0 0
    %1469 = vmatprep.subr.bf16.mxu0 0
    %1470 = vmatpush1.bf16.msra.mxu0 0
    %1471 = vmatprep.subr.bf16.mxu0 0
    %1472 = vmatpush1.bf16.msra.mxu0 0
    %1473 = vmatprep.mubr.bf16.mxu0 0
    %1474 = vmatmul.mubr.bf16.gmra.mrb[0].mxu0 %v1439
    %v1475 = vpop.f32.mrb[0].mxu0
    %v1476 = vadd.f32 %v1425, %v1475
    %v1477 = vpop.f32.mrb[0].mxu0
    %v1478 = vpop.f32.mrb[0].mxu0
    %v1479 = vadd.f32 %v1425, %v1478
    %v1480 = vpop.f32.mrb[0].mxu0
    %1481 = vdwg.mxu0
    %v1482 = vpack.c.bf16 %v92, %v91
    %v1483 = vlaneseq
    %v1484 = vshrl.u32 %v1483, 7
    %v1485 = vsub.s32 1, %v1484
    %v1486 = vrot.slane %v1420, %v1485
    %v1491 = vunpack.c.l.b16 %v1407
    %v1492 = vunpack.c.l.b16 %v1408
    %v1493 = vunpack.c.l.b16 %v1409
    %v1494 = vunpack.c.l.b16 %v1410
    %v1495 = vpack.c.b16 %v1492, %v1491
    %v1496 = vpack.c.b16 %v1494, %v1493
    %v1500 = vsel %vm98, %v1482, 0
    %1502 = vmatprep.subr.bf16.mxu0 0
    %1503 = vmatpush1.bf16.msra.mxu0 %v1495
    %1504 = vmatprep.subr.bf16.mxu0 0
    %1505 = vmatpush1.bf16.msra.mxu0 %v1496
    %1506 = vmatprep.subr.bf16.mxu0 0
    %1507 = vmatpush1.bf16.msra.mxu0 0
    %1508 = vmatprep.subr.bf16.mxu0 0
    %1509 = vmatpush1.bf16.msra.mxu0 0
    %1510 = vmatprep.subr.bf16.mxu0 0
    %1511 = vmatpush1.bf16.msra.mxu0 0
    %1512 = vmatprep.subr.bf16.mxu0 0
    %1513 = vmatpush1.bf16.msra.mxu0 0
    %1514 = vmatprep.subr.bf16.mxu0 0
    %1515 = vmatpush1.bf16.msra.mxu0 0
    %1516 = vmatprep.subr.bf16.mxu0 0
    %1517 = vmatpush1.bf16.msra.mxu0 0
    %1518 = vmatprep.subr.bf16.mxu0 0
    %1519 = vmatpush1.bf16.msra.mxu0 0
    %1520 = vmatprep.subr.bf16.mxu0 0
    %1521 = vmatpush1.bf16.msra.mxu0 0
    %1522 = vmatprep.subr.bf16.mxu0 0
    %1523 = vmatpush1.bf16.msra.mxu0 0
    %1524 = vmatprep.subr.bf16.mxu0 0
    %1525 = vmatpush1.bf16.msra.mxu0 0
    %1526 = vmatprep.subr.bf16.mxu0 0
    %1527 = vmatpush1.bf16.msra.mxu0 0
    %1528 = vmatprep.subr.bf16.mxu0 0
    %1529 = vmatpush1.bf16.msra.mxu0 0
    %1530 = vmatprep.subr.bf16.mxu0 0
    %1531 = vmatpush1.bf16.msra.mxu0 0
    %1532 = vmatprep.subr.bf16.mxu0 0
    %1533 = vmatpush1.bf16.msra.mxu0 0
    %1534 = vmatprep.mubr.bf16.mxu0 0
    %1535 = vmatmul.mubr.bf16.gmra.mrb[0].mxu0 %v1500
    %v1536 = vpop.f32.mrb[0].mxu0
    %v1537 = vadd.f32 %v1486, %v1536
    %v1538 = vpop.f32.mrb[0].mxu0
    %v1539 = vpop.f32.mrb[0].mxu0
    %v1540 = vadd.f32 %v1486, %v1539
    %v1541 = vpop.f32.mrb[0].mxu0
    %1542 = vdwg.mxu0
    %v1543 = vlaneseq
    %v1544 = vshrl.u32 %v1543, 7
    %v1545 = vsub.s32 2, %v1544
    %v1546 = vrot.slane %v1420, %v1545
    %v1551 = vunpack.c.l.b16 %v1411
    %v1552 = vunpack.c.l.b16 %v1412
    %v1553 = vunpack.c.l.b16 %v1413
    %v1554 = vunpack.c.l.b16 %v1414
    %v1555 = vpack.c.b16 %v1552, %v1551
    %v1556 = vpack.c.b16 %v1554, %v1553
    %1559 = vmatprep.subr.bf16.mxu0 0
    %1560 = vmatpush1.bf16.msra.mxu0 %v1555
    %1561 = vmatprep.subr.bf16.mxu0 0
    %1562 = vmatpush1.bf16.msra.mxu0 %v1556
    %1563 = vmatprep.subr.bf16.mxu0 0
    %1564 = vmatpush1.bf16.msra.mxu0 0
    %1565 = vmatprep.subr.bf16.mxu0 0
    %1566 = vmatpush1.bf16.msra.mxu0 0
    %1567 = vmatprep.subr.bf16.mxu0 0
    %1568 = vmatpush1.bf16.msra.mxu0 0
    %1569 = vmatprep.subr.bf16.mxu0 0
    %1570 = vmatpush1.bf16.msra.mxu0 0
    %1571 = vmatprep.subr.bf16.mxu0 0
    %1572 = vmatpush1.bf16.msra.mxu0 0
    %1573 = vmatprep.subr.bf16.mxu0 0
    %1574 = vmatpush1.bf16.msra.mxu0 0
    %1575 = vmatprep.subr.bf16.mxu0 0
    %1576 = vmatpush1.bf16.msra.mxu0 0
    %1577 = vmatprep.subr.bf16.mxu0 0
    %1578 = vmatpush1.bf16.msra.mxu0 0
    %1579 = vmatprep.subr.bf16.mxu0 0
    %1580 = vmatpush1.bf16.msra.mxu0 0
    %1581 = vmatprep.subr.bf16.mxu0 0
    %1582 = vmatpush1.bf16.msra.mxu0 0
    %1583 = vmatprep.subr.bf16.mxu0 0
    %1584 = vmatpush1.bf16.msra.mxu0 0
    %1585 = vmatprep.subr.bf16.mxu0 0
    %1586 = vmatpush1.bf16.msra.mxu0 0
    %1587 = vmatprep.subr.bf16.mxu0 0
    %1588 = vmatpush1.bf16.msra.mxu0 0
    %1589 = vmatprep.subr.bf16.mxu0 0
    %1590 = vmatpush1.bf16.msra.mxu0 0
    %1591 = vmatprep.mubr.bf16.mxu0 0
    %1592 = vmatmul.mubr.bf16.gmra.mrb[0].mxu0 %v1500
    %v1593 = vpop.f32.mrb[0].mxu0
    %v1594 = vadd.f32 %v1546, %v1593
    %v1595 = vpop.f32.mrb[0].mxu0
    %v1596 = vpop.f32.mrb[0].mxu0
    %v1597 = vadd.f32 %v1546, %v1596
    %v1598 = vpop.f32.mrb[0].mxu0
    %1599 = vdwg.mxu0
    %v1600 = vmul.f32 %v1476, 0.35355338
    %v1601 = vmul.f32 %v1479, 0.35355338
    %1603 = vrot.lane.b32.xlu0 %v1600, 120
    %v1604 = vpop.permute.xlu0 %1603
    %1606 = vrot.lane.b32.xlu0 %v1600, 112
    %v1607 = vpop.permute.xlu0 %1606
    %1609 = vrot.lane.b32.xlu0 %v1600, 104
    %v1610 = vpop.permute.xlu0 %1609
    %1613 = vrot.lane.b32.xlu0 %v1601, 120
    %v1614 = vpop.permute.xlu0 %1613
    %1616 = vrot.lane.b32.xlu0 %v1601, 112
    %v1617 = vpop.permute.xlu0 %1616
    %1619 = vrot.lane.b32.xlu0 %v1601, 104
    %v1620 = vpop.permute.xlu0 %1619
    %v1622 = vpack.c.bf16 %v1600, %v1600
    %v1623 = vpack.c.bf16 %v1604, %v1604
    %v1624 = vpack.c.bf16 %v1607, %v1607
    %v1625 = vpack.c.bf16 %v1610, %v1610
    %v1626 = vpack.c.bf16 %v1601, %v1601
    %v1627 = vpack.c.bf16 %v1614, %v1614
    %v1628 = vpack.c.bf16 %v1617, %v1617
    %v1629 = vpack.c.bf16 %v1620, %v1620
    %1631 = vrot.lane.b32.xlu0 %v1537, 120
    %v1632 = vpop.permute.xlu0 %1631
    %1634 = vrot.lane.b32.xlu0 %v1537, 112
    %v1635 = vpop.permute.xlu0 %1634
    %1637 = vrot.lane.b32.xlu0 %v1537, 104
    %v1638 = vpop.permute.xlu0 %1637
    %1641 = vrot.lane.b32.xlu0 %v1540, 120
    %v1642 = vpop.permute.xlu0 %1641
    %1644 = vrot.lane.b32.xlu0 %v1540, 112
    %v1645 = vpop.permute.xlu0 %1644
    %1647 = vrot.lane.b32.xlu0 %v1540, 104
    %v1648 = vpop.permute.xlu0 %1647
    %v1650 = vpack.c.bf16 %v1537, %v1537
    %v1651 = vpack.c.bf16 %v1632, %v1632
    %v1652 = vpack.c.bf16 %v1635, %v1635
    %v1653 = vpack.c.bf16 %v1638, %v1638
    %v1654 = vpack.c.bf16 %v1540, %v1540
    %v1655 = vpack.c.bf16 %v1642, %v1642
    %v1656 = vpack.c.bf16 %v1645, %v1645
    %v1657 = vpack.c.bf16 %v1648, %v1648
    %1659 = vrot.lane.b32.xlu0 %v1594, 120
    %v1660 = vpop.permute.xlu0 %1659
    %1662 = vrot.lane.b32.xlu0 %v1594, 112
    %v1663 = vpop.permute.xlu0 %1662
    %1665 = vrot.lane.b32.xlu0 %v1594, 104
    %v1666 = vpop.permute.xlu0 %1665
    %1669 = vrot.lane.b32.xlu0 %v1597, 120
    %v1670 = vpop.permute.xlu0 %1669
    %1672 = vrot.lane.b32.xlu0 %v1597, 112
    %v1673 = vpop.permute.xlu0 %1672
    %1675 = vrot.lane.b32.xlu0 %v1597, 104
    %v1676 = vpop.permute.xlu0 %1675
    %v1678 = vpack.c.bf16 %v1594, %v1594
    %v1679 = vpack.c.bf16 %v1660, %v1660
    %v1680 = vpack.c.bf16 %v1663, %v1663
    %v1681 = vpack.c.bf16 %v1666, %v1666
    %v1682 = vpack.c.bf16 %v1597, %v1597
    %v1683 = vpack.c.bf16 %v1670, %v1670
    %v1684 = vpack.c.bf16 %v1673, %v1673
    %v1685 = vpack.c.bf16 %v1676, %v1676
    %v1687 = vsel %vm425, %v1622, 0
    %v1690 = vsel %vm425, %v1650, 0
    %1692 = vmatprep.subr.bf16.mxu0 0
    %1693 = vmatpush1.bf16.xpose.msra.mxu0 %v1690
    %1694 = vmatprep.subr.bf16.mxu0 0
    %1695 = vmatpush1.bf16.xpose.msra.mxu0 0
    %1696 = vmatprep.subr.bf16.mxu0 0
    %1697 = vmatpush1.bf16.xpose.msra.mxu0 0
    %1698 = vmatprep.subr.bf16.mxu0 0
    %1699 = vmatpush1.bf16.xpose.msra.mxu0 0
    %1700 = vmatprep.subr.bf16.mxu0 0
    %1701 = vmatpush1.bf16.xpose.msra.mxu0 0
    %1702 = vmatprep.subr.bf16.mxu0 0
    %1703 = vmatpush1.bf16.xpose.msra.mxu0 0
    %1704 = vmatprep.subr.bf16.mxu0 0
    %1705 = vmatpush1.bf16.xpose.msra.mxu0 0
    %1706 = vmatprep.subr.bf16.mxu0 0
    %1707 = vmatpush1.bf16.xpose.msra.mxu0 0
    %1708 = vmatprep.subr.bf16.mxu0 0
    %1709 = vmatpush1.bf16.xpose.msra.mxu0 0
    %1710 = vmatprep.subr.bf16.mxu0 0
    %1711 = vmatpush1.bf16.xpose.msra.mxu0 0
    %1712 = vmatprep.subr.bf16.mxu0 0
    %1713 = vmatpush1.bf16.xpose.msra.mxu0 0
    %1714 = vmatprep.subr.bf16.mxu0 0
    %1715 = vmatpush1.bf16.xpose.msra.mxu0 0
    %1716 = vmatprep.subr.bf16.mxu0 0
    %1717 = vmatpush1.bf16.xpose.msra.mxu0 0
    %1718 = vmatprep.subr.bf16.mxu0 0
    %1719 = vmatpush1.bf16.xpose.msra.mxu0 0
    %1720 = vmatprep.subr.bf16.mxu0 0
    %1721 = vmatpush1.bf16.xpose.msra.mxu0 0
    %1722 = vmatprep.subr.bf16.mxu0 0
    %1723 = vmatpush1.bf16.xpose.msra.mxu0 0
    %1724 = vmatprep.mubr.bf16.mxu0 0
    %1725 = vmatmul.mubr.bf16.gmra.mrb[0].mxu0 %v1687
    %v1726 = vpop.f32.mrb[0].mxu0
    %v1727 = vadd.f32 %v94, %v1726
    %v1728 = vpop.f32.mrb[0].mxu0
    %v1729 = vpop.f32.mrb[0].mxu0
    %v1730 = vpop.f32.mrb[0].mxu0
    %1731 = vdwg.mxu0
    %v1733 = vsel %vm425, %v1623, 0
    %v1736 = vsel %vm425, %v1651, 0
    %1738 = vmatprep.subr.bf16.mxu0 0
    %1739 = vmatpush1.bf16.xpose.msra.mxu0 %v1736
    %1740 = vmatprep.subr.bf16.mxu0 0
    %1741 = vmatpush1.bf16.xpose.msra.mxu0 0
    %1742 = vmatprep.subr.bf16.mxu0 0
    %1743 = vmatpush1.bf16.xpose.msra.mxu0 0
    %1744 = vmatprep.subr.bf16.mxu0 0
    %1745 = vmatpush1.bf16.xpose.msra.mxu0 0
    %1746 = vmatprep.subr.bf16.mxu0 0
    %1747 = vmatpush1.bf16.xpose.msra.mxu0 0
    %1748 = vmatprep.subr.bf16.mxu0 0
    %1749 = vmatpush1.bf16.xpose.msra.mxu0 0
    %1750 = vmatprep.subr.bf16.mxu0 0
    %1751 = vmatpush1.bf16.xpose.msra.mxu0 0
    %1752 = vmatprep.subr.bf16.mxu0 0
    %1753 = vmatpush1.bf16.xpose.msra.mxu0 0
    %1754 = vmatprep.subr.bf16.mxu0 0
    %1755 = vmatpush1.bf16.xpose.msra.mxu0 0
    %1756 = vmatprep.subr.bf16.mxu0 0
    %1757 = vmatpush1.bf16.xpose.msra.mxu0 0
    %1758 = vmatprep.subr.bf16.mxu0 0
    %1759 = vmatpush1.bf16.xpose.msra.mxu0 0
    %1760 = vmatprep.subr.bf16.mxu0 0
    %1761 = vmatpush1.bf16.xpose.msra.mxu0 0
    %1762 = vmatprep.subr.bf16.mxu0 0
    %1763 = vmatpush1.bf16.xpose.msra.mxu0 0
    %1764 = vmatprep.subr.bf16.mxu0 0
    %1765 = vmatpush1.bf16.xpose.msra.mxu0 0
    %1766 = vmatprep.subr.bf16.mxu0 0
    %1767 = vmatpush1.bf16.xpose.msra.mxu0 0
    %1768 = vmatprep.subr.bf16.mxu0 0
    %1769 = vmatpush1.bf16.xpose.msra.mxu0 0
    %1770 = vmatprep.mubr.bf16.mxu0 0
    %1771 = vmatmul.mubr.bf16.gmra.mrb[0].mxu0 %v1733
    %v1772 = vpop.f32.mrb[0].mxu0
    %v1773 = vadd.f32 %v94, %v1772
    %v1774 = vpop.f32.mrb[0].mxu0
    %v1775 = vpop.f32.mrb[0].mxu0
    %v1776 = vpop.f32.mrb[0].mxu0
    %1777 = vdwg.mxu0
    %v1779 = vsel %vm425, %v1624, 0
    %v1782 = vsel %vm425, %v1652, 0
    %1784 = vmatprep.subr.bf16.mxu0 0
    %1785 = vmatpush1.bf16.xpose.msra.mxu0 %v1782
    %1786 = vmatprep.subr.bf16.mxu0 0
    %1787 = vmatpush1.bf16.xpose.msra.mxu0 0
    %1788 = vmatprep.subr.bf16.mxu0 0
    %1789 = vmatpush1.bf16.xpose.msra.mxu0 0
    %1790 = vmatprep.subr.bf16.mxu0 0
    %1791 = vmatpush1.bf16.xpose.msra.mxu0 0
    %1792 = vmatprep.subr.bf16.mxu0 0
    %1793 = vmatpush1.bf16.xpose.msra.mxu0 0
    %1794 = vmatprep.subr.bf16.mxu0 0
    %1795 = vmatpush1.bf16.xpose.msra.mxu0 0
    %1796 = vmatprep.subr.bf16.mxu0 0
    %1797 = vmatpush1.bf16.xpose.msra.mxu0 0
    %1798 = vmatprep.subr.bf16.mxu0 0
    %1799 = vmatpush1.bf16.xpose.msra.mxu0 0
    %1800 = vmatprep.subr.bf16.mxu0 0
    %1801 = vmatpush1.bf16.xpose.msra.mxu0 0
    %1802 = vmatprep.subr.bf16.mxu0 0
    %1803 = vmatpush1.bf16.xpose.msra.mxu0 0
    %1804 = vmatprep.subr.bf16.mxu0 0
    %1805 = vmatpush1.bf16.xpose.msra.mxu0 0
    %1806 = vmatprep.subr.bf16.mxu0 0
    %1807 = vmatpush1.bf16.xpose.msra.mxu0 0
    %1808 = vmatprep.subr.bf16.mxu0 0
    %1809 = vmatpush1.bf16.xpose.msra.mxu0 0
    %1810 = vmatprep.subr.bf16.mxu0 0
    %1811 = vmatpush1.bf16.xpose.msra.mxu0 0
    %1812 = vmatprep.subr.bf16.mxu0 0
    %1813 = vmatpush1.bf16.xpose.msra.mxu0 0
    %1814 = vmatprep.subr.bf16.mxu0 0
    %1815 = vmatpush1.bf16.xpose.msra.mxu0 0
    %1816 = vmatprep.mubr.bf16.mxu0 0
    %1817 = vmatmul.mubr.bf16.gmra.mrb[0].mxu0 %v1779
    %v1818 = vpop.f32.mrb[0].mxu0
    %v1819 = vadd.f32 %v94, %v1818
    %v1820 = vpop.f32.mrb[0].mxu0
    %v1821 = vpop.f32.mrb[0].mxu0
    %v1822 = vpop.f32.mrb[0].mxu0
    %1823 = vdwg.mxu0
    %v1825 = vsel %vm425, %v1625, 0
    %v1828 = vsel %vm425, %v1653, 0
    %1830 = vmatprep.subr.bf16.mxu0 0
    %1831 = vmatpush1.bf16.xpose.msra.mxu0 %v1828
    %1832 = vmatprep.subr.bf16.mxu0 0
    %1833 = vmatpush1.bf16.xpose.msra.mxu0 0
    %1834 = vmatprep.subr.bf16.mxu0 0
    %1835 = vmatpush1.bf16.xpose.msra.mxu0 0
    %1836 = vmatprep.subr.bf16.mxu0 0
    %1837 = vmatpush1.bf16.xpose.msra.mxu0 0
    %1838 = vmatprep.subr.bf16.mxu0 0
    %1839 = vmatpush1.bf16.xpose.msra.mxu0 0
    %1840 = vmatprep.subr.bf16.mxu0 0
    %1841 = vmatpush1.bf16.xpose.msra.mxu0 0
    %1842 = vmatprep.subr.bf16.mxu0 0
    %1843 = vmatpush1.bf16.xpose.msra.mxu0 0
    %1844 = vmatprep.subr.bf16.mxu0 0
    %1845 = vmatpush1.bf16.xpose.msra.mxu0 0
    %1846 = vmatprep.subr.bf16.mxu0 0
    %1847 = vmatpush1.bf16.xpose.msra.mxu0 0
    %1848 = vmatprep.subr.bf16.mxu0 0
    %1849 = vmatpush1.bf16.xpose.msra.mxu0 0
    %1850 = vmatprep.subr.bf16.mxu0 0
    %1851 = vmatpush1.bf16.xpose.msra.mxu0 0
    %1852 = vmatprep.subr.bf16.mxu0 0
    %1853 = vmatpush1.bf16.xpose.msra.mxu0 0
    %1854 = vmatprep.subr.bf16.mxu0 0
    %1855 = vmatpush1.bf16.xpose.msra.mxu0 0
    %1856 = vmatprep.subr.bf16.mxu0 0
    %1857 = vmatpush1.bf16.xpose.msra.mxu0 0
    %1858 = vmatprep.subr.bf16.mxu0 0
    %1859 = vmatpush1.bf16.xpose.msra.mxu0 0
    %1860 = vmatprep.subr.bf16.mxu0 0
    %1861 = vmatpush1.bf16.xpose.msra.mxu0 0
    %1862 = vmatprep.mubr.bf16.mxu0 0
    %1863 = vmatmul.mubr.bf16.gmra.mrb[0].mxu0 %v1825
    %v1864 = vpop.f32.mrb[0].mxu0
    %v1865 = vadd.f32 %v94, %v1864
    %v1866 = vpop.f32.mrb[0].mxu0
    %v1867 = vpop.f32.mrb[0].mxu0
    %v1868 = vpop.f32.mrb[0].mxu0
    %1869 = vdwg.mxu0
    %v1871 = vsel %vm425, %v1626, 0
    %v1874 = vsel %vm425, %v1654, 0
    %1876 = vmatprep.subr.bf16.mxu0 0
    %1877 = vmatpush1.bf16.xpose.msra.mxu0 %v1874
    %1878 = vmatprep.subr.bf16.mxu0 0
    %1879 = vmatpush1.bf16.xpose.msra.mxu0 0
    %1880 = vmatprep.subr.bf16.mxu0 0
    %1881 = vmatpush1.bf16.xpose.msra.mxu0 0
    %1882 = vmatprep.subr.bf16.mxu0 0
    %1883 = vmatpush1.bf16.xpose.msra.mxu0 0
    %1884 = vmatprep.subr.bf16.mxu0 0
    %1885 = vmatpush1.bf16.xpose.msra.mxu0 0
    %1886 = vmatprep.subr.bf16.mxu0 0
    %1887 = vmatpush1.bf16.xpose.msra.mxu0 0
    %1888 = vmatprep.subr.bf16.mxu0 0
    %1889 = vmatpush1.bf16.xpose.msra.mxu0 0
    %1890 = vmatprep.subr.bf16.mxu0 0
    %1891 = vmatpush1.bf16.xpose.msra.mxu0 0
    %1892 = vmatprep.subr.bf16.mxu0 0
    %1893 = vmatpush1.bf16.xpose.msra.mxu0 0
    %1894 = vmatprep.subr.bf16.mxu0 0
    %1895 = vmatpush1.bf16.xpose.msra.mxu0 0
    %1896 = vmatprep.subr.bf16.mxu0 0
    %1897 = vmatpush1.bf16.xpose.msra.mxu0 0
    %1898 = vmatprep.subr.bf16.mxu0 0
    %1899 = vmatpush1.bf16.xpose.msra.mxu0 0
    %1900 = vmatprep.subr.bf16.mxu0 0
    %1901 = vmatpush1.bf16.xpose.msra.mxu0 0
    %1902 = vmatprep.subr.bf16.mxu0 0
    %1903 = vmatpush1.bf16.xpose.msra.mxu0 0
    %1904 = vmatprep.subr.bf16.mxu0 0
    %1905 = vmatpush1.bf16.xpose.msra.mxu0 0
    %1906 = vmatprep.subr.bf16.mxu0 0
    %1907 = vmatpush1.bf16.xpose.msra.mxu0 0
    %1908 = vmatprep.mubr.bf16.mxu0 0
    %1909 = vmatmul.mubr.bf16.gmra.mrb[0].mxu0 %v1871
    %v1910 = vpop.f32.mrb[0].mxu0
    %v1911 = vadd.f32 %v94, %v1910
    %v1912 = vpop.f32.mrb[0].mxu0
    %v1913 = vpop.f32.mrb[0].mxu0
    %v1914 = vpop.f32.mrb[0].mxu0
    %1915 = vdwg.mxu0
    %v1917 = vsel %vm425, %v1627, 0
    %v1920 = vsel %vm425, %v1655, 0
    %1922 = vmatprep.subr.bf16.mxu0 0
    %1923 = vmatpush1.bf16.xpose.msra.mxu0 %v1920
    %1924 = vmatprep.subr.bf16.mxu0 0
    %1925 = vmatpush1.bf16.xpose.msra.mxu0 0
    %1926 = vmatprep.subr.bf16.mxu0 0
    %1927 = vmatpush1.bf16.xpose.msra.mxu0 0
    %1928 = vmatprep.subr.bf16.mxu0 0
    %1929 = vmatpush1.bf16.xpose.msra.mxu0 0
    %1930 = vmatprep.subr.bf16.mxu0 0
    %1931 = vmatpush1.bf16.xpose.msra.mxu0 0
    %1932 = vmatprep.subr.bf16.mxu0 0
    %1933 = vmatpush1.bf16.xpose.msra.mxu0 0
    %1934 = vmatprep.subr.bf16.mxu0 0
    %1935 = vmatpush1.bf16.xpose.msra.mxu0 0
    %1936 = vmatprep.subr.bf16.mxu0 0
    %1937 = vmatpush1.bf16.xpose.msra.mxu0 0
    %1938 = vmatprep.subr.bf16.mxu0 0
    %1939 = vmatpush1.bf16.xpose.msra.mxu0 0
    %1940 = vmatprep.subr.bf16.mxu0 0
    %1941 = vmatpush1.bf16.xpose.msra.mxu0 0
    %1942 = vmatprep.subr.bf16.mxu0 0
    %1943 = vmatpush1.bf16.xpose.msra.mxu0 0
    %1944 = vmatprep.subr.bf16.mxu0 0
    %1945 = vmatpush1.bf16.xpose.msra.mxu0 0
    %1946 = vmatprep.subr.bf16.mxu0 0
    %1947 = vmatpush1.bf16.xpose.msra.mxu0 0
    %1948 = vmatprep.subr.bf16.mxu0 0
    %1949 = vmatpush1.bf16.xpose.msra.mxu0 0
    %1950 = vmatprep.subr.bf16.mxu0 0
    %1951 = vmatpush1.bf16.xpose.msra.mxu0 0
    %1952 = vmatprep.subr.bf16.mxu0 0
    %1953 = vmatpush1.bf16.xpose.msra.mxu0 0
    %1954 = vmatprep.mubr.bf16.mxu0 0
    %1955 = vmatmul.mubr.bf16.gmra.mrb[0].mxu0 %v1917
    %v1956 = vpop.f32.mrb[0].mxu0
    %v1957 = vadd.f32 %v94, %v1956
    %v1958 = vpop.f32.mrb[0].mxu0
    %v1959 = vpop.f32.mrb[0].mxu0
    %v1960 = vpop.f32.mrb[0].mxu0
    %1961 = vdwg.mxu0
    %v1963 = vsel %vm425, %v1628, 0
    %v1966 = vsel %vm425, %v1656, 0
    %1968 = vmatprep.subr.bf16.mxu0 0
    %1969 = vmatpush1.bf16.xpose.msra.mxu0 %v1966
    %1970 = vmatprep.subr.bf16.mxu0 0
    %1971 = vmatpush1.bf16.xpose.msra.mxu0 0
    %1972 = vmatprep.subr.bf16.mxu0 0
    %1973 = vmatpush1.bf16.xpose.msra.mxu0 0
    %1974 = vmatprep.subr.bf16.mxu0 0
    %1975 = vmatpush1.bf16.xpose.msra.mxu0 0
    %1976 = vmatprep.subr.bf16.mxu0 0
    %1977 = vmatpush1.bf16.xpose.msra.mxu0 0
    %1978 = vmatprep.subr.bf16.mxu0 0
    %1979 = vmatpush1.bf16.xpose.msra.mxu0 0
    %1980 = vmatprep.subr.bf16.mxu0 0
    %1981 = vmatpush1.bf16.xpose.msra.mxu0 0
    %1982 = vmatprep.subr.bf16.mxu0 0
    %1983 = vmatpush1.bf16.xpose.msra.mxu0 0
    %1984 = vmatprep.subr.bf16.mxu0 0
    %1985 = vmatpush1.bf16.xpose.msra.mxu0 0
    %1986 = vmatprep.subr.bf16.mxu0 0
    %1987 = vmatpush1.bf16.xpose.msra.mxu0 0
    %1988 = vmatprep.subr.bf16.mxu0 0
    %1989 = vmatpush1.bf16.xpose.msra.mxu0 0
    %1990 = vmatprep.subr.bf16.mxu0 0
    %1991 = vmatpush1.bf16.xpose.msra.mxu0 0
    %1992 = vmatprep.subr.bf16.mxu0 0
    %1993 = vmatpush1.bf16.xpose.msra.mxu0 0
    %1994 = vmatprep.subr.bf16.mxu0 0
    %1995 = vmatpush1.bf16.xpose.msra.mxu0 0
    %1996 = vmatprep.subr.bf16.mxu0 0
    %1997 = vmatpush1.bf16.xpose.msra.mxu0 0
    %1998 = vmatprep.subr.bf16.mxu0 0
    %1999 = vmatpush1.bf16.xpose.msra.mxu0 0
    %2000 = vmatprep.mubr.bf16.mxu0 0
    %2001 = vmatmul.mubr.bf16.gmra.mrb[0].mxu0 %v1963
    %v2002 = vpop.f32.mrb[0].mxu0
    %v2003 = vadd.f32 %v94, %v2002
    %v2004 = vpop.f32.mrb[0].mxu0
    %v2005 = vpop.f32.mrb[0].mxu0
    %v2006 = vpop.f32.mrb[0].mxu0
    %2007 = vdwg.mxu0
    %v2009 = vsel %vm425, %v1629, 0
    %v2012 = vsel %vm425, %v1657, 0
    %2014 = vmatprep.subr.bf16.mxu0 0
    %2015 = vmatpush1.bf16.xpose.msra.mxu0 %v2012
    %2016 = vmatprep.subr.bf16.mxu0 0
    %2017 = vmatpush1.bf16.xpose.msra.mxu0 0
    %2018 = vmatprep.subr.bf16.mxu0 0
    %2019 = vmatpush1.bf16.xpose.msra.mxu0 0
    %2020 = vmatprep.subr.bf16.mxu0 0
    %2021 = vmatpush1.bf16.xpose.msra.mxu0 0
    %2022 = vmatprep.subr.bf16.mxu0 0
    %2023 = vmatpush1.bf16.xpose.msra.mxu0 0
    %2024 = vmatprep.subr.bf16.mxu0 0
    %2025 = vmatpush1.bf16.xpose.msra.mxu0 0
    %2026 = vmatprep.subr.bf16.mxu0 0
    %2027 = vmatpush1.bf16.xpose.msra.mxu0 0
    %2028 = vmatprep.subr.bf16.mxu0 0
    %2029 = vmatpush1.bf16.xpose.msra.mxu0 0
    %2030 = vmatprep.subr.bf16.mxu0 0
    %2031 = vmatpush1.bf16.xpose.msra.mxu0 0
    %2032 = vmatprep.subr.bf16.mxu0 0
    %2033 = vmatpush1.bf16.xpose.msra.mxu0 0
    %2034 = vmatprep.subr.bf16.mxu0 0
    %2035 = vmatpush1.bf16.xpose.msra.mxu0 0
    %2036 = vmatprep.subr.bf16.mxu0 0
    %2037 = vmatpush1.bf16.xpose.msra.mxu0 0
    %2038 = vmatprep.subr.bf16.mxu0 0
    %2039 = vmatpush1.bf16.xpose.msra.mxu0 0
    %2040 = vmatprep.subr.bf16.mxu0 0
    %2041 = vmatpush1.bf16.xpose.msra.mxu0 0
    %2042 = vmatprep.subr.bf16.mxu0 0
    %2043 = vmatpush1.bf16.xpose.msra.mxu0 0
    %2044 = vmatprep.subr.bf16.mxu0 0
    %2045 = vmatpush1.bf16.xpose.msra.mxu0 0
    %2046 = vmatprep.mubr.bf16.mxu0 0
    %2047 = vmatmul.mubr.bf16.gmra.mrb[0].mxu0 %v2009
    %v2048 = vpop.f32.mrb[0].mxu0
    %v2049 = vadd.f32 %v94, %v2048
    %v2050 = vpop.f32.mrb[0].mxu0
    %v2051 = vpop.f32.mrb[0].mxu0
    %v2052 = vpop.f32.mrb[0].mxu0
    %2053 = vdwg.mxu0
    %v2054 = vsel %vm425, %v1727, -inf
    %2055 = vmax.xlane.f32.xlu0 %v2054
    %v2056 = vpop.xlane.xlu0 %2055
    %v2057 = vsel %vm425, %v1773, -inf
    %2058 = vmax.xlane.f32.xlu0 %v2057
    %v2059 = vpop.xlane.xlu0 %2058
    %v2060 = vsel %vm425, %v1819, -inf
    %2061 = vmax.xlane.f32.xlu0 %v2060
    %v2062 = vpop.xlane.xlu0 %2061
    %v2063 = vsel %vm425, %v1865, -inf
    %2064 = vmax.xlane.f32.xlu0 %v2063
    %v2065 = vpop.xlane.xlu0 %2064
    %v2066 = vsel %vm425, %v1911, -inf
    %2067 = vmax.xlane.f32.xlu0 %v2066
    %v2068 = vpop.xlane.xlu0 %2067
    %v2069 = vsel %vm425, %v1957, -inf
    %2070 = vmax.xlane.f32.xlu0 %v2069
    %v2071 = vpop.xlane.xlu0 %2070
    %v2072 = vsel %vm425, %v2003, -inf
    %2073 = vmax.xlane.f32.xlu0 %v2072
    %v2074 = vpop.xlane.xlu0 %2073
    %v2075 = vsel %vm425, %v2049, -inf
    %2076 = vmax.xlane.f32.xlu0 %v2075
    %v2077 = vpop.xlane.xlu0 %2076
    %v2078 = vsub.f32 %v1727, %v2056
    %v2079 = vsub.f32 %v1773, %v2059
    %v2080 = vsub.f32 %v1819, %v2062
    %v2081 = vsub.f32 %v1865, %v2065
    %v2082 = vsub.f32 %v1911, %v2068
    %v2083 = vsub.f32 %v1957, %v2071
    %v2084 = vsub.f32 %v2003, %v2074
    %v2085 = vsub.f32 %v2049, %v2077
    %v2086 = vmul.f32 %v2078, 1.442695
    %v2087 = vpow.pop %v2086
    %v2088 = vmul.f32 %v2079, 1.442695
    %v2089 = vpow.pop %v2088
    %v2090 = vmul.f32 %v2080, 1.442695
    %v2091 = vpow.pop %v2090
    %v2092 = vmul.f32 %v2081, 1.442695
    %v2093 = vpow.pop %v2092
    %v2094 = vmul.f32 %v2082, 1.442695
    %v2095 = vpow.pop %v2094
    %v2096 = vmul.f32 %v2083, 1.442695
    %v2097 = vpow.pop %v2096
    %v2098 = vmul.f32 %v2084, 1.442695
    %v2099 = vpow.pop %v2098
    %v2100 = vmul.f32 %v2085, 1.442695
    %v2101 = vpow.pop %v2100
    %v2102 = vsel %vm425, %v2087, 0.0
    %2103 = vadd.xlane.f32.xlu0 %v2102
    %v2104 = vpop.xlane.xlu0 %2103
    %v2105 = vsel %vm425, %v2089, 0.0
    %2106 = vadd.xlane.f32.xlu0 %v2105
    %v2107 = vpop.xlane.xlu0 %2106
    %v2108 = vsel %vm425, %v2091, 0.0
    %2109 = vadd.xlane.f32.xlu0 %v2108
    %v2110 = vpop.xlane.xlu0 %2109
    %v2111 = vsel %vm425, %v2093, 0.0
    %2112 = vadd.xlane.f32.xlu0 %v2111
    %v2113 = vpop.xlane.xlu0 %2112
    %v2114 = vsel %vm425, %v2095, 0.0
    %2115 = vadd.xlane.f32.xlu0 %v2114
    %v2116 = vpop.xlane.xlu0 %2115
    %v2117 = vsel %vm425, %v2097, 0.0
    %2118 = vadd.xlane.f32.xlu0 %v2117
    %v2119 = vpop.xlane.xlu0 %2118
    %v2120 = vsel %vm425, %v2099, 0.0
    %2121 = vadd.xlane.f32.xlu0 %v2120
    %v2122 = vpop.xlane.xlu0 %2121
    %v2123 = vsel %vm425, %v2101, 0.0
    %2124 = vadd.xlane.f32.xlu0 %v2123
    %v2125 = vpop.xlane.xlu0 %2124
    %v2126 = vrcp.pop %v2104
    %v2127 = vrcp.pop %v2107
    %v2128 = vrcp.pop %v2110
    %v2129 = vrcp.pop %v2113
    %v2130 = vrcp.pop %v2116
    %v2131 = vrcp.pop %v2119
    %v2132 = vrcp.pop %v2122
    %v2133 = vrcp.pop %v2125
    %v2134 = vmul.f32 %v2087, %v2126
    %v2135 = vmul.f32 %v2089, %v2127
    %v2136 = vmul.f32 %v2091, %v2128
    %v2137 = vmul.f32 %v2093, %v2129
    %v2138 = vmul.f32 %v2095, %v2130
    %v2139 = vmul.f32 %v2097, %v2131
    %v2140 = vmul.f32 %v2099, %v2132
    %v2141 = vmul.f32 %v2101, %v2133
    %v2142 = vpack.c.bf16 %v2134, %v2134
    %v2143 = vpack.c.bf16 %v2135, %v2135
    %v2144 = vpack.c.bf16 %v2136, %v2136
    %v2145 = vpack.c.bf16 %v2137, %v2137
    %v2146 = vpack.c.bf16 %v2138, %v2138
    %v2147 = vpack.c.bf16 %v2139, %v2139
    %v2148 = vpack.c.bf16 %v2140, %v2140
    %v2149 = vpack.c.bf16 %v2141, %v2141
    %v2151 = vsel %vm425, %v2142, 0
    %v2154 = vsel %vm893, %v1678, 0
    %2156 = vmatprep.subr.bf16.mxu0 0
    %2157 = vmatpush1.bf16.msra.mxu0 %v2154
    %2158 = vmatprep.subr.bf16.mxu0 0
    %2159 = vmatpush1.bf16.msra.mxu0 0
    %2160 = vmatprep.subr.bf16.mxu0 0
    %2161 = vmatpush1.bf16.msra.mxu0 0
    %2162 = vmatprep.subr.bf16.mxu0 0
    %2163 = vmatpush1.bf16.msra.mxu0 0
    %2164 = vmatprep.subr.bf16.mxu0 0
    %2165 = vmatpush1.bf16.msra.mxu0 0
    %2166 = vmatprep.subr.bf16.mxu0 0
    %2167 = vmatpush1.bf16.msra.mxu0 0
    %2168 = vmatprep.subr.bf16.mxu0 0
    %2169 = vmatpush1.bf16.msra.mxu0 0
    %2170 = vmatprep.subr.bf16.mxu0 0
    %2171 = vmatpush1.bf16.msra.mxu0 0
    %2172 = vmatprep.subr.bf16.mxu0 0
    %2173 = vmatpush1.bf16.msra.mxu0 0
    %2174 = vmatprep.subr.bf16.mxu0 0
    %2175 = vmatpush1.bf16.msra.mxu0 0
    %2176 = vmatprep.subr.bf16.mxu0 0
    %2177 = vmatpush1.bf16.msra.mxu0 0
    %2178 = vmatprep.subr.bf16.mxu0 0
    %2179 = vmatpush1.bf16.msra.mxu0 0
    %2180 = vmatprep.subr.bf16.mxu0 0
    %2181 = vmatpush1.bf16.msra.mxu0 0
    %2182 = vmatprep.subr.bf16.mxu0 0
    %2183 = vmatpush1.bf16.msra.mxu0 0
    %2184 = vmatprep.subr.bf16.mxu0 0
    %2185 = vmatpush1.bf16.msra.mxu0 0
    %2186 = vmatprep.subr.bf16.mxu0 0
    %2187 = vmatpush1.bf16.msra.mxu0 0
    %2188 = vmatprep.mubr.bf16.mxu0 0
    %2189 = vmatmul.mubr.bf16.gmra.mrb[0].mxu0 %v2151
    %v2190 = vpop.f32.mrb[0].mxu0
    %v2191 = vadd.f32 0.0, %v2190
    %v2192 = vpop.f32.mrb[0].mxu0
    %v2193 = vpop.f32.mrb[0].mxu0
    %v2194 = vpop.f32.mrb[0].mxu0
    %2195 = vdwg.mxu0
    %v2197 = vsel %vm425, %v2143, 0
    %v2200 = vsel %vm893, %v1679, 0
    %2202 = vmatprep.subr.bf16.mxu0 0
    %2203 = vmatpush1.bf16.msra.mxu0 %v2200
    %2204 = vmatprep.subr.bf16.mxu0 0
    %2205 = vmatpush1.bf16.msra.mxu0 0
    %2206 = vmatprep.subr.bf16.mxu0 0
    %2207 = vmatpush1.bf16.msra.mxu0 0
    %2208 = vmatprep.subr.bf16.mxu0 0
    %2209 = vmatpush1.bf16.msra.mxu0 0
    %2210 = vmatprep.subr.bf16.mxu0 0
    %2211 = vmatpush1.bf16.msra.mxu0 0
    %2212 = vmatprep.subr.bf16.mxu0 0
    %2213 = vmatpush1.bf16.msra.mxu0 0
    %2214 = vmatprep.subr.bf16.mxu0 0
    %2215 = vmatpush1.bf16.msra.mxu0 0
    %2216 = vmatprep.subr.bf16.mxu0 0
    %2217 = vmatpush1.bf16.msra.mxu0 0
    %2218 = vmatprep.subr.bf16.mxu0 0
    %2219 = vmatpush1.bf16.msra.mxu0 0
    %2220 = vmatprep.subr.bf16.mxu0 0
    %2221 = vmatpush1.bf16.msra.mxu0 0
    %2222 = vmatprep.subr.bf16.mxu0 0
    %2223 = vmatpush1.bf16.msra.mxu0 0
    %2224 = vmatprep.subr.bf16.mxu0 0
    %2225 = vmatpush1.bf16.msra.mxu0 0
    %2226 = vmatprep.subr.bf16.mxu0 0
    %2227 = vmatpush1.bf16.msra.mxu0 0
    %2228 = vmatprep.subr.bf16.mxu0 0
    %2229 = vmatpush1.bf16.msra.mxu0 0
    %2230 = vmatprep.subr.bf16.mxu0 0
    %2231 = vmatpush1.bf16.msra.mxu0 0
    %2232 = vmatprep.subr.bf16.mxu0 0
    %2233 = vmatpush1.bf16.msra.mxu0 0
    %2234 = vmatprep.mubr.bf16.mxu0 0
    %2235 = vmatmul.mubr.bf16.gmra.mrb[0].mxu0 %v2197
    %v2236 = vpop.f32.mrb[0].mxu0
    %v2237 = vadd.f32 0.0, %v2236
    %v2238 = vpop.f32.mrb[0].mxu0
    %v2239 = vpop.f32.mrb[0].mxu0
    %v2240 = vpop.f32.mrb[0].mxu0
    %2241 = vdwg.mxu0
    %v2243 = vsel %vm425, %v2144, 0
    %v2246 = vsel %vm893, %v1680, 0
    %2248 = vmatprep.subr.bf16.mxu0 0
    %2249 = vmatpush1.bf16.msra.mxu0 %v2246
    %2250 = vmatprep.subr.bf16.mxu0 0
    %2251 = vmatpush1.bf16.msra.mxu0 0
    %2252 = vmatprep.subr.bf16.mxu0 0
    %2253 = vmatpush1.bf16.msra.mxu0 0
    %2254 = vmatprep.subr.bf16.mxu0 0
    %2255 = vmatpush1.bf16.msra.mxu0 0
    %2256 = vmatprep.subr.bf16.mxu0 0
    %2257 = vmatpush1.bf16.msra.mxu0 0
    %2258 = vmatprep.subr.bf16.mxu0 0
    %2259 = vmatpush1.bf16.msra.mxu0 0
    %2260 = vmatprep.subr.bf16.mxu0 0
    %2261 = vmatpush1.bf16.msra.mxu0 0
    %2262 = vmatprep.subr.bf16.mxu0 0
    %2263 = vmatpush1.bf16.msra.mxu0 0
    %2264 = vmatprep.subr.bf16.mxu0 0
    %2265 = vmatpush1.bf16.msra.mxu0 0
    %2266 = vmatprep.subr.bf16.mxu0 0
    %2267 = vmatpush1.bf16.msra.mxu0 0
    %2268 = vmatprep.subr.bf16.mxu0 0
    %2269 = vmatpush1.bf16.msra.mxu0 0
    %2270 = vmatprep.subr.bf16.mxu0 0
    %2271 = vmatpush1.bf16.msra.mxu0 0
    %2272 = vmatprep.subr.bf16.mxu0 0
    %2273 = vmatpush1.bf16.msra.mxu0 0
    %2274 = vmatprep.subr.bf16.mxu0 0
    %2275 = vmatpush1.bf16.msra.mxu0 0
    %2276 = vmatprep.subr.bf16.mxu0 0
    %2277 = vmatpush1.bf16.msra.mxu0 0
    %2278 = vmatprep.subr.bf16.mxu0 0
    %2279 = vmatpush1.bf16.msra.mxu0 0
    %2280 = vmatprep.mubr.bf16.mxu0 0
    %2281 = vmatmul.mubr.bf16.gmra.mrb[0].mxu0 %v2243
    %v2282 = vpop.f32.mrb[0].mxu0
    %v2283 = vadd.f32 0.0, %v2282
    %v2284 = vpop.f32.mrb[0].mxu0
    %v2285 = vpop.f32.mrb[0].mxu0
    %v2286 = vpop.f32.mrb[0].mxu0
    %2287 = vdwg.mxu0
    %v2289 = vsel %vm425, %v2145, 0
    %v2292 = vsel %vm893, %v1681, 0
    %2294 = vmatprep.subr.bf16.mxu0 0
    %2295 = vmatpush1.bf16.msra.mxu0 %v2292
    %2296 = vmatprep.subr.bf16.mxu0 0
    %2297 = vmatpush1.bf16.msra.mxu0 0
    %2298 = vmatprep.subr.bf16.mxu0 0
    %2299 = vmatpush1.bf16.msra.mxu0 0
    %2300 = vmatprep.subr.bf16.mxu0 0
    %2301 = vmatpush1.bf16.msra.mxu0 0
    %2302 = vmatprep.subr.bf16.mxu0 0
    %2303 = vmatpush1.bf16.msra.mxu0 0
    %2304 = vmatprep.subr.bf16.mxu0 0
    %2305 = vmatpush1.bf16.msra.mxu0 0
    %2306 = vmatprep.subr.bf16.mxu0 0
    %2307 = vmatpush1.bf16.msra.mxu0 0
    %2308 = vmatprep.subr.bf16.mxu0 0
    %2309 = vmatpush1.bf16.msra.mxu0 0
    %2310 = vmatprep.subr.bf16.mxu0 0
    %2311 = vmatpush1.bf16.msra.mxu0 0
    %2312 = vmatprep.subr.bf16.mxu0 0
    %2313 = vmatpush1.bf16.msra.mxu0 0
    %2314 = vmatprep.subr.bf16.mxu0 0
    %2315 = vmatpush1.bf16.msra.mxu0 0
    %2316 = vmatprep.subr.bf16.mxu0 0
    %2317 = vmatpush1.bf16.msra.mxu0 0
    %2318 = vmatprep.subr.bf16.mxu0 0
    %2319 = vmatpush1.bf16.msra.mxu0 0
    %2320 = vmatprep.subr.bf16.mxu0 0
    %2321 = vmatpush1.bf16.msra.mxu0 0
    %2322 = vmatprep.subr.bf16.mxu0 0
    %2323 = vmatpush1.bf16.msra.mxu0 0
    %2324 = vmatprep.subr.bf16.mxu0 0
    %2325 = vmatpush1.bf16.msra.mxu0 0
    %2326 = vmatprep.mubr.bf16.mxu0 0
    %2327 = vmatmul.mubr.bf16.gmra.mrb[0].mxu0 %v2289
    %v2328 = vpop.f32.mrb[0].mxu0
    %v2329 = vadd.f32 0.0, %v2328
    %v2330 = vpop.f32.mrb[0].mxu0
    %v2331 = vpop.f32.mrb[0].mxu0
    %v2332 = vpop.f32.mrb[0].mxu0
    %2333 = vdwg.mxu0
    %v2335 = vsel %vm425, %v2146, 0
    %v2338 = vsel %vm893, %v1682, 0
    %2340 = vmatprep.subr.bf16.mxu0 0
    %2341 = vmatpush1.bf16.msra.mxu0 %v2338
    %2342 = vmatprep.subr.bf16.mxu0 0
    %2343 = vmatpush1.bf16.msra.mxu0 0
    %2344 = vmatprep.subr.bf16.mxu0 0
    %2345 = vmatpush1.bf16.msra.mxu0 0
    %2346 = vmatprep.subr.bf16.mxu0 0
    %2347 = vmatpush1.bf16.msra.mxu0 0
    %2348 = vmatprep.subr.bf16.mxu0 0
    %2349 = vmatpush1.bf16.msra.mxu0 0
    %2350 = vmatprep.subr.bf16.mxu0 0
    %2351 = vmatpush1.bf16.msra.mxu0 0
    %2352 = vmatprep.subr.bf16.mxu0 0
    %2353 = vmatpush1.bf16.msra.mxu0 0
    %2354 = vmatprep.subr.bf16.mxu0 0
    %2355 = vmatpush1.bf16.msra.mxu0 0
    %2356 = vmatprep.subr.bf16.mxu0 0
    %2357 = vmatpush1.bf16.msra.mxu0 0
    %2358 = vmatprep.subr.bf16.mxu0 0
    %2359 = vmatpush1.bf16.msra.mxu0 0
    %2360 = vmatprep.subr.bf16.mxu0 0
    %2361 = vmatpush1.bf16.msra.mxu0 0
    %2362 = vmatprep.subr.bf16.mxu0 0
    %2363 = vmatpush1.bf16.msra.mxu0 0
    %2364 = vmatprep.subr.bf16.mxu0 0
    %2365 = vmatpush1.bf16.msra.mxu0 0
    %2366 = vmatprep.subr.bf16.mxu0 0
    %2367 = vmatpush1.bf16.msra.mxu0 0
    %2368 = vmatprep.subr.bf16.mxu0 0
    %2369 = vmatpush1.bf16.msra.mxu0 0
    %2370 = vmatprep.subr.bf16.mxu0 0
    %2371 = vmatpush1.bf16.msra.mxu0 0
    %2372 = vmatprep.mubr.bf16.mxu0 0
    %2373 = vmatmul.mubr.bf16.gmra.mrb[0].mxu0 %v2335
    %v2374 = vpop.f32.mrb[0].mxu0
    %v2375 = vadd.f32 0.0, %v2374
    %v2376 = vpop.f32.mrb[0].mxu0
    %v2377 = vpop.f32.mrb[0].mxu0
    %v2378 = vpop.f32.mrb[0].mxu0
    %2379 = vdwg.mxu0
    %v2381 = vsel %vm425, %v2147, 0
    %v2384 = vsel %vm893, %v1683, 0
    %2386 = vmatprep.subr.bf16.mxu0 0
    %2387 = vmatpush1.bf16.msra.mxu0 %v2384
    %2388 = vmatprep.subr.bf16.mxu0 0
    %2389 = vmatpush1.bf16.msra.mxu0 0
    %2390 = vmatprep.subr.bf16.mxu0 0
    %2391 = vmatpush1.bf16.msra.mxu0 0
    %2392 = vmatprep.subr.bf16.mxu0 0
    %2393 = vmatpush1.bf16.msra.mxu0 0
    %2394 = vmatprep.subr.bf16.mxu0 0
    %2395 = vmatpush1.bf16.msra.mxu0 0
    %2396 = vmatprep.subr.bf16.mxu0 0
    %2397 = vmatpush1.bf16.msra.mxu0 0
    %2398 = vmatprep.subr.bf16.mxu0 0
    %2399 = vmatpush1.bf16.msra.mxu0 0
    %2400 = vmatprep.subr.bf16.mxu0 0
    %2401 = vmatpush1.bf16.msra.mxu0 0
    %2402 = vmatprep.subr.bf16.mxu0 0
    %2403 = vmatpush1.bf16.msra.mxu0 0
    %2404 = vmatprep.subr.bf16.mxu0 0
    %2405 = vmatpush1.bf16.msra.mxu0 0
    %2406 = vmatprep.subr.bf16.mxu0 0
    %2407 = vmatpush1.bf16.msra.mxu0 0
    %2408 = vmatprep.subr.bf16.mxu0 0
    %2409 = vmatpush1.bf16.msra.mxu0 0
    %2410 = vmatprep.subr.bf16.mxu0 0
    %2411 = vmatpush1.bf16.msra.mxu0 0
    %2412 = vmatprep.subr.bf16.mxu0 0
    %2413 = vmatpush1.bf16.msra.mxu0 0
    %2414 = vmatprep.subr.bf16.mxu0 0
    %2415 = vmatpush1.bf16.msra.mxu0 0
    %2416 = vmatprep.subr.bf16.mxu0 0
    %2417 = vmatpush1.bf16.msra.mxu0 0
    %2418 = vmatprep.mubr.bf16.mxu0 0
    %2419 = vmatmul.mubr.bf16.gmra.mrb[0].mxu0 %v2381
    %v2420 = vpop.f32.mrb[0].mxu0
    %v2421 = vadd.f32 0.0, %v2420
    %v2422 = vpop.f32.mrb[0].mxu0
    %v2423 = vpop.f32.mrb[0].mxu0
    %v2424 = vpop.f32.mrb[0].mxu0
    %2425 = vdwg.mxu0
    %v2427 = vsel %vm425, %v2148, 0
    %v2430 = vsel %vm893, %v1684, 0
    %2432 = vmatprep.subr.bf16.mxu0 0
    %2433 = vmatpush1.bf16.msra.mxu0 %v2430
    %2434 = vmatprep.subr.bf16.mxu0 0
    %2435 = vmatpush1.bf16.msra.mxu0 0
    %2436 = vmatprep.subr.bf16.mxu0 0
    %2437 = vmatpush1.bf16.msra.mxu0 0
    %2438 = vmatprep.subr.bf16.mxu0 0
    %2439 = vmatpush1.bf16.msra.mxu0 0
    %2440 = vmatprep.subr.bf16.mxu0 0
    %2441 = vmatpush1.bf16.msra.mxu0 0
    %2442 = vmatprep.subr.bf16.mxu0 0
    %2443 = vmatpush1.bf16.msra.mxu0 0
    %2444 = vmatprep.subr.bf16.mxu0 0
    %2445 = vmatpush1.bf16.msra.mxu0 0
    %2446 = vmatprep.subr.bf16.mxu0 0
    %2447 = vmatpush1.bf16.msra.mxu0 0
    %2448 = vmatprep.subr.bf16.mxu0 0
    %2449 = vmatpush1.bf16.msra.mxu0 0
    %2450 = vmatprep.subr.bf16.mxu0 0
    %2451 = vmatpush1.bf16.msra.mxu0 0
    %2452 = vmatprep.subr.bf16.mxu0 0
    %2453 = vmatpush1.bf16.msra.mxu0 0
    %2454 = vmatprep.subr.bf16.mxu0 0
    %2455 = vmatpush1.bf16.msra.mxu0 0
    %2456 = vmatprep.subr.bf16.mxu0 0
    %2457 = vmatpush1.bf16.msra.mxu0 0
    %2458 = vmatprep.subr.bf16.mxu0 0
    %2459 = vmatpush1.bf16.msra.mxu0 0
    %2460 = vmatprep.subr.bf16.mxu0 0
    %2461 = vmatpush1.bf16.msra.mxu0 0
    %2462 = vmatprep.subr.bf16.mxu0 0
    %2463 = vmatpush1.bf16.msra.mxu0 0
    %2464 = vmatprep.mubr.bf16.mxu0 0
    %2465 = vmatmul.mubr.bf16.gmra.mrb[0].mxu0 %v2427
    %v2466 = vpop.f32.mrb[0].mxu0
    %v2467 = vadd.f32 0.0, %v2466
    %v2468 = vpop.f32.mrb[0].mxu0
    %v2469 = vpop.f32.mrb[0].mxu0
    %v2470 = vpop.f32.mrb[0].mxu0
    %2471 = vdwg.mxu0
    %v2473 = vsel %vm425, %v2149, 0
    %v2476 = vsel %vm893, %v1685, 0
    %2478 = vmatprep.subr.bf16.mxu0 0
    %2479 = vmatpush1.bf16.msra.mxu0 %v2476
    %2480 = vmatprep.subr.bf16.mxu0 0
    %2481 = vmatpush1.bf16.msra.mxu0 0
    %2482 = vmatprep.subr.bf16.mxu0 0
    %2483 = vmatpush1.bf16.msra.mxu0 0
    %2484 = vmatprep.subr.bf16.mxu0 0
    %2485 = vmatpush1.bf16.msra.mxu0 0
    %2486 = vmatprep.subr.bf16.mxu0 0
    %2487 = vmatpush1.bf16.msra.mxu0 0
    %2488 = vmatprep.subr.bf16.mxu0 0
    %2489 = vmatpush1.bf16.msra.mxu0 0
    %2490 = vmatprep.subr.bf16.mxu0 0
    %2491 = vmatpush1.bf16.msra.mxu0 0
    %2492 = vmatprep.subr.bf16.mxu0 0
    %2493 = vmatpush1.bf16.msra.mxu0 0
    %2494 = vmatprep.subr.bf16.mxu0 0
    %2495 = vmatpush1.bf16.msra.mxu0 0
    %2496 = vmatprep.subr.bf16.mxu0 0
    %2497 = vmatpush1.bf16.msra.mxu0 0
    %2498 = vmatprep.subr.bf16.mxu0 0
    %2499 = vmatpush1.bf16.msra.mxu0 0
    %2500 = vmatprep.subr.bf16.mxu0 0
    %2501 = vmatpush1.bf16.msra.mxu0 0
    %2502 = vmatprep.subr.bf16.mxu0 0
    %2503 = vmatpush1.bf16.msra.mxu0 0
    %2504 = vmatprep.subr.bf16.mxu0 0
    %2505 = vmatpush1.bf16.msra.mxu0 0
    %2506 = vmatprep.subr.bf16.mxu0 0
    %2507 = vmatpush1.bf16.msra.mxu0 0
    %2508 = vmatprep.subr.bf16.mxu0 0
    %2509 = vmatpush1.bf16.msra.mxu0 0
    %2510 = vmatprep.mubr.bf16.mxu0 0
    %2511 = vmatmul.mubr.bf16.gmra.mrb[0].mxu0 %v2473
    %v2512 = vpop.f32.mrb[0].mxu0
    %v2513 = vadd.f32 0.0, %v2512
    %v2514 = vpop.f32.mrb[0].mxu0
    %v2515 = vpop.f32.mrb[0].mxu0
    %v2516 = vpop.f32.mrb[0].mxu0
    %2517 = vdwg.mxu0
    %2519 = vrot.lane.b32.xlu0 %v2237, 8
    %v2520 = vpop.permute.xlu0 %2519
    %2523 = vrot.lane.b32.xlu0 %v2283, 16
    %v2524 = vpop.permute.xlu0 %2523
    %2527 = vrot.lane.b32.xlu0 %v2329, 24
    %v2528 = vpop.permute.xlu0 %2527
    %v2530 = vsel %vm425, %v2191, %v2520
    %v2531 = vsel %vm1272, %v2530, %v2524
    %v2532 = vsel %vm1274, %v2531, %v2528
    %2534 = vrot.lane.b32.xlu0 %v2421, 8
    %v2535 = vpop.permute.xlu0 %2534
    %2538 = vrot.lane.b32.xlu0 %v2467, 16
    %v2539 = vpop.permute.xlu0 %2538
    %2542 = vrot.lane.b32.xlu0 %v2513, 24
    %v2543 = vpop.permute.xlu0 %2542
    %v2545 = vsel %vm425, %v2375, %v2535
    %v2546 = vsel %vm1272, %v2545, %v2539
    %v2547 = vsel %vm1274, %v2546, %v2543
    %v2548 = vpack.c.bf16 %v2547, %v2532
    %v2549 = vlaneseq
    %v2550 = vshrl.u32 %v2549, 7
    %v2551 = vsub.s32 3, %v2550
    %v2552 = vrot.slane %v1420, %v2551
    %v2557 = vunpack.c.l.b16 %v1415
    %v2558 = vunpack.c.l.b16 %v1416
    %v2559 = vunpack.c.l.b16 %v1417
    %v2560 = vunpack.c.l.b16 %v1418
    %v2561 = vpack.c.b16 %v2558, %v2557
    %v2562 = vpack.c.b16 %v2560, %v2559
    %v2566 = vsel %vm98, %v2548, 0
    %2568 = vmatprep.subr.bf16.mxu0 0
    %2569 = vmatpush1.bf16.msra.mxu0 %v2561
    %2570 = vmatprep.subr.bf16.mxu0 0
    %2571 = vmatpush1.bf16.msra.mxu0 %v2562
    %2572 = vmatprep.subr.bf16.mxu0 0
    %2573 = vmatpush1.bf16.msra.mxu0 0
    %2574 = vmatprep.subr.bf16.mxu0 0
    %2575 = vmatpush1.bf16.msra.mxu0 0
    %2576 = vmatprep.subr.bf16.mxu0 0
    %2577 = vmatpush1.bf16.msra.mxu0 0
    %2578 = vmatprep.subr.bf16.mxu0 0
    %2579 = vmatpush1.bf16.msra.mxu0 0
    %2580 = vmatprep.subr.bf16.mxu0 0
    %2581 = vmatpush1.bf16.msra.mxu0 0
    %2582 = vmatprep.subr.bf16.mxu0 0
    %2583 = vmatpush1.bf16.msra.mxu0 0
    %2584 = vmatprep.subr.bf16.mxu0 0
    %2585 = vmatpush1.bf16.msra.mxu0 0
    %2586 = vmatprep.subr.bf16.mxu0 0
    %2587 = vmatpush1.bf16.msra.mxu0 0
    %2588 = vmatprep.subr.bf16.mxu0 0
    %2589 = vmatpush1.bf16.msra.mxu0 0
    %2590 = vmatprep.subr.bf16.mxu0 0
    %2591 = vmatpush1.bf16.msra.mxu0 0
    %2592 = vmatprep.subr.bf16.mxu0 0
    %2593 = vmatpush1.bf16.msra.mxu0 0
    %2594 = vmatprep.subr.bf16.mxu0 0
    %2595 = vmatpush1.bf16.msra.mxu0 0
    %2596 = vmatprep.subr.bf16.mxu0 0
    %2597 = vmatpush1.bf16.msra.mxu0 0
    %2598 = vmatprep.subr.bf16.mxu0 0
    %2599 = vmatpush1.bf16.msra.mxu0 0
    %2600 = vmatprep.mubr.bf16.mxu0 0
    %2601 = vmatmul.mubr.bf16.gmra.mrb[0].mxu0 %v2566
    %v2602 = vpop.f32.mrb[0].mxu0
    %v2603 = vadd.f32 %v2552, %v2602
    %v2604 = vpop.f32.mrb[0].mxu0
    %v2605 = vpop.f32.mrb[0].mxu0
    %v2606 = vadd.f32 %v2552, %v2605
    %v2607 = vpop.f32.mrb[0].mxu0
    %2608 = vdwg.mxu0
    %v2609 = vadd.f32 %v1352, %v2603
    %v2610 = vadd.f32 %v1353, %v2606
    %s2611 = sld [smem:[#allocation9 + $0x4]]
    %s2612 = sld [smem:[#allocation9 + $0x5]]
    %v2613 = vsel %vm98, %v2609, 0.0
    %2614 = vadd.xlane.f32.xlu0 %v2613
    %v2615 = vpop.xlane.xlu0 %2614
    %v2616 = vsel %vm98, %v2610, 0.0
    %2617 = vadd.xlane.f32.xlu0 %v2616
    %v2618 = vpop.xlane.xlu0 %2617
    %v2619 = vmul.f32 %v2615, %v105
    %v2620 = vmul.f32 %v2618, %v105
    %v2621 = vsub.f32 %v2609, %v2619
    %v2622 = vsub.f32 %v2610, %v2620
    %v2623 = vmul.f32 %v2621, %v2621
    %v2624 = vmul.f32 %v2622, %v2622
    %v2625 = vsel %vm98, %v2623, 0.0
    %2626 = vadd.xlane.f32.xlu0 %v2625
    %v2627 = vpop.xlane.xlu0 %2626
    %v2628 = vsel %vm98, %v2624, 0.0
    %2629 = vadd.xlane.f32.xlu0 %v2628
    %v2630 = vpop.xlane.xlu0 %2629
    %v2631 = vmul.f32 %v2627, %v118
    %v2632 = vmul.f32 %v2630, %v118
    %v2633 = vrsqrt.pop %v2631
    %v2634 = vmul.f32 %v2631, %v2633
    %vm2635 = vcmp.eq.f32.partialorder %v2631, inf
    %v2636 = vsel %vm2635, %v2631, %v2634
    %vm2637 = vcmp.eq.f32.partialorder %v2631, 0.0
    %v2638 = vand.u32 %v2631, 2147483648
    %v2639 = vsel %vm2637, %v2638, %v2636
    %v2640 = vrsqrt.pop %v2632
    %v2641 = vmul.f32 %v2632, %v2640
    %vm2642 = vcmp.eq.f32.partialorder %v2632, inf
    %v2643 = vsel %vm2642, %v2632, %v2641
    %vm2644 = vcmp.eq.f32.partialorder %v2632, 0.0
    %v2645 = vand.u32 %v2632, 2147483648
    %v2646 = vsel %vm2644, %v2645, %v2643
    %v2647 = vadd.f32 %v2639, 1e-06
    %v2648 = vadd.f32 %v2646, 1e-06
    %v2649 = vrcp.pop %v2647
    %v2650 = vrcp.pop %v2648
    %v2651 = vstv %s2611
    %v2652 = vmul.f32 %v2651, %v2621
    %v2653 = vmul.f32 %v2651, %v2622
    %v2654 = vmul.f32 %v2652, %v2649
    %v2655 = vmul.f32 %v2653, %v2650
    %v2656 = vstv %s2612
    %v2657 = vadd.f32 %v2654, %v2656
    %v2658 = vadd.f32 %v2655, %v2656
    %v2659 = vpack.c.bf16 %v2658, %v2657
    %v2660 = vld [vmem:[%s6] sm:$0xf]
    %v2661 = vld [vmem:[%s6 + $0x4] sm:$0xf]
    %v2662 = vld [vmem:[%s6 + $0x8] sm:$0xf]
    %v2663 = vld [vmem:[%s6 + $0xc] sm:$0xf]
    %v2664 = vlaneseq
    %v2665 = vshrl.u32 %v2664, 7
    %v2666 = vsub.s32 0, %v2665
    %v2667 = vrot.slane %v95, %v2666
    %v2672 = vunpack.c.l.b16 %v2660
    %v2673 = vunpack.c.l.b16 %v2661
    %v2674 = vunpack.c.l.b16 %v2662
    %v2675 = vunpack.c.l.b16 %v2663
    %v2676 = vpack.c.b16 %v2673, %v2672
    %v2677 = vpack.c.b16 %v2675, %v2674
    %v2681 = vsel %vm98, %v2659, 0
    %2683 = vmatprep.subr.bf16.mxu0 0
    %2684 = vmatpush1.bf16.msra.mxu0 %v2676
    %2685 = vmatprep.subr.bf16.mxu0 0
    %2686 = vmatpush1.bf16.msra.mxu0 %v2677
    %2687 = vmatprep.subr.bf16.mxu0 0
    %2688 = vmatpush1.bf16.msra.mxu0 0
    %2689 = vmatprep.subr.bf16.mxu0 0
    %2690 = vmatpush1.bf16.msra.mxu0 0
    %2691 = vmatprep.subr.bf16.mxu0 0
    %2692 = vmatpush1.bf16.msra.mxu0 0
    %2693 = vmatprep.subr.bf16.mxu0 0
    %2694 = vmatpush1.bf16.msra.mxu0 0
    %2695 = vmatprep.subr.bf16.mxu0 0
    %2696 = vmatpush1.bf16.msra.mxu0 0
    %2697 = vmatprep.subr.bf16.mxu0 0
    %2698 = vmatpush1.bf16.msra.mxu0 0
    %2699 = vmatprep.subr.bf16.mxu0 0
    %2700 = vmatpush1.bf16.msra.mxu0 0
    %2701 = vmatprep.subr.bf16.mxu0 0
    %2702 = vmatpush1.bf16.msra.mxu0 0
    %2703 = vmatprep.subr.bf16.mxu0 0
    %2704 = vmatpush1.bf16.msra.mxu0 0
    %2705 = vmatprep.subr.bf16.mxu0 0
    %2706 = vmatpush1.bf16.msra.mxu0 0
    %2707 = vmatprep.subr.bf16.mxu0 0
    %2708 = vmatpush1.bf16.msra.mxu0 0
    %2709 = vmatprep.subr.bf16.mxu0 0
    %2710 = vmatpush1.bf16.msra.mxu0 0
    %2711 = vmatprep.subr.bf16.mxu0 0
    %2712 = vmatpush1.bf16.msra.mxu0 0
    %2713 = vmatprep.subr.bf16.mxu0 0
    %2714 = vmatpush1.bf16.msra.mxu0 0
    %2715 = vmatprep.mubr.bf16.mxu0 0
    %2716 = vmatmul.mubr.bf16.gmra.mrb[0].mxu0 %v2681
    %v2717 = vpop.f32.mrb[0].mxu0
    %v2718 = vadd.f32 %v2667, %v2717
    %v2719 = vpop.f32.mrb[0].mxu0
    %v2720 = vpop.f32.mrb[0].mxu0
    %v2721 = vadd.f32 %v2667, %v2720
    %v2722 = vpop.f32.mrb[0].mxu0
    %2723 = vdwg.mxu0
    %v2724 = vmax.f32 %v2718, 0.0
    %v2725 = vmax.f32 %v2721, 0.0
    %v2726 = vpack.c.bf16 %v2725, %v2724
    %v2727 = vld [vmem:[%s7] sm:$0xf]
    %v2728 = vld [vmem:[%s7 + $0x4] sm:$0xf]
    %v2729 = vld [vmem:[%s7 + $0x8] sm:$0xf]
    %v2730 = vld [vmem:[%s7 + $0xc] sm:$0xf]
    %v2731 = vld [vmem:[%s7 + $0x10] sm:$0xf]
    %v2732 = vld [vmem:[%s7 + $0x14] sm:$0xf]
    %v2733 = vld [vmem:[%s7 + $0x18] sm:$0xf]
    %v2734 = vld [vmem:[%s7 + $0x1c] sm:$0xf]
    %v2735 = vlaneseq
    %v2736 = vshrl.u32 %v2735, 7
    %v2737 = vsub.s32 1, %v2736
    %v2738 = vrot.slane %v95, %v2737
    %v2747 = vunpack.c.l.b16 %v2727
    %v2748 = vunpack.c.l.b16 %v2728
    %v2749 = vunpack.c.l.b16 %v2729
    %v2750 = vunpack.c.l.b16 %v2730
    %v2751 = vunpack.c.l.b16 %v2731
    %v2752 = vunpack.c.l.b16 %v2732
    %v2753 = vunpack.c.l.b16 %v2733
    %v2754 = vunpack.c.l.b16 %v2734
    %v2755 = vpack.c.b16 %v2748, %v2747
    %v2756 = vpack.c.b16 %v2750, %v2749
    %v2757 = vpack.c.b16 %v2752, %v2751
    %v2758 = vpack.c.b16 %v2754, %v2753
    %vm2763 = vcmask 523264
    %v2765 = vsel %vm2763, %v2726, 0
    %2767 = vmatprep.subr.bf16.mxu0 0
    %2768 = vmatpush1.bf16.msra.mxu0 %v2755
    %2769 = vmatprep.subr.bf16.mxu0 0
    %2770 = vmatpush1.bf16.msra.mxu0 %v2756
    %2771 = vmatprep.subr.bf16.mxu0 0
    %2772 = vmatpush1.bf16.msra.mxu0 %v2757
    %2773 = vmatprep.subr.bf16.mxu0 0
    %2774 = vmatpush1.bf16.msra.mxu0 %v2758
    %2775 = vmatprep.subr.bf16.mxu0 0
    %2776 = vmatpush1.bf16.msra.mxu0 0
    %2777 = vmatprep.subr.bf16.mxu0 0
    %2778 = vmatpush1.bf16.msra.mxu0 0
    %2779 = vmatprep.subr.bf16.mxu0 0
    %2780 = vmatpush1.bf16.msra.mxu0 0
    %2781 = vmatprep.subr.bf16.mxu0 0
    %2782 = vmatpush1.bf16.msra.mxu0 0
    %2783 = vmatprep.subr.bf16.mxu0 0
    %2784 = vmatpush1.bf16.msra.mxu0 0
    %2785 = vmatprep.subr.bf16.mxu0 0
    %2786 = vmatpush1.bf16.msra.mxu0 0
    %2787 = vmatprep.subr.bf16.mxu0 0
    %2788 = vmatpush1.bf16.msra.mxu0 0
    %2789 = vmatprep.subr.bf16.mxu0 0
    %2790 = vmatpush1.bf16.msra.mxu0 0
    %2791 = vmatprep.subr.bf16.mxu0 0
    %2792 = vmatpush1.bf16.msra.mxu0 0
    %2793 = vmatprep.subr.bf16.mxu0 0
    %2794 = vmatpush1.bf16.msra.mxu0 0
    %2795 = vmatprep.subr.bf16.mxu0 0
    %2796 = vmatpush1.bf16.msra.mxu0 0
    %2797 = vmatprep.subr.bf16.mxu0 0
    %2798 = vmatpush1.bf16.msra.mxu0 0
    %2799 = vmatprep.mubr.bf16.mxu0 0
    %2800 = vmatmul.mubr.bf16.gmra.mrb[0].mxu0 %v2765
    %v2801 = vpop.f32.mrb[0].mxu0
    %v2802 = vadd.f32 %v2738, %v2801
    %v2803 = vpop.f32.mrb[0].mxu0
    %v2804 = vpop.f32.mrb[0].mxu0
    %v2805 = vadd.f32 %v2738, %v2804
    %v2806 = vpop.f32.mrb[0].mxu0
    %2807 = vdwg.mxu0
    %v2808 = vadd.f32 %v2609, %v2802
    %v2809 = vadd.f32 %v2610, %v2805
    %2810 = vst.msk [vmem:[#allocation10] sm:$0xff] %vm98, %v2808
    %2811 = vst.msk [vmem:[#allocation10 + $0x8] sm:$0xff] %vm98, %v2809
    // Predicated region
    $region58: #{tpu_custom_call.1} parent=1 // pred_check
      _
    $region59: #{tpu_custom_call.1} parent=1 // pred_check_branch
      %2813 = sbr.rel (0) target = $region61
    $region60: #{tpu_custom_call.1} parent=1 // pred_region
      %s2815 = ssub.s32 256, 256
      %2816 = vsyncadd [#allocation4], %s2815
      %s2817 = sshll.u32 [#allocation10], 4
      %s2818 = int_to_ptr.vmem [resolvable:$true] %s2817
      %2823 = dma.vmem_to_hbm [thread:$0]  %s2818, 256, %s10, [#allocation4], 128, 128, 8
    $region61: #{tpu_custom_call.1} parent=1 // pred_fallthru
      _
    // Predicated region
    $region62: #{tpu_custom_call.1} parent=1 // pred_check
      _
    $region63: #{tpu_custom_call.1} parent=1 // pred_check_branch
      %2825 = sbr.rel (0) target = $region65
    $region64: #{tpu_custom_call.1} parent=1 // pred_region
      %2826 = dma.done [#allocation4], 256
    $region65: #{tpu_custom_call.1} parent=1 // pred_fallthru
      _
    %2827 = vsyncpa [#allocation3], 1
    %2828 = vsyncpa [#allocation7], 1
    %2829 = vsyncpa [#allocation4], 1
    %2830 = vsyncpa [#allocation5], 1

</llo_original>
